<compile_context>
chip_gen: v6e
topology: v6e:2x2x1
jax: 0.10.0
libtpu: 0.0.40
codegen_flags: <defaults>
</compile_context>

<pallas_src>
import functools

import jax
import jax.numpy as jnp
from jax import lax
from jax.experimental import pallas as pl
from jax.experimental.pallas import tpu as pltpu


# --------------------------------------------------------------------------- #
# Kernel
# --------------------------------------------------------------------------- #
def _gat_kernel(a_src_ref, a_dst_ref, adj_ref, ext_ref, z_ref,
                w_edge_cat_ref, b_edge_cat_ref, w_ea_ref, out_ref):
    H, _, D = z_ref.shape                      # z : [H, N, D]
    Ed = ext_ref.shape[1]                      # ext : [T, Ed, N]

    adj = adj_ref[...]                         # [T, N]
    mask = adj > 0.0
    a_dst = a_dst_ref[...]                     # [T, H]  (attn-dst part + folded consts)
    a_src = a_src_ref[...]                     # [H, N]  (attn-src part)

    # ---- Phase 1: attention logits for ALL heads, edge block streamed once ----
    # logits_h[t, n] = a_dst[t, h] + a_src[h, n] + sum_e w_ea[e, h] * ext[t, e, n]
    logits = [a_dst[:, h:h + 1] + a_src[h:h + 1, :] for h in range(H)]
    for e in range(Ed):                        # unrolled; Ed is small
        slab = ext_ref[:, e, :]                # [T, N]; one total pass over ext
        for h in range(H):
            logits[h] = logits[h] + w_ea_ref[e, h] * slab     # scalar from SMEM

    # ---- Phase 2: masked softmax over incoming edges (src axis), per head ----
    neg_inf = jnp.float32(-1e30)
    alphas = []
    for h in range(H):
        a = logits[h]
        a = jnp.where(a > 0.0, a, 0.2 * a)                    # leaky_relu(., 0.2)
        a_m = jnp.where(mask, a, neg_inf)
        m = jnp.max(a_m, axis=1, keepdims=True)
        p = jnp.where(mask, jnp.exp(a_m - m), 0.0)            # 2nd where: isolated rows
        denom = jnp.sum(p, axis=1, keepdims=True)
        d_safe = jnp.maximum(denom, 1e-30)
        inv = pl.reciprocal(d_safe, approx=True)              # EUP slot
        inv = inv * (2.0 - d_safe * inv)                      # one Newton step
        alphas.append(p * inv)                                # [T, N]; 0 for isolated dst

    # ---- Phase 3a: node aggregation (per-head MXU matmuls, K = N) --------------
    h_node = jnp.concatenate(
        [jnp.dot(alphas[h], z_ref[h], preferred_element_type=jnp.float32)
         for h in range(H)], axis=1)                          # [T, H*D] lane-dense

    # ---- Phase 3b: edge aggregation, ONE batched contraction over src ---------
    alpha_stk = jnp.stack(alphas, axis=1)                     # [T, H, N]
    ext_val = ext_ref[...]                                    # [T, Ed, N] (2nd ext pass)
    wex = jnp.einsum("thn,ten->the", alpha_stk, ext_val,
                     preferred_element_type=jnp.float32)      # [T, H, Ed]
    wex_cat = jnp.concatenate([wex[:, h, :] for h in range(H)], axis=1)   # [T, H*Ed]

    # fc_edge applied AFTER the alpha-weighted reduction, one block-diag matmul.
    h_edge = jnp.dot(wex_cat, w_edge_cat_ref[...],
                     preferred_element_type=jnp.float32)      # [T, H*D]
    has_edge = (jnp.sum(adj, axis=1, keepdims=True) > 0.0).astype(jnp.float32)
    h_edge = h_edge + has_edge * b_edge_cat_ref[...]          # bias * rowsum(alpha)

    out_ref[...] = (h_node + h_edge).astype(out_ref.dtype)    # single full-width store


# --------------------------------------------------------------------------- #
# Tiling / VMEM heuristics (generation-aware)
# --------------------------------------------------------------------------- #
def _round_up(v, m):
    return ((v + m - 1) // m) * m


def _step_vmem_bytes(T, N, Ed, H, D):
    lane = 128
    Np = max(_round_up(N, lane), lane)
    Tp = max(_round_up(T, 8), 8)
    HDp = max(_round_up(H * D, lane), lane)
    ext_blk = Tp * _round_up(Ed, 8) * Np * 4
    adj_blk = Tp * Np * 4
    adst_blk = Tp * lane * 4
    out_blk = Tp * HDp * 4
    z_full = H * _round_up(N, 8) * max(_round_up(D, lane), lane) * 4
    asrc = _round_up(H, 8) * Np * 4
    # in-kernel [T, N]-sized temporaries (logits/alphas for all heads + stacked alpha)
    tmp = (2 * H + 2) * Tp * Np * 4 + Tp * 8 * Np * 4
    return 2 * (ext_blk + adj_blk + adst_blk + out_blk) + 2 * (z_full + asrc) + tmp


def _choose_tile_and_vmem(N, Ed, H, D):
    try:
        cap = int(pltpu.get_tpu_info().vmem_capacity_bytes)
    except Exception:
        cap = 64 << 20                       # conservative default (v7x per-core VMEM)
    budget = int(0.75 * cap)                 # ~96 MiB on v5e/v6e, ~48 MiB on v7x
    if N <= 8:
        T = N
    else:
        # >= 2 dst tiles for small graphs (keeps both v7x TensorCores busy),
        # capped at 128 rows; shrink until the double-buffered footprint fits.
        T = min(128, _round_up(pl.cdiv(N, 2), 8))
        while T > 8 and _step_vmem_bytes(T, N, Ed, H, D) > budget:
            T = max(8, ((T // 2) // 8) * 8)
    est = _step_vmem_bytes(T, N, Ed, H, D) + (4 << 20)
    vmem_limit = int(min(max(est, 32 << 20), budget))
    return T, vmem_limit


# --------------------------------------------------------------------------- #
# Wrapper
# --------------------------------------------------------------------------- #
def multi_head_gat(x, adj, ex, params):
    """Forward of MultiHeadGATLayer (merge='cat'). Returns ([N, H*D] f32, None)."""
    H, in_dim, D = params["wfc"].shape
    N = x.shape[0]
    Ed = ex.shape[2]
    HD = H * D

    wfc = params["wfc"]                       # [H, in_dim, D]
    bfc = params["bfc"]                       # [H, 1, D]
    wsrc = params["wsrc"][:, 0, :]            # [H, D]
    wdst = params["wdst"][:, 0, :]            # [H, D]
    we = params["we"][:, 0, :]                # [H, Ed]
    weatt = params["weatt"]                   # [H, Ed, Ed]
    beatt = params["beatt"][:, 0, :]          # [H, Ed]
    battn = params["battn"][:, 0, 0]          # [H]
    wedge = params["wedge"]                   # [H, Ed, D]
    bedge = params["bedge"][:, 0, :]          # [H, D]

    # ---- grid-invariant node-side matmuls hoisted to XLA (feedback: hoisting) ----
    z_heads = jnp.einsum("ni,hid->hnd", x, wfc) + bfc                   # [H, N, D]
    a_src = jnp.einsum("hnd,hd->hn", z_heads, wsrc)                     # [H, N]
    a_dst = (jnp.einsum("hnd,hd->nh", z_heads, wdst)
             + (battn + jnp.einsum("he,he->h", beatt, we))[None, :])    # [N, H]

    # fc_edge_for_att_calc folded with attn_fc edge part -> single [Ed, H] weight.
    w_ea = jnp.einsum("hef,hf->eh", weatt, we)                          # [Ed, H]

    # Block-diagonal fc_edge weight: one K = H*Ed matmul for all heads.
    w_edge_cat = jnp.zeros((H * Ed, HD), jnp.float32)
    for h in range(H):
        w_edge_cat = w_edge_cat.at[h * Ed:(h + 1) * Ed, h * D:(h + 1) * D].set(wedge[h])
    b_edge_cat = bedge.reshape(1, HD)

    # ex[dst, src, e] -> [dst, e, src]: src lane-dense, Ed on the sublane axis.
    ext = jnp.transpose(ex, (0, 2, 1))                                  # [N, Ed, N]

    T, vmem_limit = _choose_tile_and_vmem(N, Ed, H, D)
    num_tiles = pl.cdiv(N, T)

    out = pl.pallas_call(
        _gat_kernel,
        out_shape=jax.ShapeDtypeStruct((N, HD), jnp.float32),
        grid=(num_tiles,),
        in_specs=[
            pl.BlockSpec((H, N), lambda i: (0, 0)),            # a_src  (full)
            pl.BlockSpec((T, H), lambda i: (i, 0)),            # a_dst  (dst tile)
            pl.BlockSpec((T, N), lambda i: (i, 0)),            # adj    (dst tile)
            pl.BlockSpec((T, Ed, N), lambda i: (i, 0, 0)),     # ext    (dst tile)
            pl.BlockSpec((H, N, D), lambda i: (0, 0, 0)),      # z_heads (full)
            pl.BlockSpec((H * Ed, HD), lambda i: (0, 0)),      # block-diag fc_edge W
            pl.BlockSpec((1, HD), lambda i: (0, 0)),           # fc_edge bias (concat)
            pl.BlockSpec(memory_space=pltpu.MemorySpace.SMEM), # w_ea scalar table
        ],
        out_specs=pl.BlockSpec((T, HD), lambda i: (i, 0)),     # lane-dense merged 'cat'
        compiler_params=pltpu.CompilerParams(
            dimension_semantics=("parallel",),
            vmem_limit_bytes=vmem_limit),
    )(a_src, a_dst, adj, ext, z_heads, w_edge_cat, b_edge_cat, w_ea)

    return out, None


# --------------------------------------------------------------------------- #
# Pure-JAX reference (unfused per-head math, matches the PyTorch module)
# --------------------------------------------------------------------------- #
def reference(x, adj, ex, params):
    H, _, D = params["wfc"].shape
    N = x.shape[0]
    Ed = ex.shape[2]
    outs = []
    for h in range(H):
        z = x @ params["wfc"][h] + params["bfc"][h]
        ex2 = ex.reshape(N * N, Ed)
        ex_t = (ex2 @ params["weatt"][h] + params["beatt"][h]).reshape(N, N, Ed)
        ez = (ex2 @ params["wedge"][h] + params["bedge"][h]).reshape(N, N, D)
        ea = jnp.sum(ex_t * params["we"][h][0], axis=-1)
        a_src = jnp.sum(z * params["wsrc"][h][0], axis=-1)
        a_dst = jnp.sum(z * params["wdst"][h][0], axis=-1)
        a = a_dst[:, None] + a_src[None, :] + ea + params["battn"][h][0, 0]
        e = jnp.where(a > 0, a, 0.2 * a)
        e_m = jnp.where(adj > 0, e, -1e30)
        m = jnp.max(e_m, axis=1, keepdims=True)
        p = jnp.where(adj > 0, jnp.exp(e_m - m), 0.0)
        alpha = p / jnp.maximum(jnp.sum(p, axis=1, keepdims=True), 1e-30)
        hout = alpha @ z + jnp.sum(alpha[:, :, None] * ez, axis=1)
        outs.append(hout)
    return jnp.concatenate(outs, axis=1)


def init_params(key, num_heads, in_dim, out_dim, edge_dim):
    ks = jax.random.split(key, 8)
    gain = 2.0 ** 0.5  # nn.init.calculate_gain('relu')

    def xavier(k, shape):
        fan_in, fan_out = shape[-2], shape[-1]
        std = gain * (2.0 / (fan_in + fan_out)) ** 0.5
        return std * jax.random.normal(k, shape, dtype=jnp.float32)

    H, D, Ed = num_heads, out_dim, edge_dim
    # attn_fc weight is [1, 2D+Ed]; split into src/dst/edge pieces.
    w_attn = xavier(ks[4], (H, 1, 2 * D + Ed))
    return {
        "wfc": xavier(ks[0], (H, in_dim, D)),
        "bfc": 0.01 * jax.random.normal(ks[1], (H, 1, D), dtype=jnp.float32),
        "weatt": xavier(ks[2], (H, Ed, Ed)),
        "beatt": 0.01 * jax.random.normal(ks[3], (H, 1, Ed), dtype=jnp.float32),
        "wedge": xavier(ks[5], (H, Ed, D)),
        "bedge": 0.01 * jax.random.normal(ks[6], (H, 1, D), dtype=jnp.float32),
        "wsrc": w_attn[:, :, :D],
        "wdst": w_attn[:, :, D:2 * D],
        "we": w_attn[:, :, 2 * D:],
        "battn": 0.01 * jax.random.normal(ks[7], (H, 1, 1), dtype=jnp.float32),
    }


if __name__ == "__main__":
    N, in_dim, out_dim, edge_dim, num_heads = 8, 16, 32, 8, 4

    key = jax.random.PRNGKey(0)
    k_x, k_adj, k_ex, k_p = jax.random.split(key, 4)

    x = jax.random.normal(k_x, (N, in_dim), dtype=jnp.float32)
    adj = jax.random.bernoulli(k_adj, 0.6, (N, N)).astype(jnp.float32)   # adj[dst, src]
    ex = jax.random.normal(k_ex, (N, N, edge_dim), dtype=jnp.float32)
    params = init_params(k_p, num_heads, in_dim, out_dim, edge_dim)

    out, aux = multi_head_gat(x, adj, ex, params)
    out = jax.block_until_ready(out)

    ref = reference(x, adj, ex, params)
    assert out.shape == (N, num_heads * out_dim)
    assert aux is None
    # tolerance covers fp-association differences from the folded/hoisted weights and
    # the Newton-refined approximate reciprocal (errors ~1e-6; real bugs are O(0.1+)).
    assert jnp.allclose(out, ref, atol=1e-3, rtol=1e-3), "mismatch vs reference"

    print("KERNEL_OK")
</pallas_src>

<mosaic_0001>
module attributes {stable_mosaic.version = 11 : i64} {
  func.func @_gat_kernel(%arg0: i32, %arg1: memref<4x8xf32, #tpu.memory_space<vmem>>, %arg2: memref<8x4xf32, #tpu.memory_space<vmem>>, %arg3: memref<8x8xf32, #tpu.memory_space<vmem>>, %arg4: memref<8x8x8xf32, #tpu.memory_space<vmem>>, %arg5: memref<4x8x32xf32, #tpu.memory_space<vmem>>, %arg6: memref<32x128xf32, #tpu.memory_space<vmem>>, %arg7: memref<1x128xf32, #tpu.memory_space<vmem>>, %arg8: memref<8x4xf32, #tpu.memory_space<smem>>, %arg9: memref<8x128xf32, #tpu.memory_space<vmem>>) attributes {dimension_semantics = [#tpu.dimension_semantics<parallel>], iteration_bounds = array<i64: 1>, scalar_prefetch = 0 : i64, scratch_operands = 0 : i64, tpu.core_type = #tpu.core_type<tc>, window_params = [{pipeline_mode = #tpu.pipeline_mode<synchronous>, transform_indices = @transform_0, window_bounds = array<i64: 4, 8>}, {transform_indices = @transform_1, window_bounds = array<i64: 8, 4>}, {transform_indices = @transform_2, window_bounds = array<i64: 8, 8>}, {transform_indices = @transform_3, window_bounds = array<i64: 8, 8, 8>}, {pipeline_mode = #tpu.pipeline_mode<synchronous>, transform_indices = @transform_4, window_bounds = array<i64: 4, 8, 32>}, {pipeline_mode = #tpu.pipeline_mode<synchronous>, transform_indices = @transform_5, window_bounds = array<i64: 32, 128>}, {pipeline_mode = #tpu.pipeline_mode<synchronous>, transform_indices = @transform_6, window_bounds = array<i64: 1, 128>}, {transform_indices = @transform_7, window_bounds = array<i64: 8, 4>}, {transform_indices = @transform_8, window_bounds = array<i64: 8, 128>}]} {
    %c0 = arith.constant 0 : index
    %c0_0 = arith.constant 0 : index
    %0 = vector.load %arg3[%c0, %c0_0] : memref<8x8xf32, #tpu.memory_space<vmem>>, vector<8x8xf32>
    %cst = arith.constant 0.000000e+00 : f32
    %1 = vector.broadcast %cst : f32 to vector<8x8xf32>
    %2 = arith.cmpf ogt, %0, %1 : vector<8x8xf32>
    %c0_1 = arith.constant 0 : index
    %c0_2 = arith.constant 0 : index
    %3 = vector.load %arg2[%c0_1, %c0_2] : memref<8x4xf32, #tpu.memory_space<vmem>>, vector<8x4xf32>
    %c0_3 = arith.constant 0 : index
    %c0_4 = arith.constant 0 : index
    %4 = vector.load %arg1[%c0_3, %c0_4] : memref<4x8xf32, #tpu.memory_space<vmem>>, vector<4x8xf32>
    %5 = vector.extract_strided_slice %3 {offsets = [0, 0], sizes = [8, 1], strides = [1, 1]} : vector<8x4xf32> to vector<8x1xf32>
    %6 = vector.extract_strided_slice %4 {offsets = [0, 0], sizes = [1, 8], strides = [1, 1]} : vector<4x8xf32> to vector<1x8xf32>
    %7 = vector.broadcast %5 : vector<8x1xf32> to vector<8x8xf32>
    %8 = vector.broadcast %6 : vector<1x8xf32> to vector<8x8xf32>
    %9 = arith.addf %7, %8 : vector<8x8xf32>
    %10 = vector.extract_strided_slice %3 {offsets = [0, 1], sizes = [8, 1], strides = [1, 1]} : vector<8x4xf32> to vector<8x1xf32>
    %11 = vector.extract_strided_slice %4 {offsets = [1, 0], sizes = [1, 8], strides = [1, 1]} : vector<4x8xf32> to vector<1x8xf32>
    %12 = vector.broadcast %10 : vector<8x1xf32> to vector<8x8xf32>
    %13 = vector.broadcast %11 : vector<1x8xf32> to vector<8x8xf32>
    %14 = arith.addf %12, %13 : vector<8x8xf32>
    %15 = vector.extract_strided_slice %3 {offsets = [0, 2], sizes = [8, 1], strides = [1, 1]} : vector<8x4xf32> to vector<8x1xf32>
    %16 = vector.extract_strided_slice %4 {offsets = [2, 0], sizes = [1, 8], strides = [1, 1]} : vector<4x8xf32> to vector<1x8xf32>
    %17 = vector.broadcast %15 : vector<8x1xf32> to vector<8x8xf32>
    %18 = vector.broadcast %16 : vector<1x8xf32> to vector<8x8xf32>
    %19 = arith.addf %17, %18 : vector<8x8xf32>
    %20 = vector.extract_strided_slice %3 {offsets = [0, 3], sizes = [8, 1], strides = [1, 1]} : vector<8x4xf32> to vector<8x1xf32>
    %21 = vector.extract_strided_slice %4 {offsets = [3, 0], sizes = [1, 8], strides = [1, 1]} : vector<4x8xf32> to vector<1x8xf32>
    %22 = vector.broadcast %20 : vector<8x1xf32> to vector<8x8xf32>
    %23 = vector.broadcast %21 : vector<1x8xf32> to vector<8x8xf32>
    %24 = arith.addf %22, %23 : vector<8x8xf32>
    %c0_5 = arith.constant 0 : index
    %c0_6 = arith.constant 0 : index
    %c0_7 = arith.constant 0 : index
    %25 = vector.load %arg4[%c0_5, %c0_6, %c0_7] : memref<8x8x8xf32, #tpu.memory_space<vmem>>, vector<8x1x8xf32>
    %26 = vector.shape_cast %25 : vector<8x1x8xf32> to vector<8x8xf32>
    %c0_8 = arith.constant 0 : index
    %c0_9 = arith.constant 0 : index
    %27 = memref.load %arg8[%c0_8, %c0_9] : memref<8x4xf32, #tpu.memory_space<smem>>
    %28 = vector.broadcast %27 : f32 to vector<8x8xf32>
    %29 = arith.mulf %28, %26 : vector<8x8xf32>
    %30 = arith.addf %9, %29 : vector<8x8xf32>
    %c0_10 = arith.constant 0 : index
    %c1 = arith.constant 1 : index
    %31 = memref.load %arg8[%c0_10, %c1] : memref<8x4xf32, #tpu.memory_space<smem>>
    %32 = vector.broadcast %31 : f32 to vector<8x8xf32>
    %33 = arith.mulf %32, %26 : vector<8x8xf32>
    %34 = arith.addf %14, %33 : vector<8x8xf32>
    %c0_11 = arith.constant 0 : index
    %c2 = arith.constant 2 : index
    %35 = memref.load %arg8[%c0_11, %c2] : memref<8x4xf32, #tpu.memory_space<smem>>
    %36 = vector.broadcast %35 : f32 to vector<8x8xf32>
    %37 = arith.mulf %36, %26 : vector<8x8xf32>
    %38 = arith.addf %19, %37 : vector<8x8xf32>
    %c0_12 = arith.constant 0 : index
    %c3 = arith.constant 3 : index
    %39 = memref.load %arg8[%c0_12, %c3] : memref<8x4xf32, #tpu.memory_space<smem>>
    %40 = vector.broadcast %39 : f32 to vector<8x8xf32>
    %41 = arith.mulf %40, %26 : vector<8x8xf32>
    %42 = arith.addf %24, %41 : vector<8x8xf32>
    %c0_13 = arith.constant 0 : index
    %c1_14 = arith.constant 1 : index
    %c0_15 = arith.constant 0 : index
    %43 = vector.load %arg4[%c0_13, %c1_14, %c0_15] : memref<8x8x8xf32, #tpu.memory_space<vmem>>, vector<8x1x8xf32>
    %44 = vector.shape_cast %43 : vector<8x1x8xf32> to vector<8x8xf32>
    %c1_16 = arith.constant 1 : index
    %c0_17 = arith.constant 0 : index
    %45 = memref.load %arg8[%c1_16, %c0_17] : memref<8x4xf32, #tpu.memory_space<smem>>
    %46 = vector.broadcast %45 : f32 to vector<8x8xf32>
    %47 = arith.mulf %46, %44 : vector<8x8xf32>
    %48 = arith.addf %30, %47 : vector<8x8xf32>
    %c1_18 = arith.constant 1 : index
    %c1_19 = arith.constant 1 : index
    %49 = memref.load %arg8[%c1_18, %c1_19] : memref<8x4xf32, #tpu.memory_space<smem>>
    %50 = vector.broadcast %49 : f32 to vector<8x8xf32>
    %51 = arith.mulf %50, %44 : vector<8x8xf32>
    %52 = arith.addf %34, %51 : vector<8x8xf32>
    %c1_20 = arith.constant 1 : index
    %c2_21 = arith.constant 2 : index
    %53 = memref.load %arg8[%c1_20, %c2_21] : memref<8x4xf32, #tpu.memory_space<smem>>
    %54 = vector.broadcast %53 : f32 to vector<8x8xf32>
    %55 = arith.mulf %54, %44 : vector<8x8xf32>
    %56 = arith.addf %38, %55 : vector<8x8xf32>
    %c1_22 = arith.constant 1 : index
    %c3_23 = arith.constant 3 : index
    %57 = memref.load %arg8[%c1_22, %c3_23] : memref<8x4xf32, #tpu.memory_space<smem>>
    %58 = vector.broadcast %57 : f32 to vector<8x8xf32>
    %59 = arith.mulf %58, %44 : vector<8x8xf32>
    %60 = arith.addf %42, %59 : vector<8x8xf32>
    %c0_24 = arith.constant 0 : index
    %c2_25 = arith.constant 2 : index
    %c0_26 = arith.constant 0 : index
    %61 = vector.load %arg4[%c0_24, %c2_25, %c0_26] : memref<8x8x8xf32, #tpu.memory_space<vmem>>, vector<8x1x8xf32>
    %62 = vector.shape_cast %61 : vector<8x1x8xf32> to vector<8x8xf32>
    %c2_27 = arith.constant 2 : index
    %c0_28 = arith.constant 0 : index
    %63 = memref.load %arg8[%c2_27, %c0_28] : memref<8x4xf32, #tpu.memory_space<smem>>
    %64 = vector.broadcast %63 : f32 to vector<8x8xf32>
    %65 = arith.mulf %64, %62 : vector<8x8xf32>
    %66 = arith.addf %48, %65 : vector<8x8xf32>
    %c2_29 = arith.constant 2 : index
    %c1_30 = arith.constant 1 : index
    %67 = memref.load %arg8[%c2_29, %c1_30] : memref<8x4xf32, #tpu.memory_space<smem>>
    %68 = vector.broadcast %67 : f32 to vector<8x8xf32>
    %69 = arith.mulf %68, %62 : vector<8x8xf32>
    %70 = arith.addf %52, %69 : vector<8x8xf32>
    %c2_31 = arith.constant 2 : index
    %c2_32 = arith.constant 2 : index
    %71 = memref.load %arg8[%c2_31, %c2_32] : memref<8x4xf32, #tpu.memory_space<smem>>
    %72 = vector.broadcast %71 : f32 to vector<8x8xf32>
    %73 = arith.mulf %72, %62 : vector<8x8xf32>
    %74 = arith.addf %56, %73 : vector<8x8xf32>
    %c2_33 = arith.constant 2 : index
    %c3_34 = arith.constant 3 : index
    %75 = memref.load %arg8[%c2_33, %c3_34] : memref<8x4xf32, #tpu.memory_space<smem>>
    %76 = vector.broadcast %75 : f32 to vector<8x8xf32>
    %77 = arith.mulf %76, %62 : vector<8x8xf32>
    %78 = arith.addf %60, %77 : vector<8x8xf32>
    %c0_35 = arith.constant 0 : index
    %c3_36 = arith.constant 3 : index
    %c0_37 = arith.constant 0 : index
    %79 = vector.load %arg4[%c0_35, %c3_36, %c0_37] : memref<8x8x8xf32, #tpu.memory_space<vmem>>, vector<8x1x8xf32>
    %80 = vector.shape_cast %79 : vector<8x1x8xf32> to vector<8x8xf32>
    %c3_38 = arith.constant 3 : index
    %c0_39 = arith.constant 0 : index
    %81 = memref.load %arg8[%c3_38, %c0_39] : memref<8x4xf32, #tpu.memory_space<smem>>
    %82 = vector.broadcast %81 : f32 to vector<8x8xf32>
    %83 = arith.mulf %82, %80 : vector<8x8xf32>
    %84 = arith.addf %66, %83 : vector<8x8xf32>
    %c3_40 = arith.constant 3 : index
    %c1_41 = arith.constant 1 : index
    %85 = memref.load %arg8[%c3_40, %c1_41] : memref<8x4xf32, #tpu.memory_space<smem>>
    %86 = vector.broadcast %85 : f32 to vector<8x8xf32>
    %87 = arith.mulf %86, %80 : vector<8x8xf32>
    %88 = arith.addf %70, %87 : vector<8x8xf32>
    %c3_42 = arith.constant 3 : index
    %c2_43 = arith.constant 2 : index
    %89 = memref.load %arg8[%c3_42, %c2_43] : memref<8x4xf32, #tpu.memory_space<smem>>
    %90 = vector.broadcast %89 : f32 to vector<8x8xf32>
    %91 = arith.mulf %90, %80 : vector<8x8xf32>
    %92 = arith.addf %74, %91 : vector<8x8xf32>
    %c3_44 = arith.constant 3 : index
    %c3_45 = arith.constant 3 : index
    %93 = memref.load %arg8[%c3_44, %c3_45] : memref<8x4xf32, #tpu.memory_space<smem>>
    %94 = vector.broadcast %93 : f32 to vector<8x8xf32>
    %95 = arith.mulf %94, %80 : vector<8x8xf32>
    %96 = arith.addf %78, %95 : vector<8x8xf32>
    %c0_46 = arith.constant 0 : index
    %c4 = arith.constant 4 : index
    %c0_47 = arith.constant 0 : index
    %97 = vector.load %arg4[%c0_46, %c4, %c0_47] : memref<8x8x8xf32, #tpu.memory_space<vmem>>, vector<8x1x8xf32>
    %98 = vector.shape_cast %97 : vector<8x1x8xf32> to vector<8x8xf32>
    %c4_48 = arith.constant 4 : index
    %c0_49 = arith.constant 0 : index
    %99 = memref.load %arg8[%c4_48, %c0_49] : memref<8x4xf32, #tpu.memory_space<smem>>
    %100 = vector.broadcast %99 : f32 to vector<8x8xf32>
    %101 = arith.mulf %100, %98 : vector<8x8xf32>
    %102 = arith.addf %84, %101 : vector<8x8xf32>
    %c4_50 = arith.constant 4 : index
    %c1_51 = arith.constant 1 : index
    %103 = memref.load %arg8[%c4_50, %c1_51] : memref<8x4xf32, #tpu.memory_space<smem>>
    %104 = vector.broadcast %103 : f32 to vector<8x8xf32>
    %105 = arith.mulf %104, %98 : vector<8x8xf32>
    %106 = arith.addf %88, %105 : vector<8x8xf32>
    %c4_52 = arith.constant 4 : index
    %c2_53 = arith.constant 2 : index
    %107 = memref.load %arg8[%c4_52, %c2_53] : memref<8x4xf32, #tpu.memory_space<smem>>
    %108 = vector.broadcast %107 : f32 to vector<8x8xf32>
    %109 = arith.mulf %108, %98 : vector<8x8xf32>
    %110 = arith.addf %92, %109 : vector<8x8xf32>
    %c4_54 = arith.constant 4 : index
    %c3_55 = arith.constant 3 : index
    %111 = memref.load %arg8[%c4_54, %c3_55] : memref<8x4xf32, #tpu.memory_space<smem>>
    %112 = vector.broadcast %111 : f32 to vector<8x8xf32>
    %113 = arith.mulf %112, %98 : vector<8x8xf32>
    %114 = arith.addf %96, %113 : vector<8x8xf32>
    %c0_56 = arith.constant 0 : index
    %c5 = arith.constant 5 : index
    %c0_57 = arith.constant 0 : index
    %115 = vector.load %arg4[%c0_56, %c5, %c0_57] : memref<8x8x8xf32, #tpu.memory_space<vmem>>, vector<8x1x8xf32>
    %116 = vector.shape_cast %115 : vector<8x1x8xf32> to vector<8x8xf32>
    %c5_58 = arith.constant 5 : index
    %c0_59 = arith.constant 0 : index
    %117 = memref.load %arg8[%c5_58, %c0_59] : memref<8x4xf32, #tpu.memory_space<smem>>
    %118 = vector.broadcast %117 : f32 to vector<8x8xf32>
    %119 = arith.mulf %118, %116 : vector<8x8xf32>
    %120 = arith.addf %102, %119 : vector<8x8xf32>
    %c5_60 = arith.constant 5 : index
    %c1_61 = arith.constant 1 : index
    %121 = memref.load %arg8[%c5_60, %c1_61] : memref<8x4xf32, #tpu.memory_space<smem>>
    %122 = vector.broadcast %121 : f32 to vector<8x8xf32>
    %123 = arith.mulf %122, %116 : vector<8x8xf32>
    %124 = arith.addf %106, %123 : vector<8x8xf32>
    %c5_62 = arith.constant 5 : index
    %c2_63 = arith.constant 2 : index
    %125 = memref.load %arg8[%c5_62, %c2_63] : memref<8x4xf32, #tpu.memory_space<smem>>
    %126 = vector.broadcast %125 : f32 to vector<8x8xf32>
    %127 = arith.mulf %126, %116 : vector<8x8xf32>
    %128 = arith.addf %110, %127 : vector<8x8xf32>
    %c5_64 = arith.constant 5 : index
    %c3_65 = arith.constant 3 : index
    %129 = memref.load %arg8[%c5_64, %c3_65] : memref<8x4xf32, #tpu.memory_space<smem>>
    %130 = vector.broadcast %129 : f32 to vector<8x8xf32>
    %131 = arith.mulf %130, %116 : vector<8x8xf32>
    %132 = arith.addf %114, %131 : vector<8x8xf32>
    %c0_66 = arith.constant 0 : index
    %c6 = arith.constant 6 : index
    %c0_67 = arith.constant 0 : index
    %133 = vector.load %arg4[%c0_66, %c6, %c0_67] : memref<8x8x8xf32, #tpu.memory_space<vmem>>, vector<8x1x8xf32>
    %134 = vector.shape_cast %133 : vector<8x1x8xf32> to vector<8x8xf32>
    %c6_68 = arith.constant 6 : index
    %c0_69 = arith.constant 0 : index
    %135 = memref.load %arg8[%c6_68, %c0_69] : memref<8x4xf32, #tpu.memory_space<smem>>
    %136 = vector.broadcast %135 : f32 to vector<8x8xf32>
    %137 = arith.mulf %136, %134 : vector<8x8xf32>
    %138 = arith.addf %120, %137 : vector<8x8xf32>
    %c6_70 = arith.constant 6 : index
    %c1_71 = arith.constant 1 : index
    %139 = memref.load %arg8[%c6_70, %c1_71] : memref<8x4xf32, #tpu.memory_space<smem>>
    %140 = vector.broadcast %139 : f32 to vector<8x8xf32>
    %141 = arith.mulf %140, %134 : vector<8x8xf32>
    %142 = arith.addf %124, %141 : vector<8x8xf32>
    %c6_72 = arith.constant 6 : index
    %c2_73 = arith.constant 2 : index
    %143 = memref.load %arg8[%c6_72, %c2_73] : memref<8x4xf32, #tpu.memory_space<smem>>
    %144 = vector.broadcast %143 : f32 to vector<8x8xf32>
    %145 = arith.mulf %144, %134 : vector<8x8xf32>
    %146 = arith.addf %128, %145 : vector<8x8xf32>
    %c6_74 = arith.constant 6 : index
    %c3_75 = arith.constant 3 : index
    %147 = memref.load %arg8[%c6_74, %c3_75] : memref<8x4xf32, #tpu.memory_space<smem>>
    %148 = vector.broadcast %147 : f32 to vector<8x8xf32>
    %149 = arith.mulf %148, %134 : vector<8x8xf32>
    %150 = arith.addf %132, %149 : vector<8x8xf32>
    %c0_76 = arith.constant 0 : index
    %c7 = arith.constant 7 : index
    %c0_77 = arith.constant 0 : index
    %151 = vector.load %arg4[%c0_76, %c7, %c0_77] : memref<8x8x8xf32, #tpu.memory_space<vmem>>, vector<8x1x8xf32>
    %152 = vector.shape_cast %151 : vector<8x1x8xf32> to vector<8x8xf32>
    %c7_78 = arith.constant 7 : index
    %c0_79 = arith.constant 0 : index
    %153 = memref.load %arg8[%c7_78, %c0_79] : memref<8x4xf32, #tpu.memory_space<smem>>
    %154 = vector.broadcast %153 : f32 to vector<8x8xf32>
    %155 = arith.mulf %154, %152 : vector<8x8xf32>
    %156 = arith.addf %138, %155 : vector<8x8xf32>
    %c7_80 = arith.constant 7 : index
    %c1_81 = arith.constant 1 : index
    %157 = memref.load %arg8[%c7_80, %c1_81] : memref<8x4xf32, #tpu.memory_space<smem>>
    %158 = vector.broadcast %157 : f32 to vector<8x8xf32>
    %159 = arith.mulf %158, %152 : vector<8x8xf32>
    %160 = arith.addf %142, %159 : vector<8x8xf32>
    %c7_82 = arith.constant 7 : index
    %c2_83 = arith.constant 2 : index
    %161 = memref.load %arg8[%c7_82, %c2_83] : memref<8x4xf32, #tpu.memory_space<smem>>
    %162 = vector.broadcast %161 : f32 to vector<8x8xf32>
    %163 = arith.mulf %162, %152 : vector<8x8xf32>
    %164 = arith.addf %146, %163 : vector<8x8xf32>
    %c7_84 = arith.constant 7 : index
    %c3_85 = arith.constant 3 : index
    %165 = memref.load %arg8[%c7_84, %c3_85] : memref<8x4xf32, #tpu.memory_space<smem>>
    %166 = vector.broadcast %165 : f32 to vector<8x8xf32>
    %167 = arith.mulf %166, %152 : vector<8x8xf32>
    %168 = arith.addf %150, %167 : vector<8x8xf32>
    %cst_86 = arith.constant 0.000000e+00 : f32
    %169 = vector.broadcast %cst_86 : f32 to vector<8x8xf32>
    %170 = arith.cmpf ogt, %156, %169 : vector<8x8xf32>
    %cst_87 = arith.constant 2.000000e-01 : f32
    %171 = vector.broadcast %cst_87 : f32 to vector<8x8xf32>
    %172 = arith.mulf %171, %156 : vector<8x8xf32>
    %173 = arith.select %170, %156, %172 : vector<8x8xi1>, vector<8x8xf32>
    %cst_88 = arith.constant -1.000000e+30 : f32
    %174 = vector.broadcast %cst_88 : f32 to vector<8x8xf32>
    %175 = arith.select %2, %173, %174 : vector<8x8xi1>, vector<8x8xf32>
    %cst_89 = arith.constant dense<0xFF800000> : vector<8xf32>
    %176 = vector.multi_reduction <maximumf>, %175, %cst_89 [1] : vector<8x8xf32> to vector<8xf32>
    %177 = vector.shape_cast %176 : vector<8xf32> to vector<8x1xf32>
    %178 = vector.broadcast %177 : vector<8x1xf32> to vector<8x8xf32>
    %179 = arith.subf %175, %178 : vector<8x8xf32>
    %180 = math.exp %179 : vector<8x8xf32>
    %cst_90 = arith.constant 0.000000e+00 : f32
    %181 = vector.broadcast %cst_90 : f32 to vector<8x8xf32>
    %182 = arith.select %2, %180, %181 : vector<8x8xi1>, vector<8x8xf32>
    %cst_91 = arith.constant dense<0.000000e+00> : vector<8xf32>
    %183 = vector.multi_reduction <add>, %182, %cst_91 [1] : vector<8x8xf32> to vector<8xf32>
    %184 = vector.shape_cast %183 : vector<8xf32> to vector<8x1xf32>
    %cst_92 = arith.constant 1.000000e-30 : f32
    %185 = vector.broadcast %cst_92 : f32 to vector<8x1xf32>
    %186 = arith.maximumf %184, %185 : vector<8x1xf32>
    %187 = tpu.reciprocal %186 {approx = true} : vector<8x1xf32> -> vector<8x1xf32>
    %188 = arith.mulf %186, %187 : vector<8x1xf32>
    %cst_93 = arith.constant 2.000000e+00 : f32
    %189 = vector.broadcast %cst_93 : f32 to vector<8x1xf32>
    %190 = arith.subf %189, %188 : vector<8x1xf32>
    %191 = arith.mulf %187, %190 : vector<8x1xf32>
    %192 = vector.broadcast %191 : vector<8x1xf32> to vector<8x8xf32>
    %193 = arith.mulf %182, %192 : vector<8x8xf32>
    %cst_94 = arith.constant 0.000000e+00 : f32
    %194 = vector.broadcast %cst_94 : f32 to vector<8x8xf32>
    %195 = arith.cmpf ogt, %160, %194 : vector<8x8xf32>
    %cst_95 = arith.constant 2.000000e-01 : f32
    %196 = vector.broadcast %cst_95 : f32 to vector<8x8xf32>
    %197 = arith.mulf %196, %160 : vector<8x8xf32>
    %198 = arith.select %195, %160, %197 : vector<8x8xi1>, vector<8x8xf32>
    %cst_96 = arith.constant -1.000000e+30 : f32
    %199 = vector.broadcast %cst_96 : f32 to vector<8x8xf32>
    %200 = arith.select %2, %198, %199 : vector<8x8xi1>, vector<8x8xf32>
    %cst_97 = arith.constant dense<0xFF800000> : vector<8xf32>
    %201 = vector.multi_reduction <maximumf>, %200, %cst_97 [1] : vector<8x8xf32> to vector<8xf32>
    %202 = vector.shape_cast %201 : vector<8xf32> to vector<8x1xf32>
    %203 = vector.broadcast %202 : vector<8x1xf32> to vector<8x8xf32>
    %204 = arith.subf %200, %203 : vector<8x8xf32>
    %205 = math.exp %204 : vector<8x8xf32>
    %cst_98 = arith.constant 0.000000e+00 : f32
    %206 = vector.broadcast %cst_98 : f32 to vector<8x8xf32>
    %207 = arith.select %2, %205, %206 : vector<8x8xi1>, vector<8x8xf32>
    %cst_99 = arith.constant dense<0.000000e+00> : vector<8xf32>
    %208 = vector.multi_reduction <add>, %207, %cst_99 [1] : vector<8x8xf32> to vector<8xf32>
    %209 = vector.shape_cast %208 : vector<8xf32> to vector<8x1xf32>
    %cst_100 = arith.constant 1.000000e-30 : f32
    %210 = vector.broadcast %cst_100 : f32 to vector<8x1xf32>
    %211 = arith.maximumf %209, %210 : vector<8x1xf32>
    %212 = tpu.reciprocal %211 {approx = true} : vector<8x1xf32> -> vector<8x1xf32>
    %213 = arith.mulf %211, %212 : vector<8x1xf32>
    %cst_101 = arith.constant 2.000000e+00 : f32
    %214 = vector.broadcast %cst_101 : f32 to vector<8x1xf32>
    %215 = arith.subf %214, %213 : vector<8x1xf32>
    %216 = arith.mulf %212, %215 : vector<8x1xf32>
    %217 = vector.broadcast %216 : vector<8x1xf32> to vector<8x8xf32>
    %218 = arith.mulf %207, %217 : vector<8x8xf32>
    %cst_102 = arith.constant 0.000000e+00 : f32
    %219 = vector.broadcast %cst_102 : f32 to vector<8x8xf32>
    %220 = arith.cmpf ogt, %164, %219 : vector<8x8xf32>
    %cst_103 = arith.constant 2.000000e-01 : f32
    %221 = vector.broadcast %cst_103 : f32 to vector<8x8xf32>
    %222 = arith.mulf %221, %164 : vector<8x8xf32>
    %223 = arith.select %220, %164, %222 : vector<8x8xi1>, vector<8x8xf32>
    %cst_104 = arith.constant -1.000000e+30 : f32
    %224 = vector.broadcast %cst_104 : f32 to vector<8x8xf32>
    %225 = arith.select %2, %223, %224 : vector<8x8xi1>, vector<8x8xf32>
    %cst_105 = arith.constant dense<0xFF800000> : vector<8xf32>
    %226 = vector.multi_reduction <maximumf>, %225, %cst_105 [1] : vector<8x8xf32> to vector<8xf32>
    %227 = vector.shape_cast %226 : vector<8xf32> to vector<8x1xf32>
    %228 = vector.broadcast %227 : vector<8x1xf32> to vector<8x8xf32>
    %229 = arith.subf %225, %228 : vector<8x8xf32>
    %230 = math.exp %229 : vector<8x8xf32>
    %cst_106 = arith.constant 0.000000e+00 : f32
    %231 = vector.broadcast %cst_106 : f32 to vector<8x8xf32>
    %232 = arith.select %2, %230, %231 : vector<8x8xi1>, vector<8x8xf32>
    %cst_107 = arith.constant dense<0.000000e+00> : vector<8xf32>
    %233 = vector.multi_reduction <add>, %232, %cst_107 [1] : vector<8x8xf32> to vector<8xf32>
    %234 = vector.shape_cast %233 : vector<8xf32> to vector<8x1xf32>
    %cst_108 = arith.constant 1.000000e-30 : f32
    %235 = vector.broadcast %cst_108 : f32 to vector<8x1xf32>
    %236 = arith.maximumf %234, %235 : vector<8x1xf32>
    %237 = tpu.reciprocal %236 {approx = true} : vector<8x1xf32> -> vector<8x1xf32>
    %238 = arith.mulf %236, %237 : vector<8x1xf32>
    %cst_109 = arith.constant 2.000000e+00 : f32
    %239 = vector.broadcast %cst_109 : f32 to vector<8x1xf32>
    %240 = arith.subf %239, %238 : vector<8x1xf32>
    %241 = arith.mulf %237, %240 : vector<8x1xf32>
    %242 = vector.broadcast %241 : vector<8x1xf32> to vector<8x8xf32>
    %243 = arith.mulf %232, %242 : vector<8x8xf32>
    %cst_110 = arith.constant 0.000000e+00 : f32
    %244 = vector.broadcast %cst_110 : f32 to vector<8x8xf32>
    %245 = arith.cmpf ogt, %168, %244 : vector<8x8xf32>
    %cst_111 = arith.constant 2.000000e-01 : f32
    %246 = vector.broadcast %cst_111 : f32 to vector<8x8xf32>
    %247 = arith.mulf %246, %168 : vector<8x8xf32>
    %248 = arith.select %245, %168, %247 : vector<8x8xi1>, vector<8x8xf32>
    %cst_112 = arith.constant -1.000000e+30 : f32
    %249 = vector.broadcast %cst_112 : f32 to vector<8x8xf32>
    %250 = arith.select %2, %248, %249 : vector<8x8xi1>, vector<8x8xf32>
    %cst_113 = arith.constant dense<0xFF800000> : vector<8xf32>
    %251 = vector.multi_reduction <maximumf>, %250, %cst_113 [1] : vector<8x8xf32> to vector<8xf32>
    %252 = vector.shape_cast %251 : vector<8xf32> to vector<8x1xf32>
    %253 = vector.broadcast %252 : vector<8x1xf32> to vector<8x8xf32>
    %254 = arith.subf %250, %253 : vector<8x8xf32>
    %255 = math.exp %254 : vector<8x8xf32>
    %cst_114 = arith.constant 0.000000e+00 : f32
    %256 = vector.broadcast %cst_114 : f32 to vector<8x8xf32>
    %257 = arith.select %2, %255, %256 : vector<8x8xi1>, vector<8x8xf32>
    %cst_115 = arith.constant dense<0.000000e+00> : vector<8xf32>
    %258 = vector.multi_reduction <add>, %257, %cst_115 [1] : vector<8x8xf32> to vector<8xf32>
    %259 = vector.shape_cast %258 : vector<8xf32> to vector<8x1xf32>
    %cst_116 = arith.constant 1.000000e-30 : f32
    %260 = vector.broadcast %cst_116 : f32 to vector<8x1xf32>
    %261 = arith.maximumf %259, %260 : vector<8x1xf32>
    %262 = tpu.reciprocal %261 {approx = true} : vector<8x1xf32> -> vector<8x1xf32>
    %263 = arith.mulf %261, %262 : vector<8x1xf32>
    %cst_117 = arith.constant 2.000000e+00 : f32
    %264 = vector.broadcast %cst_117 : f32 to vector<8x1xf32>
    %265 = arith.subf %264, %263 : vector<8x1xf32>
    %266 = arith.mulf %262, %265 : vector<8x1xf32>
    %267 = vector.broadcast %266 : vector<8x1xf32> to vector<8x8xf32>
    %268 = arith.mulf %257, %267 : vector<8x8xf32>
    %c0_118 = arith.constant 0 : index
    %c0_119 = arith.constant 0 : index
    %c0_120 = arith.constant 0 : index
    %269 = vector.load %arg5[%c0_118, %c0_119, %c0_120] : memref<4x8x32xf32, #tpu.memory_space<vmem>>, vector<1x8x32xf32>
    %270 = vector.shape_cast %269 : vector<1x8x32xf32> to vector<8x32xf32>
    %cst_121 = arith.constant dense<0.000000e+00> : vector<8x32xf32>
    %271 = tpu.matmul %193, %270, %cst_121 {dimension_numbers = #tpu.dot_dimension_numbers<[1], [0], [0], [1], [0, 0, 1, 1], [], []>} : vector<8x8xf32>, vector<8x32xf32>, vector<8x32xf32> -> vector<8x32xf32>
    %c1_122 = arith.constant 1 : index
    %c0_123 = arith.constant 0 : index
    %c0_124 = arith.constant 0 : index
    %272 = vector.load %arg5[%c1_122, %c0_123, %c0_124] : memref<4x8x32xf32, #tpu.memory_space<vmem>>, vector<1x8x32xf32>
    %273 = vector.shape_cast %272 : vector<1x8x32xf32> to vector<8x32xf32>
    %cst_125 = arith.constant dense<0.000000e+00> : vector<8x32xf32>
    %274 = tpu.matmul %218, %273, %cst_125 {dimension_numbers = #tpu.dot_dimension_numbers<[1], [0], [0], [1], [0, 0, 1, 1], [], []>} : vector<8x8xf32>, vector<8x32xf32>, vector<8x32xf32> -> vector<8x32xf32>
    %c2_126 = arith.constant 2 : index
    %c0_127 = arith.constant 0 : index
    %c0_128 = arith.constant 0 : index
    %275 = vector.load %arg5[%c2_126, %c0_127, %c0_128] : memref<4x8x32xf32, #tpu.memory_space<vmem>>, vector<1x8x32xf32>
    %276 = vector.shape_cast %275 : vector<1x8x32xf32> to vector<8x32xf32>
    %cst_129 = arith.constant dense<0.000000e+00> : vector<8x32xf32>
    %277 = tpu.matmul %243, %276, %cst_129 {dimension_numbers = #tpu.dot_dimension_numbers<[1], [0], [0], [1], [0, 0, 1, 1], [], []>} : vector<8x8xf32>, vector<8x32xf32>, vector<8x32xf32> -> vector<8x32xf32>
    %c3_130 = arith.constant 3 : index
    %c0_131 = arith.constant 0 : index
    %c0_132 = arith.constant 0 : index
    %278 = vector.load %arg5[%c3_130, %c0_131, %c0_132] : memref<4x8x32xf32, #tpu.memory_space<vmem>>, vector<1x8x32xf32>
    %279 = vector.shape_cast %278 : vector<1x8x32xf32> to vector<8x32xf32>
    %cst_133 = arith.constant dense<0.000000e+00> : vector<8x32xf32>
    %280 = tpu.matmul %268, %279, %cst_133 {dimension_numbers = #tpu.dot_dimension_numbers<[1], [0], [0], [1], [0, 0, 1, 1], [], []>} : vector<8x8xf32>, vector<8x32xf32>, vector<8x32xf32> -> vector<8x32xf32>
    %281 = tpu.concatenate %271, %274, %277, %280 in 1 : vector<8x32xf32>, vector<8x32xf32>, vector<8x32xf32>, vector<8x32xf32> -> vector<8x128xf32>
    %282 = vector.shape_cast %193 : vector<8x8xf32> to vector<8x1x8xf32>
    %283 = vector.shape_cast %218 : vector<8x8xf32> to vector<8x1x8xf32>
    %284 = vector.shape_cast %243 : vector<8x8xf32> to vector<8x1x8xf32>
    %285 = vector.shape_cast %268 : vector<8x8xf32> to vector<8x1x8xf32>
    %286 = tpu.concatenate %282, %283, %284, %285 in 1 : vector<8x1x8xf32>, vector<8x1x8xf32>, vector<8x1x8xf32>, vector<8x1x8xf32> -> vector<8x4x8xf32>
    %c0_134 = arith.constant 0 : index
    %c0_135 = arith.constant 0 : index
    %c0_136 = arith.constant 0 : index
    %287 = vector.load %arg4[%c0_134, %c0_135, %c0_136] : memref<8x8x8xf32, #tpu.memory_space<vmem>>, vector<8x8x8xf32>
    "tpu.trace_start"() <{level = 10 : i32, message = "thn,ten->the"}> : () -> ()
    %cst_137 = arith.constant dense<0.000000e+00> : vector<8x4x8xf32>
    %288 = tpu.matmul %286, %287, %cst_137 {dimension_numbers = #tpu.dot_dimension_numbers<[2], [2], [1], [1], [0, 0, 0, 1, 1, 1], [0], [0]>} : vector<8x4x8xf32>, vector<8x8x8xf32>, vector<8x4x8xf32> -> vector<8x4x8xf32>
    "tpu.trace_stop"() : () -> ()
    %289 = vector.extract_strided_slice %288 {offsets = [0, 0, 0], sizes = [8, 1, 8], strides = [1, 1, 1]} : vector<8x4x8xf32> to vector<8x1x8xf32>
    %290 = vector.shape_cast %289 : vector<8x1x8xf32> to vector<8x8xf32>
    %291 = vector.extract_strided_slice %288 {offsets = [0, 1, 0], sizes = [8, 1, 8], strides = [1, 1, 1]} : vector<8x4x8xf32> to vector<8x1x8xf32>
    %292 = vector.shape_cast %291 : vector<8x1x8xf32> to vector<8x8xf32>
    %293 = vector.extract_strided_slice %288 {offsets = [0, 2, 0], sizes = [8, 1, 8], strides = [1, 1, 1]} : vector<8x4x8xf32> to vector<8x1x8xf32>
    %294 = vector.shape_cast %293 : vector<8x1x8xf32> to vector<8x8xf32>
    %295 = vector.extract_strided_slice %288 {offsets = [0, 3, 0], sizes = [8, 1, 8], strides = [1, 1, 1]} : vector<8x4x8xf32> to vector<8x1x8xf32>
    %296 = vector.shape_cast %295 : vector<8x1x8xf32> to vector<8x8xf32>
    %297 = tpu.concatenate %290, %292, %294, %296 in 1 : vector<8x8xf32>, vector<8x8xf32>, vector<8x8xf32>, vector<8x8xf32> -> vector<8x32xf32>
    %c0_138 = arith.constant 0 : index
    %c0_139 = arith.constant 0 : index
    %298 = vector.load %arg6[%c0_138, %c0_139] : memref<32x128xf32, #tpu.memory_space<vmem>>, vector<32x128xf32>
    %cst_140 = arith.constant dense<0.000000e+00> : vector<8x128xf32>
    %299 = tpu.matmul %297, %298, %cst_140 {dimension_numbers = #tpu.dot_dimension_numbers<[1], [0], [0], [1], [0, 0, 1, 1], [], []>} : vector<8x32xf32>, vector<32x128xf32>, vector<8x128xf32> -> vector<8x128xf32>
    %cst_141 = arith.constant dense<0.000000e+00> : vector<8xf32>
    %300 = vector.multi_reduction <add>, %0, %cst_141 [1] : vector<8x8xf32> to vector<8xf32>
    %301 = vector.shape_cast %300 : vector<8xf32> to vector<8x1xf32>
    %cst_142 = arith.constant 0.000000e+00 : f32
    %302 = vector.broadcast %cst_142 : f32 to vector<8x1xf32>
    %303 = arith.cmpf ogt, %301, %302 : vector<8x1xf32>
    %304 = arith.extui %303 : vector<8x1xi1> to vector<8x1xi32>
    %305 = arith.sitofp %304 : vector<8x1xi32> to vector<8x1xf32>
    %c0_143 = arith.constant 0 : index
    %c0_144 = arith.constant 0 : index
    %306 = vector.load %arg7[%c0_143, %c0_144] : memref<1x128xf32, #tpu.memory_space<vmem>>, vector<1x128xf32>
    %307 = vector.broadcast %305 : vector<8x1xf32> to vector<8x128xf32>
    %308 = vector.broadcast %306 : vector<1x128xf32> to vector<8x128xf32>
    %309 = arith.mulf %307, %308 : vector<8x128xf32>
    %310 = arith.addf %299, %309 : vector<8x128xf32>
    %311 = arith.addf %281, %310 : vector<8x128xf32>
    %c0_145 = arith.constant 0 : index
    %c0_146 = arith.constant 0 : index
    %312 = vector.load %arg9[%c0_145, %c0_146] : memref<8x128xf32, #tpu.memory_space<vmem>>, vector<8x128xf32>
    tpu.vector_store %arg9[%c0_145, %c0_146], %311 {strides = array<i32>} : memref<8x128xf32, #tpu.memory_space<vmem>>, vector<8x128xf32>,
    return
  }
  func.func @transform_0(%arg0: i32) -> (i32, i32) {
    %c0_i32 = arith.constant 0 : i32
    %c0_i32_0 = arith.constant 0 : i32
    %c0_i32_1 = arith.constant 0 : i32
    return %c0_i32, %c0_i32_0 : i32, i32
  }
  func.func @transform_1(%arg0: i32) -> (i32, i32) {
    %c0_i32 = arith.constant 0 : i32
    %c0_i32_0 = arith.constant 0 : i32
    return %arg0, %c0_i32 : i32, i32
  }
  func.func @transform_2(%arg0: i32) -> (i32, i32) {
    %c0_i32 = arith.constant 0 : i32
    %c0_i32_0 = arith.constant 0 : i32
    return %arg0, %c0_i32 : i32, i32
  }
  func.func @transform_3(%arg0: i32) -> (i32, i32, i32) {
    %c0_i32 = arith.constant 0 : i32
    %c0_i32_0 = arith.constant 0 : i32
    %c0_i32_1 = arith.constant 0 : i32
    return %arg0, %c0_i32, %c0_i32_0 : i32, i32, i32
  }
  func.func @transform_4(%arg0: i32) -> (i32, i32, i32) {
    %c0_i32 = arith.constant 0 : i32
    %c0_i32_0 = arith.constant 0 : i32
    %c0_i32_1 = arith.constant 0 : i32
    %c0_i32_2 = arith.constant 0 : i32
    return %c0_i32, %c0_i32_0, %c0_i32_1 : i32, i32, i32
  }
  func.func @transform_5(%arg0: i32) -> (i32, i32) {
    %c0_i32 = arith.constant 0 : i32
    %c0_i32_0 = arith.constant 0 : i32
    %c0_i32_1 = arith.constant 0 : i32
    return %c0_i32, %c0_i32_0 : i32, i32
  }
  func.func @transform_6(%arg0: i32) -> (i32, i32) {
    %c0_i32 = arith.constant 0 : i32
    %c0_i32_0 = arith.constant 0 : i32
    %c0_i32_1 = arith.constant 0 : i32
    return %c0_i32, %c0_i32_0 : i32, i32
  }
  func.func @transform_7(%arg0: i32) -> (i32, i32) {
    %c0_i32 = arith.constant 0 : i32
    %c0_i32_0 = arith.constant 0 : i32
    %c0_i32_1 = arith.constant 0 : i32
    return %c0_i32, %c0_i32_0 : i32, i32
  }
  func.func @transform_8(%arg0: i32) -> (i32, i32) {
    %c0_i32 = arith.constant 0 : i32
    %c0_i32_0 = arith.constant 0 : i32
    return %arg0, %c0_i32 : i32, i32
  }
}

</mosaic_0001>

<llo_original>
// kernel: tpu_custom_call.1
$region0: #{tpu_custom_call.1}
  #allocation0 [shape = 'u32[]', space=smem, size = 0x4, offset = 0x4, fixed_abs, tag = 'smem constant byte address 0x4 - core index']
  #allocation1 [shape = 'u32[144,128]{1,0:T(1,128)}', space=vmem, size = 0x12000, scoped, tag = 'internal scratch']
  %s0 = inlined_call_operand.hbm [shape: f32[4,8], index: 0, kind: input, shape index: {}]
  %s1 = inlined_call_operand.vmem [shape: f32[8,4], index: 1, kind: input, shape index: {}]
  %s2 = inlined_call_operand.hbm [shape: f32[8,8], index: 2, kind: input, shape index: {}]
  %s3 = inlined_call_operand.hbm [shape: f32[8,8,8], index: 3, kind: input, shape index: {}]
  %s4 = inlined_call_operand.hbm [shape: f32[4,8,32], index: 4, kind: input, shape index: {}]
  %s5 = inlined_call_operand.vmem [shape: f32[32,128], index: 5, kind: input, shape index: {}]
  %s6 = inlined_call_operand.hbm [shape: f32[1,128], index: 6, kind: input, shape index: {}]
  %s7 = inlined_call_operand.vmem [shape: f32[8,4], index: 7, kind: input, shape index: {}]
  %s8 = inlined_call_operand.hbm [shape: f32[8,128], index: 8, kind: output, shape index: {}]
  %s9 = sld [smem:[#allocation0]]
  $region66: #{tpu_custom_call.1} parent=0
    _
  %s11 = ssub.s32 1, %s9
  %s12 = scalar_select 0, %s11, %s9
  $region1: #{tpu_custom_call.1} parent=0
    #allocation2 [shape = 'u8[2048]{0}', space=vmem, size = 0x800, scoped, tag = 'input window, operand 0, single buffered']
    #allocation3 [shape = 's32[1]{0}', space=sflag, size = 0x4, scoped, tag = 'scoped memory for tpu_custom_call.1']
    #allocation4 [shape = 's32[1]{0}', space=sflag, size = 0x4, scoped, tag = 'scoped memory for tpu_custom_call.1']
    #allocation5 [shape = 's32[1]{0}', space=sflag, size = 0x4, scoped, tag = 'scoped memory for tpu_custom_call.1']
    #allocation6 [shape = 'u8[4096]{0}', space=vmem, size = 0x1000, scoped, tag = 'input window, operand 2, single buffered']
    #allocation7 [shape = 's32[1]{0}', space=sflag, size = 0x4, scoped, tag = 'scoped memory for tpu_custom_call.1']
    #allocation8 [shape = 'u8[32768]{0}', space=vmem, size = 0x8000, scoped, tag = 'input window, operand 3, single buffered']
    #allocation9 [shape = 'u8[16384]{0}', space=vmem, size = 0x4000, scoped, tag = 'input window, operand 4, single buffered']
    #allocation10 [shape = 's32[1]{0}', space=sflag, size = 0x4, scoped, tag = 'scoped memory for tpu_custom_call.1']
    #allocation11 [shape = 'u8[512]{0}', space=vmem, size = 0x400, scoped, tag = 'input window, operand 6, single buffered']
    #allocation12 [shape = 'u8[4096]{0}', space=smem, size = 0x1000, scoped, tag = 'input window, operand 7, single buffered']
    #allocation13 [shape = 'u8[4096]{0}', space=vmem, size = 0x1000, scoped, tag = 'output window, operand 0, single buffered']
    %13 = vsyncpa [#allocation3], 0
    %14 = vsyncpa [#allocation7], 0
    %15 = vsyncpa [#allocation10], 0
    %16 = vsyncpa [#allocation5], 0
    %17 = vsyncpa [#allocation4], 0
    // Predicated region
    $region2: #{tpu_custom_call.1} parent=1 // pred_check
      _
    $region3: #{tpu_custom_call.1} parent=1 // pred_check_branch
      %19 = sbr.rel (0) target = $region5
    $region4: #{tpu_custom_call.1} parent=1 // pred_region
      %s21 = ssub.s32 64, 64
      %22 = vsyncadd [#allocation3], %s21
      %s24 = sshll.u32 [#allocation2], 4
      %s25 = int_to_ptr.vmem [resolvable:$true] %s24
      %27 = dma.hbm_to_vmem [thread:$0]  %s0, 64, %s25, [#allocation3]
    $region5: #{tpu_custom_call.1} parent=1 // pred_fallthru
      _
    // Predicated region
    $region6: #{tpu_custom_call.1} parent=1 // pred_check
      _
    $region7: #{tpu_custom_call.1} parent=1 // pred_check_branch
      %29 = sbr.rel (0) target = $region9
    $region8: #{tpu_custom_call.1} parent=1 // pred_region
      _
    $region9: #{tpu_custom_call.1} parent=1 // pred_fallthru
      _
    // Predicated region
    $region10: #{tpu_custom_call.1} parent=1 // pred_check
      _
    $region11: #{tpu_custom_call.1} parent=1 // pred_check_branch
      %31 = sbr.rel (0) target = $region13
    $region12: #{tpu_custom_call.1} parent=1 // pred_region
      %s33 = ssub.s32 128, 128
      %34 = vsyncadd [#allocation7], %s33
      %s36 = sshll.u32 [#allocation6], 4
      %s37 = int_to_ptr.vmem [resolvable:$true] %s36
      %39 = dma.hbm_to_vmem [thread:$0]  %s2, 128, %s37, [#allocation7]
    $region13: #{tpu_custom_call.1} parent=1 // pred_fallthru
      _
    // Predicated region
    $region14: #{tpu_custom_call.1} parent=1 // pred_check
      _
    $region15: #{tpu_custom_call.1} parent=1 // pred_check_branch
      %41 = sbr.rel (0) target = $region17
    $region16: #{tpu_custom_call.1} parent=1 // pred_region
      %s43 = ssub.s32 1024, 1024
      %44 = vsyncadd [#allocation7], %s43
      %s45 = sshll.u32 [#allocation8], 4
      %s46 = int_to_ptr.vmem [resolvable:$true] %s45
      %51 = dma.hbm_to_vmem [thread:$0]  %s3, 1024, %s46, [#allocation7], 128, 128, 8
    $region17: #{tpu_custom_call.1} parent=1 // pred_fallthru
      _
    // Predicated region
    $region18: #{tpu_custom_call.1} parent=1 // pred_check
      _
    $region19: #{tpu_custom_call.1} parent=1 // pred_check_branch
      %53 = sbr.rel (0) target = $region21
    $region20: #{tpu_custom_call.1} parent=1 // pred_region
      %s55 = ssub.s32 512, 512
      %56 = vsyncadd [#allocation10], %s55
      %s57 = sshll.u32 [#allocation9], 4
      %s58 = int_to_ptr.vmem [resolvable:$true] %s57
      %63 = dma.hbm_to_vmem [thread:$0]  %s4, 512, %s58, [#allocation10], 128, 128, 8
    $region21: #{tpu_custom_call.1} parent=1 // pred_fallthru
      _
    // Predicated region
    $region22: #{tpu_custom_call.1} parent=1 // pred_check
      _
    $region23: #{tpu_custom_call.1} parent=1 // pred_check_branch
      %65 = sbr.rel (0) target = $region25
    $region24: #{tpu_custom_call.1} parent=1 // pred_region
      _
    $region25: #{tpu_custom_call.1} parent=1 // pred_fallthru
      _
    // Predicated region
    $region26: #{tpu_custom_call.1} parent=1 // pred_check
      _
    $region27: #{tpu_custom_call.1} parent=1 // pred_check_branch
      %67 = sbr.rel (0) target = $region29
    $region28: #{tpu_custom_call.1} parent=1 // pred_region
      %s69 = ssub.s32 16, 16
      %70 = vsyncadd [#allocation10], %s69
      %s72 = sshll.u32 [#allocation11], 4
      %s73 = int_to_ptr.vmem [resolvable:$true] %s72
      %75 = dma.hbm_to_vmem [thread:$0]  %s6, 16, %s73, [#allocation10]
    $region29: #{tpu_custom_call.1} parent=1 // pred_fallthru
      _
    // Predicated region
    $region30: #{tpu_custom_call.1} parent=1 // pred_check
      _
    $region31: #{tpu_custom_call.1} parent=1 // pred_check_branch
      %77 = sbr.rel (0) target = $region33
    $region32: #{tpu_custom_call.1} parent=1 // pred_region
      %s79 = ssub.s32 128, 128
      %80 = vsyncadd [#allocation5], %s79
      %s82 = sshll.u32 %s7, 4
      %s83 = int_to_ptr.vmem [resolvable:$true] %s82
      %85 = dma.vmem_to_smem %s83, 128, [#allocation12], [#allocation5]
    $region33: #{tpu_custom_call.1} parent=1 // pred_fallthru
      _
    // Predicated region
    $region34: #{tpu_custom_call.1} parent=1 // pred_check
      _
    $region35: #{tpu_custom_call.1} parent=1 // pred_check_branch
      %87 = sbr.rel (0) target = $region37
    $region36: #{tpu_custom_call.1} parent=1 // pred_region
      %88 = dma.done [#allocation3], 64
    $region37: #{tpu_custom_call.1} parent=1 // pred_fallthru
      _
    // Predicated region
    $region38: #{tpu_custom_call.1} parent=1 // pred_check
      _
    $region39: #{tpu_custom_call.1} parent=1 // pred_check_branch
      %90 = sbr.rel (0) target = $region41
    $region40: #{tpu_custom_call.1} parent=1 // pred_region
      %91 = dma.done [#allocation7], 128
    $region41: #{tpu_custom_call.1} parent=1 // pred_fallthru
      _
    // Predicated region
    $region42: #{tpu_custom_call.1} parent=1 // pred_check
      _
    $region43: #{tpu_custom_call.1} parent=1 // pred_check_branch
      %93 = sbr.rel (0) target = $region45
    $region44: #{tpu_custom_call.1} parent=1 // pred_region
      %94 = dma.done [#allocation7], 1024
    $region45: #{tpu_custom_call.1} parent=1 // pred_fallthru
      _
    // Predicated region
    $region46: #{tpu_custom_call.1} parent=1 // pred_check
      _
    $region47: #{tpu_custom_call.1} parent=1 // pred_check_branch
      %96 = sbr.rel (0) target = $region49
    $region48: #{tpu_custom_call.1} parent=1 // pred_region
      %97 = dma.done [#allocation10], 512
    $region49: #{tpu_custom_call.1} parent=1 // pred_fallthru
      _
    // Predicated region
    $region50: #{tpu_custom_call.1} parent=1 // pred_check
      _
    $region51: #{tpu_custom_call.1} parent=1 // pred_check_branch
      %99 = sbr.rel (0) target = $region53
    $region52: #{tpu_custom_call.1} parent=1 // pred_region
      %100 = dma.done [#allocation10], 16
    $region53: #{tpu_custom_call.1} parent=1 // pred_fallthru
      _
    // Predicated region
    $region54: #{tpu_custom_call.1} parent=1 // pred_check
      _
    $region55: #{tpu_custom_call.1} parent=1 // pred_check_branch
      %102 = sbr.rel (0) target = $region57
    $region56: #{tpu_custom_call.1} parent=1 // pred_region
      %103 = dma.done [#allocation5], 128
    $region57: #{tpu_custom_call.1} parent=1 // pred_fallthru
      _
    %104 = sfence
    %v105 = vld [vmem:[#allocation6] sm:$0xff]
    %vm106 = vcmp.gt.f32.partialorder %v105, 0.0
    %v107 = vld [vmem:[%s1] sm:$0xff]
    %v108 = vld [vmem:[#allocation2] sm:$0xf]
    %110 = vset.pattern.permute.xlu0 0
    %111 = vperm.xlu0 %110, %v107
    %v112 = vpop.permute.xlu0 %111
    %v114 = vlaneseq
    %v115 = vshrl.u32 %v114, 7
    %v116 = vsub.s32 0, %v115
    %v117 = vrot.slane %v108, %v116
    %v118 = vadd.f32 %v112, %v117
    %119 = vset.pattern.permute.xlu0 1
    %120 = vperm.xlu0 %119, %v107
    %v121 = vpop.permute.xlu0 %120
    %v123 = vlaneseq
    %v124 = vshrl.u32 %v123, 7
    %v125 = vsub.s32 1, %v124
    %v126 = vrot.slane %v108, %v125
    %v127 = vadd.f32 %v121, %v126
    %128 = vset.pattern.permute.xlu0 2
    %129 = vperm.xlu0 %128, %v107
    %v130 = vpop.permute.xlu0 %129
    %v132 = vlaneseq
    %v133 = vshrl.u32 %v132, 7
    %v134 = vsub.s32 2, %v133
    %v135 = vrot.slane %v108, %v134
    %v136 = vadd.f32 %v130, %v135
    %137 = vset.pattern.permute.xlu0 3
    %138 = vperm.xlu0 %137, %v107
    %v139 = vpop.permute.xlu0 %138
    %v141 = vlaneseq
    %v142 = vshrl.u32 %v141, 7
    %v143 = vsub.s32 3, %v142
    %v144 = vrot.slane %v108, %v143
    %v145 = vadd.f32 %v139, %v144
    %v146 = vld [vmem:[#allocation8] sm:$0x1]
    %v147 = vld [vmem:[#allocation8 + $0x8] sm:$0x1]
    %v148 = vld [vmem:[#allocation8 + $0x10] sm:$0x1]
    %v149 = vld [vmem:[#allocation8 + $0x18] sm:$0x1]
    %v150 = vld [vmem:[#allocation8 + $0x20] sm:$0x1]
    %v151 = vld [vmem:[#allocation8 + $0x28] sm:$0x1]
    %v152 = vld [vmem:[#allocation8 + $0x30] sm:$0x1]
    %v153 = vld [vmem:[#allocation8 + $0x38] sm:$0x1]
    %s154 = sld [smem:[#allocation12]]
    %v155 = vstv %s154
    %v156 = vmul.f32 %v155, %v146
    %v157 = vmul.f32 %v155, %v147
    %v158 = vmul.f32 %v155, %v148
    %v159 = vmul.f32 %v155, %v149
    %v160 = vmul.f32 %v155, %v150
    %v161 = vmul.f32 %v155, %v151
    %v162 = vmul.f32 %v155, %v152
    %v163 = vmul.f32 %v155, %v153
    %v172 = vrot.slane %v157, 7
    %vm173 = vcmask 1041409
    %v174 = vsel %vm173, %v172, %v156
    %v175 = vrot.slane %v158, 6
    %vm176 = vcmask 1042434
    %v177 = vsel %vm176, %v175, %v174
    %v178 = vrot.slane %v159, 5
    %vm179 = vcmask 1043459
    %v180 = vsel %vm179, %v178, %v177
    %v181 = vrot.slane %v160, 4
    %vm182 = vcmask 1044484
    %v183 = vsel %vm182, %v181, %v180
    %v184 = vrot.slane %v161, 3
    %vm185 = vcmask 1045509
    %v186 = vsel %vm185, %v184, %v183
    %v187 = vrot.slane %v162, 2
    %vm188 = vcmask 1046534
    %v189 = vsel %vm188, %v187, %v186
    %v190 = vrot.slane %v163, 1
    %vm191 = vcmask 1047559
    %v192 = vsel %vm191, %v190, %v189
    %v194 = vadd.f32 %v118, %v192
    %s195 = sld [smem:[#allocation12 + $0x1]]
    %v196 = vstv %s195
    %v197 = vmul.f32 %v196, %v146
    %v198 = vmul.f32 %v196, %v147
    %v199 = vmul.f32 %v196, %v148
    %v200 = vmul.f32 %v196, %v149
    %v201 = vmul.f32 %v196, %v150
    %v202 = vmul.f32 %v196, %v151
    %v203 = vmul.f32 %v196, %v152
    %v204 = vmul.f32 %v196, %v153
    %v213 = vrot.slane %v198, 7
    %v214 = vsel %vm173, %v213, %v197
    %v215 = vrot.slane %v199, 6
    %v216 = vsel %vm176, %v215, %v214
    %v217 = vrot.slane %v200, 5
    %v218 = vsel %vm179, %v217, %v216
    %v219 = vrot.slane %v201, 4
    %v220 = vsel %vm182, %v219, %v218
    %v221 = vrot.slane %v202, 3
    %v222 = vsel %vm185, %v221, %v220
    %v223 = vrot.slane %v203, 2
    %v224 = vsel %vm188, %v223, %v222
    %v225 = vrot.slane %v204, 1
    %v226 = vsel %vm191, %v225, %v224
    %v228 = vadd.f32 %v127, %v226
    %s229 = sld [smem:[#allocation12 + $0x2]]
    %v230 = vstv %s229
    %v231 = vmul.f32 %v230, %v146
    %v232 = vmul.f32 %v230, %v147
    %v233 = vmul.f32 %v230, %v148
    %v234 = vmul.f32 %v230, %v149
    %v235 = vmul.f32 %v230, %v150
    %v236 = vmul.f32 %v230, %v151
    %v237 = vmul.f32 %v230, %v152
    %v238 = vmul.f32 %v230, %v153
    %v247 = vrot.slane %v232, 7
    %v248 = vsel %vm173, %v247, %v231
    %v249 = vrot.slane %v233, 6
    %v250 = vsel %vm176, %v249, %v248
    %v251 = vrot.slane %v234, 5
    %v252 = vsel %vm179, %v251, %v250
    %v253 = vrot.slane %v235, 4
    %v254 = vsel %vm182, %v253, %v252
    %v255 = vrot.slane %v236, 3
    %v256 = vsel %vm185, %v255, %v254
    %v257 = vrot.slane %v237, 2
    %v258 = vsel %vm188, %v257, %v256
    %v259 = vrot.slane %v238, 1
    %v260 = vsel %vm191, %v259, %v258
    %v262 = vadd.f32 %v136, %v260
    %s263 = sld [smem:[#allocation12 + $0x3]]
    %v264 = vstv %s263
    %v265 = vmul.f32 %v264, %v146
    %v266 = vmul.f32 %v264, %v147
    %v267 = vmul.f32 %v264, %v148
    %v268 = vmul.f32 %v264, %v149
    %v269 = vmul.f32 %v264, %v150
    %v270 = vmul.f32 %v264, %v151
    %v271 = vmul.f32 %v264, %v152
    %v272 = vmul.f32 %v264, %v153
    %v281 = vrot.slane %v266, 7
    %v282 = vsel %vm173, %v281, %v265
    %v283 = vrot.slane %v267, 6
    %v284 = vsel %vm176, %v283, %v282
    %v285 = vrot.slane %v268, 5
    %v286 = vsel %vm179, %v285, %v284
    %v287 = vrot.slane %v269, 4
    %v288 = vsel %vm182, %v287, %v286
    %v289 = vrot.slane %v270, 3
    %v290 = vsel %vm185, %v289, %v288
    %v291 = vrot.slane %v271, 2
    %v292 = vsel %vm188, %v291, %v290
    %v293 = vrot.slane %v272, 1
    %v294 = vsel %vm191, %v293, %v292
    %v296 = vadd.f32 %v145, %v294
    %v297 = vld [vmem:[#allocation8 + $0x1] sm:$0x1]
    %v298 = vld [vmem:[#allocation8 + $0x9] sm:$0x1]
    %v299 = vld [vmem:[#allocation8 + $0x11] sm:$0x1]
    %v300 = vld [vmem:[#allocation8 + $0x19] sm:$0x1]
    %v301 = vld [vmem:[#allocation8 + $0x21] sm:$0x1]
    %v302 = vld [vmem:[#allocation8 + $0x29] sm:$0x1]
    %v303 = vld [vmem:[#allocation8 + $0x31] sm:$0x1]
    %v304 = vld [vmem:[#allocation8 + $0x39] sm:$0x1]
    %s305 = sld [smem:[#allocation12 + $0x80]]
    %v306 = vstv %s305
    %v307 = vmul.f32 %v306, %v297
    %v308 = vmul.f32 %v306, %v298
    %v309 = vmul.f32 %v306, %v299
    %v310 = vmul.f32 %v306, %v300
    %v311 = vmul.f32 %v306, %v301
    %v312 = vmul.f32 %v306, %v302
    %v313 = vmul.f32 %v306, %v303
    %v314 = vmul.f32 %v306, %v304
    %v323 = vrot.slane %v308, 7
    %v324 = vsel %vm173, %v323, %v307
    %v325 = vrot.slane %v309, 6
    %v326 = vsel %vm176, %v325, %v324
    %v327 = vrot.slane %v310, 5
    %v328 = vsel %vm179, %v327, %v326
    %v329 = vrot.slane %v311, 4
    %v330 = vsel %vm182, %v329, %v328
    %v331 = vrot.slane %v312, 3
    %v332 = vsel %vm185, %v331, %v330
    %v333 = vrot.slane %v313, 2
    %v334 = vsel %vm188, %v333, %v332
    %v335 = vrot.slane %v314, 1
    %v336 = vsel %vm191, %v335, %v334
    %v338 = vadd.f32 %v194, %v336
    %s339 = sld [smem:[#allocation12 + $0x81]]
    %v340 = vstv %s339
    %v341 = vmul.f32 %v340, %v297
    %v342 = vmul.f32 %v340, %v298
    %v343 = vmul.f32 %v340, %v299
    %v344 = vmul.f32 %v340, %v300
    %v345 = vmul.f32 %v340, %v301
    %v346 = vmul.f32 %v340, %v302
    %v347 = vmul.f32 %v340, %v303
    %v348 = vmul.f32 %v340, %v304
    %v357 = vrot.slane %v342, 7
    %v358 = vsel %vm173, %v357, %v341
    %v359 = vrot.slane %v343, 6
    %v360 = vsel %vm176, %v359, %v358
    %v361 = vrot.slane %v344, 5
    %v362 = vsel %vm179, %v361, %v360
    %v363 = vrot.slane %v345, 4
    %v364 = vsel %vm182, %v363, %v362
    %v365 = vrot.slane %v346, 3
    %v366 = vsel %vm185, %v365, %v364
    %v367 = vrot.slane %v347, 2
    %v368 = vsel %vm188, %v367, %v366
    %v369 = vrot.slane %v348, 1
    %v370 = vsel %vm191, %v369, %v368
    %v372 = vadd.f32 %v228, %v370
    %s373 = sld [smem:[#allocation12 + $0x82]]
    %v374 = vstv %s373
    %v375 = vmul.f32 %v374, %v297
    %v376 = vmul.f32 %v374, %v298
    %v377 = vmul.f32 %v374, %v299
    %v378 = vmul.f32 %v374, %v300
    %v379 = vmul.f32 %v374, %v301
    %v380 = vmul.f32 %v374, %v302
    %v381 = vmul.f32 %v374, %v303
    %v382 = vmul.f32 %v374, %v304
    %v391 = vrot.slane %v376, 7
    %v392 = vsel %vm173, %v391, %v375
    %v393 = vrot.slane %v377, 6
    %v394 = vsel %vm176, %v393, %v392
    %v395 = vrot.slane %v378, 5
    %v396 = vsel %vm179, %v395, %v394
    %v397 = vrot.slane %v379, 4
    %v398 = vsel %vm182, %v397, %v396
    %v399 = vrot.slane %v380, 3
    %v400 = vsel %vm185, %v399, %v398
    %v401 = vrot.slane %v381, 2
    %v402 = vsel %vm188, %v401, %v400
    %v403 = vrot.slane %v382, 1
    %v404 = vsel %vm191, %v403, %v402
    %v406 = vadd.f32 %v262, %v404
    %s407 = sld [smem:[#allocation12 + $0x83]]
    %v408 = vstv %s407
    %v409 = vmul.f32 %v408, %v297
    %v410 = vmul.f32 %v408, %v298
    %v411 = vmul.f32 %v408, %v299
    %v412 = vmul.f32 %v408, %v300
    %v413 = vmul.f32 %v408, %v301
    %v414 = vmul.f32 %v408, %v302
    %v415 = vmul.f32 %v408, %v303
    %v416 = vmul.f32 %v408, %v304
    %v425 = vrot.slane %v410, 7
    %v426 = vsel %vm173, %v425, %v409
    %v427 = vrot.slane %v411, 6
    %v428 = vsel %vm176, %v427, %v426
    %v429 = vrot.slane %v412, 5
    %v430 = vsel %vm179, %v429, %v428
    %v431 = vrot.slane %v413, 4
    %v432 = vsel %vm182, %v431, %v430
    %v433 = vrot.slane %v414, 3
    %v434 = vsel %vm185, %v433, %v432
    %v435 = vrot.slane %v415, 2
    %v436 = vsel %vm188, %v435, %v434
    %v437 = vrot.slane %v416, 1
    %v438 = vsel %vm191, %v437, %v436
    %v440 = vadd.f32 %v296, %v438
    %v441 = vld [vmem:[#allocation8 + $0x2] sm:$0x1]
    %v442 = vld [vmem:[#allocation8 + $0xa] sm:$0x1]
    %v443 = vld [vmem:[#allocation8 + $0x12] sm:$0x1]
    %v444 = vld [vmem:[#allocation8 + $0x1a] sm:$0x1]
    %v445 = vld [vmem:[#allocation8 + $0x22] sm:$0x1]
    %v446 = vld [vmem:[#allocation8 + $0x2a] sm:$0x1]
    %v447 = vld [vmem:[#allocation8 + $0x32] sm:$0x1]
    %v448 = vld [vmem:[#allocation8 + $0x3a] sm:$0x1]
    %s449 = sld [smem:[#allocation12 + $0x100]]
    %v450 = vstv %s449
    %v451 = vmul.f32 %v450, %v441
    %v452 = vmul.f32 %v450, %v442
    %v453 = vmul.f32 %v450, %v443
    %v454 = vmul.f32 %v450, %v444
    %v455 = vmul.f32 %v450, %v445
    %v456 = vmul.f32 %v450, %v446
    %v457 = vmul.f32 %v450, %v447
    %v458 = vmul.f32 %v450, %v448
    %v467 = vrot.slane %v452, 7
    %v468 = vsel %vm173, %v467, %v451
    %v469 = vrot.slane %v453, 6
    %v470 = vsel %vm176, %v469, %v468
    %v471 = vrot.slane %v454, 5
    %v472 = vsel %vm179, %v471, %v470
    %v473 = vrot.slane %v455, 4
    %v474 = vsel %vm182, %v473, %v472
    %v475 = vrot.slane %v456, 3
    %v476 = vsel %vm185, %v475, %v474
    %v477 = vrot.slane %v457, 2
    %v478 = vsel %vm188, %v477, %v476
    %v479 = vrot.slane %v458, 1
    %v480 = vsel %vm191, %v479, %v478
    %v482 = vadd.f32 %v338, %v480
    %s483 = sld [smem:[#allocation12 + $0x101]]
    %v484 = vstv %s483
    %v485 = vmul.f32 %v484, %v441
    %v486 = vmul.f32 %v484, %v442
    %v487 = vmul.f32 %v484, %v443
    %v488 = vmul.f32 %v484, %v444
    %v489 = vmul.f32 %v484, %v445
    %v490 = vmul.f32 %v484, %v446
    %v491 = vmul.f32 %v484, %v447
    %v492 = vmul.f32 %v484, %v448
    %v501 = vrot.slane %v486, 7
    %v502 = vsel %vm173, %v501, %v485
    %v503 = vrot.slane %v487, 6
    %v504 = vsel %vm176, %v503, %v502
    %v505 = vrot.slane %v488, 5
    %v506 = vsel %vm179, %v505, %v504
    %v507 = vrot.slane %v489, 4
    %v508 = vsel %vm182, %v507, %v506
    %v509 = vrot.slane %v490, 3
    %v510 = vsel %vm185, %v509, %v508
    %v511 = vrot.slane %v491, 2
    %v512 = vsel %vm188, %v511, %v510
    %v513 = vrot.slane %v492, 1
    %v514 = vsel %vm191, %v513, %v512
    %v516 = vadd.f32 %v372, %v514
    %s517 = sld [smem:[#allocation12 + $0x102]]
    %v518 = vstv %s517
    %v519 = vmul.f32 %v518, %v441
    %v520 = vmul.f32 %v518, %v442
    %v521 = vmul.f32 %v518, %v443
    %v522 = vmul.f32 %v518, %v444
    %v523 = vmul.f32 %v518, %v445
    %v524 = vmul.f32 %v518, %v446
    %v525 = vmul.f32 %v518, %v447
    %v526 = vmul.f32 %v518, %v448
    %v535 = vrot.slane %v520, 7
    %v536 = vsel %vm173, %v535, %v519
    %v537 = vrot.slane %v521, 6
    %v538 = vsel %vm176, %v537, %v536
    %v539 = vrot.slane %v522, 5
    %v540 = vsel %vm179, %v539, %v538
    %v541 = vrot.slane %v523, 4
    %v542 = vsel %vm182, %v541, %v540
    %v543 = vrot.slane %v524, 3
    %v544 = vsel %vm185, %v543, %v542
    %v545 = vrot.slane %v525, 2
    %v546 = vsel %vm188, %v545, %v544
    %v547 = vrot.slane %v526, 1
    %v548 = vsel %vm191, %v547, %v546
    %v550 = vadd.f32 %v406, %v548
    %s551 = sld [smem:[#allocation12 + $0x103]]
    %v552 = vstv %s551
    %v553 = vmul.f32 %v552, %v441
    %v554 = vmul.f32 %v552, %v442
    %v555 = vmul.f32 %v552, %v443
    %v556 = vmul.f32 %v552, %v444
    %v557 = vmul.f32 %v552, %v445
    %v558 = vmul.f32 %v552, %v446
    %v559 = vmul.f32 %v552, %v447
    %v560 = vmul.f32 %v552, %v448
    %v569 = vrot.slane %v554, 7
    %v570 = vsel %vm173, %v569, %v553
    %v571 = vrot.slane %v555, 6
    %v572 = vsel %vm176, %v571, %v570
    %v573 = vrot.slane %v556, 5
    %v574 = vsel %vm179, %v573, %v572
    %v575 = vrot.slane %v557, 4
    %v576 = vsel %vm182, %v575, %v574
    %v577 = vrot.slane %v558, 3
    %v578 = vsel %vm185, %v577, %v576
    %v579 = vrot.slane %v559, 2
    %v580 = vsel %vm188, %v579, %v578
    %v581 = vrot.slane %v560, 1
    %v582 = vsel %vm191, %v581, %v580
    %v584 = vadd.f32 %v440, %v582
    %v585 = vld [vmem:[#allocation8 + $0x3] sm:$0x1]
    %v586 = vld [vmem:[#allocation8 + $0xb] sm:$0x1]
    %v587 = vld [vmem:[#allocation8 + $0x13] sm:$0x1]
    %v588 = vld [vmem:[#allocation8 + $0x1b] sm:$0x1]
    %v589 = vld [vmem:[#allocation8 + $0x23] sm:$0x1]
    %v590 = vld [vmem:[#allocation8 + $0x2b] sm:$0x1]
    %v591 = vld [vmem:[#allocation8 + $0x33] sm:$0x1]
    %v592 = vld [vmem:[#allocation8 + $0x3b] sm:$0x1]
    %s593 = sld [smem:[#allocation12 + $0x180]]
    %v594 = vstv %s593
    %v595 = vmul.f32 %v594, %v585
    %v596 = vmul.f32 %v594, %v586
    %v597 = vmul.f32 %v594, %v587
    %v598 = vmul.f32 %v594, %v588
    %v599 = vmul.f32 %v594, %v589
    %v600 = vmul.f32 %v594, %v590
    %v601 = vmul.f32 %v594, %v591
    %v602 = vmul.f32 %v594, %v592
    %v611 = vrot.slane %v596, 7
    %v612 = vsel %vm173, %v611, %v595
    %v613 = vrot.slane %v597, 6
    %v614 = vsel %vm176, %v613, %v612
    %v615 = vrot.slane %v598, 5
    %v616 = vsel %vm179, %v615, %v614
    %v617 = vrot.slane %v599, 4
    %v618 = vsel %vm182, %v617, %v616
    %v619 = vrot.slane %v600, 3
    %v620 = vsel %vm185, %v619, %v618
    %v621 = vrot.slane %v601, 2
    %v622 = vsel %vm188, %v621, %v620
    %v623 = vrot.slane %v602, 1
    %v624 = vsel %vm191, %v623, %v622
    %v626 = vadd.f32 %v482, %v624
    %s627 = sld [smem:[#allocation12 + $0x181]]
    %v628 = vstv %s627
    %v629 = vmul.f32 %v628, %v585
    %v630 = vmul.f32 %v628, %v586
    %v631 = vmul.f32 %v628, %v587
    %v632 = vmul.f32 %v628, %v588
    %v633 = vmul.f32 %v628, %v589
    %v634 = vmul.f32 %v628, %v590
    %v635 = vmul.f32 %v628, %v591
    %v636 = vmul.f32 %v628, %v592
    %v645 = vrot.slane %v630, 7
    %v646 = vsel %vm173, %v645, %v629
    %v647 = vrot.slane %v631, 6
    %v648 = vsel %vm176, %v647, %v646
    %v649 = vrot.slane %v632, 5
    %v650 = vsel %vm179, %v649, %v648
    %v651 = vrot.slane %v633, 4
    %v652 = vsel %vm182, %v651, %v650
    %v653 = vrot.slane %v634, 3
    %v654 = vsel %vm185, %v653, %v652
    %v655 = vrot.slane %v635, 2
    %v656 = vsel %vm188, %v655, %v654
    %v657 = vrot.slane %v636, 1
    %v658 = vsel %vm191, %v657, %v656
    %v660 = vadd.f32 %v516, %v658
    %s661 = sld [smem:[#allocation12 + $0x182]]
    %v662 = vstv %s661
    %v663 = vmul.f32 %v662, %v585
    %v664 = vmul.f32 %v662, %v586
    %v665 = vmul.f32 %v662, %v587
    %v666 = vmul.f32 %v662, %v588
    %v667 = vmul.f32 %v662, %v589
    %v668 = vmul.f32 %v662, %v590
    %v669 = vmul.f32 %v662, %v591
    %v670 = vmul.f32 %v662, %v592
    %v679 = vrot.slane %v664, 7
    %v680 = vsel %vm173, %v679, %v663
    %v681 = vrot.slane %v665, 6
    %v682 = vsel %vm176, %v681, %v680
    %v683 = vrot.slane %v666, 5
    %v684 = vsel %vm179, %v683, %v682
    %v685 = vrot.slane %v667, 4
    %v686 = vsel %vm182, %v685, %v684
    %v687 = vrot.slane %v668, 3
    %v688 = vsel %vm185, %v687, %v686
    %v689 = vrot.slane %v669, 2
    %v690 = vsel %vm188, %v689, %v688
    %v691 = vrot.slane %v670, 1
    %v692 = vsel %vm191, %v691, %v690
    %v694 = vadd.f32 %v550, %v692
    %s695 = sld [smem:[#allocation12 + $0x183]]
    %v696 = vstv %s695
    %v697 = vmul.f32 %v696, %v585
    %v698 = vmul.f32 %v696, %v586
    %v699 = vmul.f32 %v696, %v587
    %v700 = vmul.f32 %v696, %v588
    %v701 = vmul.f32 %v696, %v589
    %v702 = vmul.f32 %v696, %v590
    %v703 = vmul.f32 %v696, %v591
    %v704 = vmul.f32 %v696, %v592
    %v713 = vrot.slane %v698, 7
    %v714 = vsel %vm173, %v713, %v697
    %v715 = vrot.slane %v699, 6
    %v716 = vsel %vm176, %v715, %v714
    %v717 = vrot.slane %v700, 5
    %v718 = vsel %vm179, %v717, %v716
    %v719 = vrot.slane %v701, 4
    %v720 = vsel %vm182, %v719, %v718
    %v721 = vrot.slane %v702, 3
    %v722 = vsel %vm185, %v721, %v720
    %v723 = vrot.slane %v703, 2
    %v724 = vsel %vm188, %v723, %v722
    %v725 = vrot.slane %v704, 1
    %v726 = vsel %vm191, %v725, %v724
    %v728 = vadd.f32 %v584, %v726
    %v729 = vld [vmem:[#allocation8 + $0x4] sm:$0x1]
    %v730 = vld [vmem:[#allocation8 + $0xc] sm:$0x1]
    %v731 = vld [vmem:[#allocation8 + $0x14] sm:$0x1]
    %v732 = vld [vmem:[#allocation8 + $0x1c] sm:$0x1]
    %v733 = vld [vmem:[#allocation8 + $0x24] sm:$0x1]
    %v734 = vld [vmem:[#allocation8 + $0x2c] sm:$0x1]
    %v735 = vld [vmem:[#allocation8 + $0x34] sm:$0x1]
    %v736 = vld [vmem:[#allocation8 + $0x3c] sm:$0x1]
    %s737 = sld [smem:[#allocation12 + $0x200]]
    %v738 = vstv %s737
    %v739 = vmul.f32 %v738, %v729
    %v740 = vmul.f32 %v738, %v730
    %v741 = vmul.f32 %v738, %v731
    %v742 = vmul.f32 %v738, %v732
    %v743 = vmul.f32 %v738, %v733
    %v744 = vmul.f32 %v738, %v734
    %v745 = vmul.f32 %v738, %v735
    %v746 = vmul.f32 %v738, %v736
    %v755 = vrot.slane %v740, 7
    %v756 = vsel %vm173, %v755, %v739
    %v757 = vrot.slane %v741, 6
    %v758 = vsel %vm176, %v757, %v756
    %v759 = vrot.slane %v742, 5
    %v760 = vsel %vm179, %v759, %v758
    %v761 = vrot.slane %v743, 4
    %v762 = vsel %vm182, %v761, %v760
    %v763 = vrot.slane %v744, 3
    %v764 = vsel %vm185, %v763, %v762
    %v765 = vrot.slane %v745, 2
    %v766 = vsel %vm188, %v765, %v764
    %v767 = vrot.slane %v746, 1
    %v768 = vsel %vm191, %v767, %v766
    %v770 = vadd.f32 %v626, %v768
    %s771 = sld [smem:[#allocation12 + $0x201]]
    %v772 = vstv %s771
    %v773 = vmul.f32 %v772, %v729
    %v774 = vmul.f32 %v772, %v730
    %v775 = vmul.f32 %v772, %v731
    %v776 = vmul.f32 %v772, %v732
    %v777 = vmul.f32 %v772, %v733
    %v778 = vmul.f32 %v772, %v734
    %v779 = vmul.f32 %v772, %v735
    %v780 = vmul.f32 %v772, %v736
    %v789 = vrot.slane %v774, 7
    %v790 = vsel %vm173, %v789, %v773
    %v791 = vrot.slane %v775, 6
    %v792 = vsel %vm176, %v791, %v790
    %v793 = vrot.slane %v776, 5
    %v794 = vsel %vm179, %v793, %v792
    %v795 = vrot.slane %v777, 4
    %v796 = vsel %vm182, %v795, %v794
    %v797 = vrot.slane %v778, 3
    %v798 = vsel %vm185, %v797, %v796
    %v799 = vrot.slane %v779, 2
    %v800 = vsel %vm188, %v799, %v798
    %v801 = vrot.slane %v780, 1
    %v802 = vsel %vm191, %v801, %v800
    %v804 = vadd.f32 %v660, %v802
    %s805 = sld [smem:[#allocation12 + $0x202]]
    %v806 = vstv %s805
    %v807 = vmul.f32 %v806, %v729
    %v808 = vmul.f32 %v806, %v730
    %v809 = vmul.f32 %v806, %v731
    %v810 = vmul.f32 %v806, %v732
    %v811 = vmul.f32 %v806, %v733
    %v812 = vmul.f32 %v806, %v734
    %v813 = vmul.f32 %v806, %v735
    %v814 = vmul.f32 %v806, %v736
    %v823 = vrot.slane %v808, 7
    %v824 = vsel %vm173, %v823, %v807
    %v825 = vrot.slane %v809, 6
    %v826 = vsel %vm176, %v825, %v824
    %v827 = vrot.slane %v810, 5
    %v828 = vsel %vm179, %v827, %v826
    %v829 = vrot.slane %v811, 4
    %v830 = vsel %vm182, %v829, %v828
    %v831 = vrot.slane %v812, 3
    %v832 = vsel %vm185, %v831, %v830
    %v833 = vrot.slane %v813, 2
    %v834 = vsel %vm188, %v833, %v832
    %v835 = vrot.slane %v814, 1
    %v836 = vsel %vm191, %v835, %v834
    %v838 = vadd.f32 %v694, %v836
    %s839 = sld [smem:[#allocation12 + $0x203]]
    %v840 = vstv %s839
    %v841 = vmul.f32 %v840, %v729
    %v842 = vmul.f32 %v840, %v730
    %v843 = vmul.f32 %v840, %v731
    %v844 = vmul.f32 %v840, %v732
    %v845 = vmul.f32 %v840, %v733
    %v846 = vmul.f32 %v840, %v734
    %v847 = vmul.f32 %v840, %v735
    %v848 = vmul.f32 %v840, %v736
    %v857 = vrot.slane %v842, 7
    %v858 = vsel %vm173, %v857, %v841
    %v859 = vrot.slane %v843, 6
    %v860 = vsel %vm176, %v859, %v858
    %v861 = vrot.slane %v844, 5
    %v862 = vsel %vm179, %v861, %v860
    %v863 = vrot.slane %v845, 4
    %v864 = vsel %vm182, %v863, %v862
    %v865 = vrot.slane %v846, 3
    %v866 = vsel %vm185, %v865, %v864
    %v867 = vrot.slane %v847, 2
    %v868 = vsel %vm188, %v867, %v866
    %v869 = vrot.slane %v848, 1
    %v870 = vsel %vm191, %v869, %v868
    %v872 = vadd.f32 %v728, %v870
    %v873 = vld [vmem:[#allocation8 + $0x5] sm:$0x1]
    %v874 = vld [vmem:[#allocation8 + $0xd] sm:$0x1]
    %v875 = vld [vmem:[#allocation8 + $0x15] sm:$0x1]
    %v876 = vld [vmem:[#allocation8 + $0x1d] sm:$0x1]
    %v877 = vld [vmem:[#allocation8 + $0x25] sm:$0x1]
    %v878 = vld [vmem:[#allocation8 + $0x2d] sm:$0x1]
    %v879 = vld [vmem:[#allocation8 + $0x35] sm:$0x1]
    %v880 = vld [vmem:[#allocation8 + $0x3d] sm:$0x1]
    %s881 = sld [smem:[#allocation12 + $0x280]]
    %v882 = vstv %s881
    %v883 = vmul.f32 %v882, %v873
    %v884 = vmul.f32 %v882, %v874
    %v885 = vmul.f32 %v882, %v875
    %v886 = vmul.f32 %v882, %v876
    %v887 = vmul.f32 %v882, %v877
    %v888 = vmul.f32 %v882, %v878
    %v889 = vmul.f32 %v882, %v879
    %v890 = vmul.f32 %v882, %v880
    %v899 = vrot.slane %v884, 7
    %v900 = vsel %vm173, %v899, %v883
    %v901 = vrot.slane %v885, 6
    %v902 = vsel %vm176, %v901, %v900
    %v903 = vrot.slane %v886, 5
    %v904 = vsel %vm179, %v903, %v902
    %v905 = vrot.slane %v887, 4
    %v906 = vsel %vm182, %v905, %v904
    %v907 = vrot.slane %v888, 3
    %v908 = vsel %vm185, %v907, %v906
    %v909 = vrot.slane %v889, 2
    %v910 = vsel %vm188, %v909, %v908
    %v911 = vrot.slane %v890, 1
    %v912 = vsel %vm191, %v911, %v910
    %v914 = vadd.f32 %v770, %v912
    %s915 = sld [smem:[#allocation12 + $0x281]]
    %v916 = vstv %s915
    %v917 = vmul.f32 %v916, %v873
    %v918 = vmul.f32 %v916, %v874
    %v919 = vmul.f32 %v916, %v875
    %v920 = vmul.f32 %v916, %v876
    %v921 = vmul.f32 %v916, %v877
    %v922 = vmul.f32 %v916, %v878
    %v923 = vmul.f32 %v916, %v879
    %v924 = vmul.f32 %v916, %v880
    %v933 = vrot.slane %v918, 7
    %v934 = vsel %vm173, %v933, %v917
    %v935 = vrot.slane %v919, 6
    %v936 = vsel %vm176, %v935, %v934
    %v937 = vrot.slane %v920, 5
    %v938 = vsel %vm179, %v937, %v936
    %v939 = vrot.slane %v921, 4
    %v940 = vsel %vm182, %v939, %v938
    %v941 = vrot.slane %v922, 3
    %v942 = vsel %vm185, %v941, %v940
    %v943 = vrot.slane %v923, 2
    %v944 = vsel %vm188, %v943, %v942
    %v945 = vrot.slane %v924, 1
    %v946 = vsel %vm191, %v945, %v944
    %v948 = vadd.f32 %v804, %v946
    %s949 = sld [smem:[#allocation12 + $0x282]]
    %v950 = vstv %s949
    %v951 = vmul.f32 %v950, %v873
    %v952 = vmul.f32 %v950, %v874
    %v953 = vmul.f32 %v950, %v875
    %v954 = vmul.f32 %v950, %v876
    %v955 = vmul.f32 %v950, %v877
    %v956 = vmul.f32 %v950, %v878
    %v957 = vmul.f32 %v950, %v879
    %v958 = vmul.f32 %v950, %v880
    %v967 = vrot.slane %v952, 7
    %v968 = vsel %vm173, %v967, %v951
    %v969 = vrot.slane %v953, 6
    %v970 = vsel %vm176, %v969, %v968
    %v971 = vrot.slane %v954, 5
    %v972 = vsel %vm179, %v971, %v970
    %v973 = vrot.slane %v955, 4
    %v974 = vsel %vm182, %v973, %v972
    %v975 = vrot.slane %v956, 3
    %v976 = vsel %vm185, %v975, %v974
    %v977 = vrot.slane %v957, 2
    %v978 = vsel %vm188, %v977, %v976
    %v979 = vrot.slane %v958, 1
    %v980 = vsel %vm191, %v979, %v978
    %v982 = vadd.f32 %v838, %v980
    %s983 = sld [smem:[#allocation12 + $0x283]]
    %v984 = vstv %s983
    %v985 = vmul.f32 %v984, %v873
    %v986 = vmul.f32 %v984, %v874
    %v987 = vmul.f32 %v984, %v875
    %v988 = vmul.f32 %v984, %v876
    %v989 = vmul.f32 %v984, %v877
    %v990 = vmul.f32 %v984, %v878
    %v991 = vmul.f32 %v984, %v879
    %v992 = vmul.f32 %v984, %v880
    %v1001 = vrot.slane %v986, 7
    %v1002 = vsel %vm173, %v1001, %v985
    %v1003 = vrot.slane %v987, 6
    %v1004 = vsel %vm176, %v1003, %v1002
    %v1005 = vrot.slane %v988, 5
    %v1006 = vsel %vm179, %v1005, %v1004
    %v1007 = vrot.slane %v989, 4
    %v1008 = vsel %vm182, %v1007, %v1006
    %v1009 = vrot.slane %v990, 3
    %v1010 = vsel %vm185, %v1009, %v1008
    %v1011 = vrot.slane %v991, 2
    %v1012 = vsel %vm188, %v1011, %v1010
    %v1013 = vrot.slane %v992, 1
    %v1014 = vsel %vm191, %v1013, %v1012
    %v1016 = vadd.f32 %v872, %v1014
    %v1017 = vld [vmem:[#allocation8 + $0x6] sm:$0x1]
    %v1018 = vld [vmem:[#allocation8 + $0xe] sm:$0x1]
    %v1019 = vld [vmem:[#allocation8 + $0x16] sm:$0x1]
    %v1020 = vld [vmem:[#allocation8 + $0x1e] sm:$0x1]
    %v1021 = vld [vmem:[#allocation8 + $0x26] sm:$0x1]
    %v1022 = vld [vmem:[#allocation8 + $0x2e] sm:$0x1]
    %v1023 = vld [vmem:[#allocation8 + $0x36] sm:$0x1]
    %v1024 = vld [vmem:[#allocation8 + $0x3e] sm:$0x1]
    %s1025 = sld [smem:[#allocation12 + $0x300]]
    %v1026 = vstv %s1025
    %v1027 = vmul.f32 %v1026, %v1017
    %v1028 = vmul.f32 %v1026, %v1018
    %v1029 = vmul.f32 %v1026, %v1019
    %v1030 = vmul.f32 %v1026, %v1020
    %v1031 = vmul.f32 %v1026, %v1021
    %v1032 = vmul.f32 %v1026, %v1022
    %v1033 = vmul.f32 %v1026, %v1023
    %v1034 = vmul.f32 %v1026, %v1024
    %v1043 = vrot.slane %v1028, 7
    %v1044 = vsel %vm173, %v1043, %v1027
    %v1045 = vrot.slane %v1029, 6
    %v1046 = vsel %vm176, %v1045, %v1044
    %v1047 = vrot.slane %v1030, 5
    %v1048 = vsel %vm179, %v1047, %v1046
    %v1049 = vrot.slane %v1031, 4
    %v1050 = vsel %vm182, %v1049, %v1048
    %v1051 = vrot.slane %v1032, 3
    %v1052 = vsel %vm185, %v1051, %v1050
    %v1053 = vrot.slane %v1033, 2
    %v1054 = vsel %vm188, %v1053, %v1052
    %v1055 = vrot.slane %v1034, 1
    %v1056 = vsel %vm191, %v1055, %v1054
    %v1058 = vadd.f32 %v914, %v1056
    %s1059 = sld [smem:[#allocation12 + $0x301]]
    %v1060 = vstv %s1059
    %v1061 = vmul.f32 %v1060, %v1017
    %v1062 = vmul.f32 %v1060, %v1018
    %v1063 = vmul.f32 %v1060, %v1019
    %v1064 = vmul.f32 %v1060, %v1020
    %v1065 = vmul.f32 %v1060, %v1021
    %v1066 = vmul.f32 %v1060, %v1022
    %v1067 = vmul.f32 %v1060, %v1023
    %v1068 = vmul.f32 %v1060, %v1024
    %v1077 = vrot.slane %v1062, 7
    %v1078 = vsel %vm173, %v1077, %v1061
    %v1079 = vrot.slane %v1063, 6
    %v1080 = vsel %vm176, %v1079, %v1078
    %v1081 = vrot.slane %v1064, 5
    %v1082 = vsel %vm179, %v1081, %v1080
    %v1083 = vrot.slane %v1065, 4
    %v1084 = vsel %vm182, %v1083, %v1082
    %v1085 = vrot.slane %v1066, 3
    %v1086 = vsel %vm185, %v1085, %v1084
    %v1087 = vrot.slane %v1067, 2
    %v1088 = vsel %vm188, %v1087, %v1086
    %v1089 = vrot.slane %v1068, 1
    %v1090 = vsel %vm191, %v1089, %v1088
    %v1092 = vadd.f32 %v948, %v1090
    %s1093 = sld [smem:[#allocation12 + $0x302]]
    %v1094 = vstv %s1093
    %v1095 = vmul.f32 %v1094, %v1017
    %v1096 = vmul.f32 %v1094, %v1018
    %v1097 = vmul.f32 %v1094, %v1019
    %v1098 = vmul.f32 %v1094, %v1020
    %v1099 = vmul.f32 %v1094, %v1021
    %v1100 = vmul.f32 %v1094, %v1022
    %v1101 = vmul.f32 %v1094, %v1023
    %v1102 = vmul.f32 %v1094, %v1024
    %v1111 = vrot.slane %v1096, 7
    %v1112 = vsel %vm173, %v1111, %v1095
    %v1113 = vrot.slane %v1097, 6
    %v1114 = vsel %vm176, %v1113, %v1112
    %v1115 = vrot.slane %v1098, 5
    %v1116 = vsel %vm179, %v1115, %v1114
    %v1117 = vrot.slane %v1099, 4
    %v1118 = vsel %vm182, %v1117, %v1116
    %v1119 = vrot.slane %v1100, 3
    %v1120 = vsel %vm185, %v1119, %v1118
    %v1121 = vrot.slane %v1101, 2
    %v1122 = vsel %vm188, %v1121, %v1120
    %v1123 = vrot.slane %v1102, 1
    %v1124 = vsel %vm191, %v1123, %v1122
    %v1126 = vadd.f32 %v982, %v1124
    %s1127 = sld [smem:[#allocation12 + $0x303]]
    %v1128 = vstv %s1127
    %v1129 = vmul.f32 %v1128, %v1017
    %v1130 = vmul.f32 %v1128, %v1018
    %v1131 = vmul.f32 %v1128, %v1019
    %v1132 = vmul.f32 %v1128, %v1020
    %v1133 = vmul.f32 %v1128, %v1021
    %v1134 = vmul.f32 %v1128, %v1022
    %v1135 = vmul.f32 %v1128, %v1023
    %v1136 = vmul.f32 %v1128, %v1024
    %v1145 = vrot.slane %v1130, 7
    %v1146 = vsel %vm173, %v1145, %v1129
    %v1147 = vrot.slane %v1131, 6
    %v1148 = vsel %vm176, %v1147, %v1146
    %v1149 = vrot.slane %v1132, 5
    %v1150 = vsel %vm179, %v1149, %v1148
    %v1151 = vrot.slane %v1133, 4
    %v1152 = vsel %vm182, %v1151, %v1150
    %v1153 = vrot.slane %v1134, 3
    %v1154 = vsel %vm185, %v1153, %v1152
    %v1155 = vrot.slane %v1135, 2
    %v1156 = vsel %vm188, %v1155, %v1154
    %v1157 = vrot.slane %v1136, 1
    %v1158 = vsel %vm191, %v1157, %v1156
    %v1160 = vadd.f32 %v1016, %v1158
    %v1161 = vld [vmem:[#allocation8 + $0x7] sm:$0x1]
    %v1162 = vld [vmem:[#allocation8 + $0xf] sm:$0x1]
    %v1163 = vld [vmem:[#allocation8 + $0x17] sm:$0x1]
    %v1164 = vld [vmem:[#allocation8 + $0x1f] sm:$0x1]
    %v1165 = vld [vmem:[#allocation8 + $0x27] sm:$0x1]
    %v1166 = vld [vmem:[#allocation8 + $0x2f] sm:$0x1]
    %v1167 = vld [vmem:[#allocation8 + $0x37] sm:$0x1]
    %v1168 = vld [vmem:[#allocation8 + $0x3f] sm:$0x1]
    %s1169 = sld [smem:[#allocation12 + $0x380]]
    %v1170 = vstv %s1169
    %v1171 = vmul.f32 %v1170, %v1161
    %v1172 = vmul.f32 %v1170, %v1162
    %v1173 = vmul.f32 %v1170, %v1163
    %v1174 = vmul.f32 %v1170, %v1164
    %v1175 = vmul.f32 %v1170, %v1165
    %v1176 = vmul.f32 %v1170, %v1166
    %v1177 = vmul.f32 %v1170, %v1167
    %v1178 = vmul.f32 %v1170, %v1168
    %v1187 = vrot.slane %v1172, 7
    %v1188 = vsel %vm173, %v1187, %v1171
    %v1189 = vrot.slane %v1173, 6
    %v1190 = vsel %vm176, %v1189, %v1188
    %v1191 = vrot.slane %v1174, 5
    %v1192 = vsel %vm179, %v1191, %v1190
    %v1193 = vrot.slane %v1175, 4
    %v1194 = vsel %vm182, %v1193, %v1192
    %v1195 = vrot.slane %v1176, 3
    %v1196 = vsel %vm185, %v1195, %v1194
    %v1197 = vrot.slane %v1177, 2
    %v1198 = vsel %vm188, %v1197, %v1196
    %v1199 = vrot.slane %v1178, 1
    %v1200 = vsel %vm191, %v1199, %v1198
    %v1202 = vadd.f32 %v1058, %v1200
    %s1203 = sld [smem:[#allocation12 + $0x381]]
    %v1204 = vstv %s1203
    %v1205 = vmul.f32 %v1204, %v1161
    %v1206 = vmul.f32 %v1204, %v1162
    %v1207 = vmul.f32 %v1204, %v1163
    %v1208 = vmul.f32 %v1204, %v1164
    %v1209 = vmul.f32 %v1204, %v1165
    %v1210 = vmul.f32 %v1204, %v1166
    %v1211 = vmul.f32 %v1204, %v1167
    %v1212 = vmul.f32 %v1204, %v1168
    %v1221 = vrot.slane %v1206, 7
    %v1222 = vsel %vm173, %v1221, %v1205
    %v1223 = vrot.slane %v1207, 6
    %v1224 = vsel %vm176, %v1223, %v1222
    %v1225 = vrot.slane %v1208, 5
    %v1226 = vsel %vm179, %v1225, %v1224
    %v1227 = vrot.slane %v1209, 4
    %v1228 = vsel %vm182, %v1227, %v1226
    %v1229 = vrot.slane %v1210, 3
    %v1230 = vsel %vm185, %v1229, %v1228
    %v1231 = vrot.slane %v1211, 2
    %v1232 = vsel %vm188, %v1231, %v1230
    %v1233 = vrot.slane %v1212, 1
    %v1234 = vsel %vm191, %v1233, %v1232
    %v1236 = vadd.f32 %v1092, %v1234
    %s1237 = sld [smem:[#allocation12 + $0x382]]
    %v1238 = vstv %s1237
    %v1239 = vmul.f32 %v1238, %v1161
    %v1240 = vmul.f32 %v1238, %v1162
    %v1241 = vmul.f32 %v1238, %v1163
    %v1242 = vmul.f32 %v1238, %v1164
    %v1243 = vmul.f32 %v1238, %v1165
    %v1244 = vmul.f32 %v1238, %v1166
    %v1245 = vmul.f32 %v1238, %v1167
    %v1246 = vmul.f32 %v1238, %v1168
    %v1255 = vrot.slane %v1240, 7
    %v1256 = vsel %vm173, %v1255, %v1239
    %v1257 = vrot.slane %v1241, 6
    %v1258 = vsel %vm176, %v1257, %v1256
    %v1259 = vrot.slane %v1242, 5
    %v1260 = vsel %vm179, %v1259, %v1258
    %v1261 = vrot.slane %v1243, 4
    %v1262 = vsel %vm182, %v1261, %v1260
    %v1263 = vrot.slane %v1244, 3
    %v1264 = vsel %vm185, %v1263, %v1262
    %v1265 = vrot.slane %v1245, 2
    %v1266 = vsel %vm188, %v1265, %v1264
    %v1267 = vrot.slane %v1246, 1
    %v1268 = vsel %vm191, %v1267, %v1266
    %v1270 = vadd.f32 %v1126, %v1268
    %s1271 = sld [smem:[#allocation12 + $0x383]]
    %v1272 = vstv %s1271
    %v1273 = vmul.f32 %v1272, %v1161
    %v1274 = vmul.f32 %v1272, %v1162
    %v1275 = vmul.f32 %v1272, %v1163
    %v1276 = vmul.f32 %v1272, %v1164
    %v1277 = vmul.f32 %v1272, %v1165
    %v1278 = vmul.f32 %v1272, %v1166
    %v1279 = vmul.f32 %v1272, %v1167
    %v1280 = vmul.f32 %v1272, %v1168
    %v1289 = vrot.slane %v1274, 7
    %v1290 = vsel %vm173, %v1289, %v1273
    %v1291 = vrot.slane %v1275, 6
    %v1292 = vsel %vm176, %v1291, %v1290
    %v1293 = vrot.slane %v1276, 5
    %v1294 = vsel %vm179, %v1293, %v1292
    %v1295 = vrot.slane %v1277, 4
    %v1296 = vsel %vm182, %v1295, %v1294
    %v1297 = vrot.slane %v1278, 3
    %v1298 = vsel %vm185, %v1297, %v1296
    %v1299 = vrot.slane %v1279, 2
    %v1300 = vsel %vm188, %v1299, %v1298
    %v1301 = vrot.slane %v1280, 1
    %v1302 = vsel %vm191, %v1301, %v1300
    %v1304 = vadd.f32 %v1160, %v1302
    %vm1305 = vcmp.gt.f32.partialorder %v1202, 0.0
    %v1306 = vmul.f32 %v1202, 0.2
    %v1307 = vsel %vm1305, %v1202, %v1306
    %v1308 = vsel %vm106, %v1307, -1e+30
    %vm1309 = vcmask 64512
    %v1310 = vsel %vm1309, %v1308, -inf
    %1311 = vmax.xlane.f32.xlu0 %v1310
    %v1312 = vpop.xlane.xlu0 %1311
    %v1313 = vsub.f32 %v1308, %v1312
    %v1314 = vmul.f32 %v1313, 1.442695
    %v1315 = vpow.pop %v1314
    %v1316 = vsel %vm106, %v1315, 0.0
    %v1317 = vsel %vm1309, %v1316, 0.0
    %1318 = vadd.xlane.f32.xlu0 %v1317
    %v1319 = vpop.xlane.xlu0 %1318
    %v1320 = vmax.f32 %v1319, 1e-30
    %v1321 = vrcp.pop %v1320
    %v1322 = vmul.f32 %v1320, %v1321
    %v1323 = vsub.f32 2.0, %v1322
    %v1324 = vmul.f32 %v1321, %v1323
    %v1325 = vmul.f32 %v1316, %v1324
    %vm1326 = vcmp.gt.f32.partialorder %v1236, 0.0
    %v1327 = vmul.f32 %v1236, 0.2
    %v1328 = vsel %vm1326, %v1236, %v1327
    %v1329 = vsel %vm106, %v1328, -1e+30
    %v1330 = vsel %vm1309, %v1329, -inf
    %1331 = vmax.xlane.f32.xlu0 %v1330
    %v1332 = vpop.xlane.xlu0 %1331
    %v1333 = vsub.f32 %v1329, %v1332
    %v1334 = vmul.f32 %v1333, 1.442695
    %v1335 = vpow.pop %v1334
    %v1336 = vsel %vm106, %v1335, 0.0
    %v1337 = vsel %vm1309, %v1336, 0.0
    %1338 = vadd.xlane.f32.xlu0 %v1337
    %v1339 = vpop.xlane.xlu0 %1338
    %v1340 = vmax.f32 %v1339, 1e-30
    %v1341 = vrcp.pop %v1340
    %v1342 = vmul.f32 %v1340, %v1341
    %v1343 = vsub.f32 2.0, %v1342
    %v1344 = vmul.f32 %v1341, %v1343
    %v1345 = vmul.f32 %v1336, %v1344
    %vm1346 = vcmp.gt.f32.partialorder %v1270, 0.0
    %v1347 = vmul.f32 %v1270, 0.2
    %v1348 = vsel %vm1346, %v1270, %v1347
    %v1349 = vsel %vm106, %v1348, -1e+30
    %v1350 = vsel %vm1309, %v1349, -inf
    %1351 = vmax.xlane.f32.xlu0 %v1350
    %v1352 = vpop.xlane.xlu0 %1351
    %v1353 = vsub.f32 %v1349, %v1352
    %v1354 = vmul.f32 %v1353, 1.442695
    %v1355 = vpow.pop %v1354
    %v1356 = vsel %vm106, %v1355, 0.0
    %v1357 = vsel %vm1309, %v1356, 0.0
    %1358 = vadd.xlane.f32.xlu0 %v1357
    %v1359 = vpop.xlane.xlu0 %1358
    %v1360 = vmax.f32 %v1359, 1e-30
    %v1361 = vrcp.pop %v1360
    %v1362 = vmul.f32 %v1360, %v1361
    %v1363 = vsub.f32 2.0, %v1362
    %v1364 = vmul.f32 %v1361, %v1363
    %v1365 = vmul.f32 %v1356, %v1364
    %vm1366 = vcmp.gt.f32.partialorder %v1304, 0.0
    %v1367 = vmul.f32 %v1304, 0.2
    %v1368 = vsel %vm1366, %v1304, %v1367
    %v1369 = vsel %vm106, %v1368, -1e+30
    %v1370 = vsel %vm1309, %v1369, -inf
    %1371 = vmax.xlane.f32.xlu0 %v1370
    %v1372 = vpop.xlane.xlu0 %1371
    %v1373 = vsub.f32 %v1369, %v1372
    %v1374 = vmul.f32 %v1373, 1.442695
    %v1375 = vpow.pop %v1374
    %v1376 = vsel %vm106, %v1375, 0.0
    %v1377 = vsel %vm1309, %v1376, 0.0
    %1378 = vadd.xlane.f32.xlu0 %v1377
    %v1379 = vpop.xlane.xlu0 %1378
    %v1380 = vmax.f32 %v1379, 1e-30
    %v1381 = vrcp.pop %v1380
    %v1382 = vmul.f32 %v1380, %v1381
    %v1383 = vsub.f32 2.0, %v1382
    %v1384 = vmul.f32 %v1381, %v1383
    %v1385 = vmul.f32 %v1376, %v1384
    %v1386 = vld [vmem:[#allocation9] sm:$0xff]
    %v1388 = vsel %vm1309, %v1325, 0
    %1390 = vmatprep.subr.mxu0 0.0
    %1391 = vmatpush1.msra.mxu0 0.0
    %1392 = vmatprep.subr.mxu0 0.0
    %1393 = vmatpush1.msra.mxu0 0.0
    %1394 = vmatprep.subr.mxu0 0.0
    %1395 = vmatpush1.msra.mxu0 0.0
    %1396 = vmatprep.subr.mxu0 0.0
    %1397 = vmatpush1.msra.mxu0 0.0
    %1398 = vmatprep.subr.mxu0 0.0
    %1399 = vmatpush1.msra.mxu0 0.0
    %1400 = vmatprep.subr.mxu0 0.0
    %1401 = vmatpush1.msra.mxu0 0.0
    %1402 = vmatprep.subr.mxu0 0.0
    %1403 = vmatpush1.msra.mxu0 0.0
    %1404 = vmatprep.subr.mxu0 0.0
    %1405 = vmatpush1.msra.mxu0 0.0
    %1406 = vmatprep.subr.mxu0 0.0
    %1407 = vmatpush1.msra.mxu0 0.0
    %1408 = vmatprep.subr.mxu0 0.0
    %1409 = vmatpush1.msra.mxu0 0.0
    %1410 = vmatprep.subr.mxu0 0.0
    %1411 = vmatpush1.msra.mxu0 0.0
    %1412 = vmatprep.subr.mxu0 0.0
    %1413 = vmatpush1.msra.mxu0 0.0
    %1414 = vmatprep.subr.mxu0 0.0
    %1415 = vmatpush1.msra.mxu0 0.0
    %1416 = vmatprep.subr.mxu0 0.0
    %1417 = vmatpush1.msra.mxu0 0.0
    %1418 = vmatprep.subr.mxu0 0.0
    %1419 = vmatpush1.msra.mxu0 0.0
    %1420 = vmatprep.subr.mxu0 0.0
    %1421 = vmatpush1.msra.mxu0 %v1386
    %1422 = vmatprep.subr.mxu0 0.0
    %1423 = vmatpush2.msra.mxu0 0.0
    %1424 = vmatprep.subr.mxu0 0.0
    %1425 = vmatpush2.msra.mxu0 0.0
    %1426 = vmatprep.subr.mxu0 0.0
    %1427 = vmatpush2.msra.mxu0 0.0
    %1428 = vmatprep.subr.mxu0 0.0
    %1429 = vmatpush2.msra.mxu0 0.0
    %1430 = vmatprep.subr.mxu0 0.0
    %1431 = vmatpush2.msra.mxu0 0.0
    %1432 = vmatprep.subr.mxu0 0.0
    %1433 = vmatpush2.msra.mxu0 0.0
    %1434 = vmatprep.subr.mxu0 0.0
    %1435 = vmatpush2.msra.mxu0 0.0
    %1436 = vmatprep.subr.mxu0 0.0
    %1437 = vmatpush2.msra.mxu0 0.0
    %1438 = vmatprep.subr.mxu0 0.0
    %1439 = vmatpush2.msra.mxu0 0.0
    %1440 = vmatprep.subr.mxu0 0.0
    %1441 = vmatpush2.msra.mxu0 0.0
    %1442 = vmatprep.subr.mxu0 0.0
    %1443 = vmatpush2.msra.mxu0 0.0
    %1444 = vmatprep.subr.mxu0 0.0
    %1445 = vmatpush2.msra.mxu0 0.0
    %1446 = vmatprep.subr.mxu0 0.0
    %1447 = vmatpush2.msra.mxu0 0.0
    %1448 = vmatprep.subr.mxu0 0.0
    %1449 = vmatpush2.msra.mxu0 0.0
    %1450 = vmatprep.subr.mxu0 0.0
    %1451 = vmatpush2.msra.mxu0 0.0
    %1452 = vmatprep.subr.mxu0 0.0
    %1453 = vmatpush2.msra.mxu0 0.0
    %1454 = vmatprep.mubr.f32.mxu0 0.0
    %1455 = vmatmul.mubr.f32.gmra.mxu0 %v1388
    %v1456 = vpop.f32.mrf.mxu0
    %v1457 = vadd.f32 0.0, %v1456
    %v1458 = vpop.f32.mrf.mxu0
    %1459 = vdwg.mxu0
    %s1460 = scalar_lea.vmem [#allocation9], 8
    %v1461 = vld [vmem:[%s1460] sm:$0xff]
    %v1463 = vsel %vm1309, %v1345, 0
    %1465 = vmatprep.subr.mxu0 0.0
    %1466 = vmatpush1.msra.mxu0 0.0
    %1467 = vmatprep.subr.mxu0 0.0
    %1468 = vmatpush1.msra.mxu0 0.0
    %1469 = vmatprep.subr.mxu0 0.0
    %1470 = vmatpush1.msra.mxu0 0.0
    %1471 = vmatprep.subr.mxu0 0.0
    %1472 = vmatpush1.msra.mxu0 0.0
    %1473 = vmatprep.subr.mxu0 0.0
    %1474 = vmatpush1.msra.mxu0 0.0
    %1475 = vmatprep.subr.mxu0 0.0
    %1476 = vmatpush1.msra.mxu0 0.0
    %1477 = vmatprep.subr.mxu0 0.0
    %1478 = vmatpush1.msra.mxu0 0.0
    %1479 = vmatprep.subr.mxu0 0.0
    %1480 = vmatpush1.msra.mxu0 0.0
    %1481 = vmatprep.subr.mxu0 0.0
    %1482 = vmatpush1.msra.mxu0 0.0
    %1483 = vmatprep.subr.mxu0 0.0
    %1484 = vmatpush1.msra.mxu0 0.0
    %1485 = vmatprep.subr.mxu0 0.0
    %1486 = vmatpush1.msra.mxu0 0.0
    %1487 = vmatprep.subr.mxu0 0.0
    %1488 = vmatpush1.msra.mxu0 0.0
    %1489 = vmatprep.subr.mxu0 0.0
    %1490 = vmatpush1.msra.mxu0 0.0
    %1491 = vmatprep.subr.mxu0 0.0
    %1492 = vmatpush1.msra.mxu0 0.0
    %1493 = vmatprep.subr.mxu0 0.0
    %1494 = vmatpush1.msra.mxu0 0.0
    %1495 = vmatprep.subr.mxu0 0.0
    %1496 = vmatpush1.msra.mxu0 %v1461
    %1497 = vmatprep.subr.mxu0 0.0
    %1498 = vmatpush2.msra.mxu0 0.0
    %1499 = vmatprep.subr.mxu0 0.0
    %1500 = vmatpush2.msra.mxu0 0.0
    %1501 = vmatprep.subr.mxu0 0.0
    %1502 = vmatpush2.msra.mxu0 0.0
    %1503 = vmatprep.subr.mxu0 0.0
    %1504 = vmatpush2.msra.mxu0 0.0
    %1505 = vmatprep.subr.mxu0 0.0
    %1506 = vmatpush2.msra.mxu0 0.0
    %1507 = vmatprep.subr.mxu0 0.0
    %1508 = vmatpush2.msra.mxu0 0.0
    %1509 = vmatprep.subr.mxu0 0.0
    %1510 = vmatpush2.msra.mxu0 0.0
    %1511 = vmatprep.subr.mxu0 0.0
    %1512 = vmatpush2.msra.mxu0 0.0
    %1513 = vmatprep.subr.mxu0 0.0
    %1514 = vmatpush2.msra.mxu0 0.0
    %1515 = vmatprep.subr.mxu0 0.0
    %1516 = vmatpush2.msra.mxu0 0.0
    %1517 = vmatprep.subr.mxu0 0.0
    %1518 = vmatpush2.msra.mxu0 0.0
    %1519 = vmatprep.subr.mxu0 0.0
    %1520 = vmatpush2.msra.mxu0 0.0
    %1521 = vmatprep.subr.mxu0 0.0
    %1522 = vmatpush2.msra.mxu0 0.0
    %1523 = vmatprep.subr.mxu0 0.0
    %1524 = vmatpush2.msra.mxu0 0.0
    %1525 = vmatprep.subr.mxu0 0.0
    %1526 = vmatpush2.msra.mxu0 0.0
    %1527 = vmatprep.subr.mxu0 0.0
    %1528 = vmatpush2.msra.mxu0 0.0
    %1529 = vmatprep.mubr.f32.mxu0 0.0
    %1530 = vmatmul.mubr.f32.gmra.mxu0 %v1463
    %v1531 = vpop.f32.mrf.mxu0
    %v1532 = vadd.f32 0.0, %v1531
    %v1533 = vpop.f32.mrf.mxu0
    %1534 = vdwg.mxu0
    %s1535 = scalar_lea.vmem [#allocation9], 16
    %v1536 = vld [vmem:[%s1535] sm:$0xff]
    %v1538 = vsel %vm1309, %v1365, 0
    %1540 = vmatprep.subr.mxu0 0.0
    %1541 = vmatpush1.msra.mxu0 0.0
    %1542 = vmatprep.subr.mxu0 0.0
    %1543 = vmatpush1.msra.mxu0 0.0
    %1544 = vmatprep.subr.mxu0 0.0
    %1545 = vmatpush1.msra.mxu0 0.0
    %1546 = vmatprep.subr.mxu0 0.0
    %1547 = vmatpush1.msra.mxu0 0.0
    %1548 = vmatprep.subr.mxu0 0.0
    %1549 = vmatpush1.msra.mxu0 0.0
    %1550 = vmatprep.subr.mxu0 0.0
    %1551 = vmatpush1.msra.mxu0 0.0
    %1552 = vmatprep.subr.mxu0 0.0
    %1553 = vmatpush1.msra.mxu0 0.0
    %1554 = vmatprep.subr.mxu0 0.0
    %1555 = vmatpush1.msra.mxu0 0.0
    %1556 = vmatprep.subr.mxu0 0.0
    %1557 = vmatpush1.msra.mxu0 0.0
    %1558 = vmatprep.subr.mxu0 0.0
    %1559 = vmatpush1.msra.mxu0 0.0
    %1560 = vmatprep.subr.mxu0 0.0
    %1561 = vmatpush1.msra.mxu0 0.0
    %1562 = vmatprep.subr.mxu0 0.0
    %1563 = vmatpush1.msra.mxu0 0.0
    %1564 = vmatprep.subr.mxu0 0.0
    %1565 = vmatpush1.msra.mxu0 0.0
    %1566 = vmatprep.subr.mxu0 0.0
    %1567 = vmatpush1.msra.mxu0 0.0
    %1568 = vmatprep.subr.mxu0 0.0
    %1569 = vmatpush1.msra.mxu0 0.0
    %1570 = vmatprep.subr.mxu0 0.0
    %1571 = vmatpush1.msra.mxu0 %v1536
    %1572 = vmatprep.subr.mxu0 0.0
    %1573 = vmatpush2.msra.mxu0 0.0
    %1574 = vmatprep.subr.mxu0 0.0
    %1575 = vmatpush2.msra.mxu0 0.0
    %1576 = vmatprep.subr.mxu0 0.0
    %1577 = vmatpush2.msra.mxu0 0.0
    %1578 = vmatprep.subr.mxu0 0.0
    %1579 = vmatpush2.msra.mxu0 0.0
    %1580 = vmatprep.subr.mxu0 0.0
    %1581 = vmatpush2.msra.mxu0 0.0
    %1582 = vmatprep.subr.mxu0 0.0
    %1583 = vmatpush2.msra.mxu0 0.0
    %1584 = vmatprep.subr.mxu0 0.0
    %1585 = vmatpush2.msra.mxu0 0.0
    %1586 = vmatprep.subr.mxu0 0.0
    %1587 = vmatpush2.msra.mxu0 0.0
    %1588 = vmatprep.subr.mxu0 0.0
    %1589 = vmatpush2.msra.mxu0 0.0
    %1590 = vmatprep.subr.mxu0 0.0
    %1591 = vmatpush2.msra.mxu0 0.0
    %1592 = vmatprep.subr.mxu0 0.0
    %1593 = vmatpush2.msra.mxu0 0.0
    %1594 = vmatprep.subr.mxu0 0.0
    %1595 = vmatpush2.msra.mxu0 0.0
    %1596 = vmatprep.subr.mxu0 0.0
    %1597 = vmatpush2.msra.mxu0 0.0
    %1598 = vmatprep.subr.mxu0 0.0
    %1599 = vmatpush2.msra.mxu0 0.0
    %1600 = vmatprep.subr.mxu0 0.0
    %1601 = vmatpush2.msra.mxu0 0.0
    %1602 = vmatprep.subr.mxu0 0.0
    %1603 = vmatpush2.msra.mxu0 0.0
    %1604 = vmatprep.mubr.f32.mxu0 0.0
    %1605 = vmatmul.mubr.f32.gmra.mxu0 %v1538
    %v1606 = vpop.f32.mrf.mxu0
    %v1607 = vadd.f32 0.0, %v1606
    %v1608 = vpop.f32.mrf.mxu0
    %1609 = vdwg.mxu0
    %s1610 = scalar_lea.vmem [#allocation9], 24
    %v1611 = vld [vmem:[%s1610] sm:$0xff]
    %v1613 = vsel %vm1309, %v1385, 0
    %1615 = vmatprep.subr.mxu0 0.0
    %1616 = vmatpush1.msra.mxu0 0.0
    %1617 = vmatprep.subr.mxu0 0.0
    %1618 = vmatpush1.msra.mxu0 0.0
    %1619 = vmatprep.subr.mxu0 0.0
    %1620 = vmatpush1.msra.mxu0 0.0
    %1621 = vmatprep.subr.mxu0 0.0
    %1622 = vmatpush1.msra.mxu0 0.0
    %1623 = vmatprep.subr.mxu0 0.0
    %1624 = vmatpush1.msra.mxu0 0.0
    %1625 = vmatprep.subr.mxu0 0.0
    %1626 = vmatpush1.msra.mxu0 0.0
    %1627 = vmatprep.subr.mxu0 0.0
    %1628 = vmatpush1.msra.mxu0 0.0
    %1629 = vmatprep.subr.mxu0 0.0
    %1630 = vmatpush1.msra.mxu0 0.0
    %1631 = vmatprep.subr.mxu0 0.0
    %1632 = vmatpush1.msra.mxu0 0.0
    %1633 = vmatprep.subr.mxu0 0.0
    %1634 = vmatpush1.msra.mxu0 0.0
    %1635 = vmatprep.subr.mxu0 0.0
    %1636 = vmatpush1.msra.mxu0 0.0
    %1637 = vmatprep.subr.mxu0 0.0
    %1638 = vmatpush1.msra.mxu0 0.0
    %1639 = vmatprep.subr.mxu0 0.0
    %1640 = vmatpush1.msra.mxu0 0.0
    %1641 = vmatprep.subr.mxu0 0.0
    %1642 = vmatpush1.msra.mxu0 0.0
    %1643 = vmatprep.subr.mxu0 0.0
    %1644 = vmatpush1.msra.mxu0 0.0
    %1645 = vmatprep.subr.mxu0 0.0
    %1646 = vmatpush1.msra.mxu0 %v1611
    %1647 = vmatprep.subr.mxu0 0.0
    %1648 = vmatpush2.msra.mxu0 0.0
    %1649 = vmatprep.subr.mxu0 0.0
    %1650 = vmatpush2.msra.mxu0 0.0
    %1651 = vmatprep.subr.mxu0 0.0
    %1652 = vmatpush2.msra.mxu0 0.0
    %1653 = vmatprep.subr.mxu0 0.0
    %1654 = vmatpush2.msra.mxu0 0.0
    %1655 = vmatprep.subr.mxu0 0.0
    %1656 = vmatpush2.msra.mxu0 0.0
    %1657 = vmatprep.subr.mxu0 0.0
    %1658 = vmatpush2.msra.mxu0 0.0
    %1659 = vmatprep.subr.mxu0 0.0
    %1660 = vmatpush2.msra.mxu0 0.0
    %1661 = vmatprep.subr.mxu0 0.0
    %1662 = vmatpush2.msra.mxu0 0.0
    %1663 = vmatprep.subr.mxu0 0.0
    %1664 = vmatpush2.msra.mxu0 0.0
    %1665 = vmatprep.subr.mxu0 0.0
    %1666 = vmatpush2.msra.mxu0 0.0
    %1667 = vmatprep.subr.mxu0 0.0
    %1668 = vmatpush2.msra.mxu0 0.0
    %1669 = vmatprep.subr.mxu0 0.0
    %1670 = vmatpush2.msra.mxu0 0.0
    %1671 = vmatprep.subr.mxu0 0.0
    %1672 = vmatpush2.msra.mxu0 0.0
    %1673 = vmatprep.subr.mxu0 0.0
    %1674 = vmatpush2.msra.mxu0 0.0
    %1675 = vmatprep.subr.mxu0 0.0
    %1676 = vmatpush2.msra.mxu0 0.0
    %1677 = vmatprep.subr.mxu0 0.0
    %1678 = vmatpush2.msra.mxu0 0.0
    %1679 = vmatprep.mubr.f32.mxu0 0.0
    %1680 = vmatmul.mubr.f32.gmra.mxu0 %v1613
    %v1681 = vpop.f32.mrf.mxu0
    %v1682 = vadd.f32 0.0, %v1681
    %v1683 = vpop.f32.mrf.mxu0
    %1684 = vdwg.mxu0
    %1686 = vrot.lane.b32.xlu0 %v1532, 32
    %v1687 = vpop.permute.xlu0 %1686
    %1690 = vrot.lane.b32.xlu0 %v1607, 64
    %v1691 = vpop.permute.xlu0 %1690
    %1694 = vrot.lane.b32.xlu0 %v1682, 96
    %v1695 = vpop.permute.xlu0 %1694
    %vm1697 = vcmask 261120
    %v1698 = vsel %vm1697, %v1457, %v1687
    %vm1699 = vcmask 523264
    %v1700 = vsel %vm1699, %v1698, %v1691
    %vm1701 = vcmask 785408
    %v1702 = vsel %vm1701, %v1700, %v1695
    %v1703 = vcombine.high %v1325, %v1325
    %v1705 = vunpack.c.l.s4 1966171168
    %v1706 = vunpack.c.0.s8 %v1705
    %v1707 = vlaneseq
    %v1708 = vshrl.u32 %v1707, 7
    %v1709 = vsub.s32 %v1706, %v1708
    %v1710 = vrot.slane %v1325, %v1709
    %v1712 = vunpack.c.l.s4 1966171168
    %v1713 = vunpack.c.0.s8 %v1712
    %v1714 = vlaneseq
    %v1715 = vshrl.u32 %v1714, 7
    %v1716 = vsub.s32 %v1713, %v1715
    %v1717 = vrot.slane %v1703, %v1716
    %v1718 = vcombine.high %v1710, %v1710
    %v1719 = vcombine.high %v1717, %v1717
    %v1721 = vunpack.c.l.s4 1966171168
    %v1722 = vunpack.c.0.s8 %v1721
    %v1723 = vlaneseq
    %v1724 = vshrl.u32 %v1723, 7
    %v1725 = vsub.s32 %v1722, %v1724
    %v1726 = vrot.slane %v1710, %v1725
    %v1728 = vunpack.c.l.s4 1966171168
    %v1729 = vunpack.c.0.s8 %v1728
    %v1730 = vlaneseq
    %v1731 = vshrl.u32 %v1730, 7
    %v1732 = vsub.s32 %v1729, %v1731
    %v1733 = vrot.slane %v1717, %v1732
    %v1735 = vunpack.c.l.s4 1966171168
    %v1736 = vunpack.c.0.s8 %v1735
    %v1737 = vlaneseq
    %v1738 = vshrl.u32 %v1737, 7
    %v1739 = vsub.s32 %v1736, %v1738
    %v1740 = vrot.slane %v1718, %v1739
    %v1742 = vunpack.c.l.s4 1966171168
    %v1743 = vunpack.c.0.s8 %v1742
    %v1744 = vlaneseq
    %v1745 = vshrl.u32 %v1744, 7
    %v1746 = vsub.s32 %v1743, %v1745
    %v1747 = vrot.slane %v1719, %v1746
    %v1748 = vcombine.high %v1726, %v1726
    %v1749 = vcombine.high %v1733, %v1733
    %v1750 = vcombine.high %v1740, %v1740
    %v1751 = vcombine.high %v1747, %v1747
    %v1760 = vcombine.high %v1345, %v1345
    %v1762 = vunpack.c.l.s4 1966171168
    %v1763 = vunpack.c.0.s8 %v1762
    %v1764 = vlaneseq
    %v1765 = vshrl.u32 %v1764, 7
    %v1766 = vsub.s32 %v1763, %v1765
    %v1767 = vrot.slane %v1345, %v1766
    %v1769 = vunpack.c.l.s4 1966171168
    %v1770 = vunpack.c.0.s8 %v1769
    %v1771 = vlaneseq
    %v1772 = vshrl.u32 %v1771, 7
    %v1773 = vsub.s32 %v1770, %v1772
    %v1774 = vrot.slane %v1760, %v1773
    %v1775 = vcombine.high %v1767, %v1767
    %v1776 = vcombine.high %v1774, %v1774
    %v1778 = vunpack.c.l.s4 1966171168
    %v1779 = vunpack.c.0.s8 %v1778
    %v1780 = vlaneseq
    %v1781 = vshrl.u32 %v1780, 7
    %v1782 = vsub.s32 %v1779, %v1781
    %v1783 = vrot.slane %v1767, %v1782
    %v1785 = vunpack.c.l.s4 1966171168
    %v1786 = vunpack.c.0.s8 %v1785
    %v1787 = vlaneseq
    %v1788 = vshrl.u32 %v1787, 7
    %v1789 = vsub.s32 %v1786, %v1788
    %v1790 = vrot.slane %v1774, %v1789
    %v1792 = vunpack.c.l.s4 1966171168
    %v1793 = vunpack.c.0.s8 %v1792
    %v1794 = vlaneseq
    %v1795 = vshrl.u32 %v1794, 7
    %v1796 = vsub.s32 %v1793, %v1795
    %v1797 = vrot.slane %v1775, %v1796
    %v1799 = vunpack.c.l.s4 1966171168
    %v1800 = vunpack.c.0.s8 %v1799
    %v1801 = vlaneseq
    %v1802 = vshrl.u32 %v1801, 7
    %v1803 = vsub.s32 %v1800, %v1802
    %v1804 = vrot.slane %v1776, %v1803
    %v1805 = vcombine.high %v1783, %v1783
    %v1806 = vcombine.high %v1790, %v1790
    %v1807 = vcombine.high %v1797, %v1797
    %v1808 = vcombine.high %v1804, %v1804
    %v1809 = vcombine.high %v1365, %v1365
    %v1811 = vunpack.c.l.s4 1966171168
    %v1812 = vunpack.c.0.s8 %v1811
    %v1813 = vlaneseq
    %v1814 = vshrl.u32 %v1813, 7
    %v1815 = vsub.s32 %v1812, %v1814
    %v1816 = vrot.slane %v1365, %v1815
    %v1818 = vunpack.c.l.s4 1966171168
    %v1819 = vunpack.c.0.s8 %v1818
    %v1820 = vlaneseq
    %v1821 = vshrl.u32 %v1820, 7
    %v1822 = vsub.s32 %v1819, %v1821
    %v1823 = vrot.slane %v1809, %v1822
    %v1824 = vcombine.high %v1816, %v1816
    %v1825 = vcombine.high %v1823, %v1823
    %v1827 = vunpack.c.l.s4 1966171168
    %v1828 = vunpack.c.0.s8 %v1827
    %v1829 = vlaneseq
    %v1830 = vshrl.u32 %v1829, 7
    %v1831 = vsub.s32 %v1828, %v1830
    %v1832 = vrot.slane %v1816, %v1831
    %v1834 = vunpack.c.l.s4 1966171168
    %v1835 = vunpack.c.0.s8 %v1834
    %v1836 = vlaneseq
    %v1837 = vshrl.u32 %v1836, 7
    %v1838 = vsub.s32 %v1835, %v1837
    %v1839 = vrot.slane %v1823, %v1838
    %v1841 = vunpack.c.l.s4 1966171168
    %v1842 = vunpack.c.0.s8 %v1841
    %v1843 = vlaneseq
    %v1844 = vshrl.u32 %v1843, 7
    %v1845 = vsub.s32 %v1842, %v1844
    %v1846 = vrot.slane %v1824, %v1845
    %v1848 = vunpack.c.l.s4 1966171168
    %v1849 = vunpack.c.0.s8 %v1848
    %v1850 = vlaneseq
    %v1851 = vshrl.u32 %v1850, 7
    %v1852 = vsub.s32 %v1849, %v1851
    %v1853 = vrot.slane %v1825, %v1852
    %v1854 = vcombine.high %v1832, %v1832
    %v1855 = vcombine.high %v1839, %v1839
    %v1856 = vcombine.high %v1846, %v1846
    %v1857 = vcombine.high %v1853, %v1853
    %v1858 = vcombine.high %v1385, %v1385
    %v1860 = vunpack.c.l.s4 1966171168
    %v1861 = vunpack.c.0.s8 %v1860
    %v1862 = vlaneseq
    %v1863 = vshrl.u32 %v1862, 7
    %v1864 = vsub.s32 %v1861, %v1863
    %v1865 = vrot.slane %v1385, %v1864
    %v1867 = vunpack.c.l.s4 1966171168
    %v1868 = vunpack.c.0.s8 %v1867
    %v1869 = vlaneseq
    %v1870 = vshrl.u32 %v1869, 7
    %v1871 = vsub.s32 %v1868, %v1870
    %v1872 = vrot.slane %v1858, %v1871
    %v1873 = vcombine.high %v1865, %v1865
    %v1874 = vcombine.high %v1872, %v1872
    %v1876 = vunpack.c.l.s4 1966171168
    %v1877 = vunpack.c.0.s8 %v1876
    %v1878 = vlaneseq
    %v1879 = vshrl.u32 %v1878, 7
    %v1880 = vsub.s32 %v1877, %v1879
    %v1881 = vrot.slane %v1865, %v1880
    %v1883 = vunpack.c.l.s4 1966171168
    %v1884 = vunpack.c.0.s8 %v1883
    %v1885 = vlaneseq
    %v1886 = vshrl.u32 %v1885, 7
    %v1887 = vsub.s32 %v1884, %v1886
    %v1888 = vrot.slane %v1872, %v1887
    %v1890 = vunpack.c.l.s4 1966171168
    %v1891 = vunpack.c.0.s8 %v1890
    %v1892 = vlaneseq
    %v1893 = vshrl.u32 %v1892, 7
    %v1894 = vsub.s32 %v1891, %v1893
    %v1895 = vrot.slane %v1873, %v1894
    %v1897 = vunpack.c.l.s4 1966171168
    %v1898 = vunpack.c.0.s8 %v1897
    %v1899 = vlaneseq
    %v1900 = vshrl.u32 %v1899, 7
    %v1901 = vsub.s32 %v1898, %v1900
    %v1902 = vrot.slane %v1874, %v1901
    %v1903 = vcombine.high %v1881, %v1881
    %v1904 = vcombine.high %v1888, %v1888
    %v1905 = vcombine.high %v1895, %v1895
    %v1906 = vcombine.high %v1902, %v1902
    %v1907 = vlaneseq
    %v1908 = vshrl.u32 %v1907, 7
    %v1909 = vsub.s32 0, %v1908
    %v1910 = vrot.slane %v1783, %v1909
    %v1911 = vlaneseq
    %v1912 = vshrl.u32 %v1911, 7
    %v1913 = vsub.s32 0, %v1912
    %v1914 = vrot.slane %v1797, %v1913
    %v1915 = vlaneseq
    %v1916 = vshrl.u32 %v1915, 7
    %v1917 = vsub.s32 0, %v1916
    %v1918 = vrot.slane %v1805, %v1917
    %v1919 = vlaneseq
    %v1920 = vshrl.u32 %v1919, 7
    %v1921 = vsub.s32 0, %v1920
    %v1922 = vrot.slane %v1807, %v1921
    %v1923 = vlaneseq
    %v1924 = vshrl.u32 %v1923, 7
    %v1925 = vsub.s32 0, %v1924
    %v1926 = vrot.slane %v1790, %v1925
    %v1927 = vlaneseq
    %v1928 = vshrl.u32 %v1927, 7
    %v1929 = vsub.s32 0, %v1928
    %v1930 = vrot.slane %v1804, %v1929
    %v1931 = vlaneseq
    %v1932 = vshrl.u32 %v1931, 7
    %v1933 = vsub.s32 0, %v1932
    %v1934 = vrot.slane %v1806, %v1933
    %v1935 = vlaneseq
    %v1936 = vshrl.u32 %v1935, 7
    %v1937 = vsub.s32 0, %v1936
    %v1938 = vrot.slane %v1808, %v1937
    %v1947 = vlaneseq
    %v1948 = vshrl.u32 %v1947, 7
    %v1949 = vsub.s32 0, %v1948
    %v1950 = vrot.slane %v1832, %v1949
    %v1951 = vlaneseq
    %v1952 = vshrl.u32 %v1951, 7
    %v1953 = vsub.s32 0, %v1952
    %v1954 = vrot.slane %v1846, %v1953
    %v1955 = vlaneseq
    %v1956 = vshrl.u32 %v1955, 7
    %v1957 = vsub.s32 0, %v1956
    %v1958 = vrot.slane %v1854, %v1957
    %v1959 = vlaneseq
    %v1960 = vshrl.u32 %v1959, 7
    %v1961 = vsub.s32 0, %v1960
    %v1962 = vrot.slane %v1856, %v1961
    %v1963 = vlaneseq
    %v1964 = vshrl.u32 %v1963, 7
    %v1965 = vsub.s32 0, %v1964
    %v1966 = vrot.slane %v1839, %v1965
    %v1967 = vlaneseq
    %v1968 = vshrl.u32 %v1967, 7
    %v1969 = vsub.s32 0, %v1968
    %v1970 = vrot.slane %v1853, %v1969
    %v1971 = vlaneseq
    %v1972 = vshrl.u32 %v1971, 7
    %v1973 = vsub.s32 0, %v1972
    %v1974 = vrot.slane %v1855, %v1973
    %v1975 = vlaneseq
    %v1976 = vshrl.u32 %v1975, 7
    %v1977 = vsub.s32 0, %v1976
    %v1978 = vrot.slane %v1857, %v1977
    %v1987 = vlaneseq
    %v1988 = vshrl.u32 %v1987, 7
    %v1989 = vsub.s32 0, %v1988
    %v1990 = vrot.slane %v1881, %v1989
    %v1991 = vlaneseq
    %v1992 = vshrl.u32 %v1991, 7
    %v1993 = vsub.s32 0, %v1992
    %v1994 = vrot.slane %v1895, %v1993
    %v1995 = vlaneseq
    %v1996 = vshrl.u32 %v1995, 7
    %v1997 = vsub.s32 0, %v1996
    %v1998 = vrot.slane %v1903, %v1997
    %v1999 = vlaneseq
    %v2000 = vshrl.u32 %v1999, 7
    %v2001 = vsub.s32 0, %v2000
    %v2002 = vrot.slane %v1905, %v2001
    %v2003 = vlaneseq
    %v2004 = vshrl.u32 %v2003, 7
    %v2005 = vsub.s32 0, %v2004
    %v2006 = vrot.slane %v1888, %v2005
    %v2007 = vlaneseq
    %v2008 = vshrl.u32 %v2007, 7
    %v2009 = vsub.s32 0, %v2008
    %v2010 = vrot.slane %v1902, %v2009
    %v2011 = vlaneseq
    %v2012 = vshrl.u32 %v2011, 7
    %v2013 = vsub.s32 0, %v2012
    %v2014 = vrot.slane %v1904, %v2013
    %v2015 = vlaneseq
    %v2016 = vshrl.u32 %v2015, 7
    %v2017 = vsub.s32 0, %v2016
    %v2018 = vrot.slane %v1906, %v2017
    %vm2027 = vcmask 1040384
    %v2028 = vsel %vm2027, %v1726, %v1910
    %v2029 = vsel %vm2027, %v1740, %v1914
    %v2030 = vsel %vm2027, %v1748, %v1918
    %v2031 = vsel %vm2027, %v1750, %v1922
    %v2032 = vsel %vm2027, %v1733, %v1926
    %v2033 = vsel %vm2027, %v1747, %v1930
    %v2034 = vsel %vm2027, %v1749, %v1934
    %v2035 = vsel %vm2027, %v1751, %v1938
    %vm2036 = vcmask 1041408
    %v2037 = vsel %vm2036, %v2028, %v1950
    %v2038 = vsel %vm2036, %v2029, %v1954
    %v2039 = vsel %vm2036, %v2030, %v1958
    %v2040 = vsel %vm2036, %v2031, %v1962
    %v2041 = vsel %vm2036, %v2032, %v1966
    %v2042 = vsel %vm2036, %v2033, %v1970
    %v2043 = vsel %vm2036, %v2034, %v1974
    %v2044 = vsel %vm2036, %v2035, %v1978
    %vm2045 = vcmask 1042432
    %v2046 = vsel %vm2045, %v2037, %v1990
    %v2047 = vsel %vm2045, %v2038, %v1994
    %v2048 = vsel %vm2045, %v2039, %v1998
    %v2049 = vsel %vm2045, %v2040, %v2002
    %v2050 = vsel %vm2045, %v2041, %v2006
    %v2051 = vsel %vm2045, %v2042, %v2010
    %v2052 = vsel %vm2045, %v2043, %v2014
    %v2053 = vsel %vm2045, %v2044, %v2018
    %v2054 = vld [vmem:[#allocation8] sm:$0xff]
    %v2055 = vld [vmem:[#allocation8 + $0x8] sm:$0xff]
    %v2056 = vld [vmem:[#allocation8 + $0x10] sm:$0xff]
    %v2057 = vld [vmem:[#allocation8 + $0x18] sm:$0xff]
    %v2058 = vld [vmem:[#allocation8 + $0x20] sm:$0xff]
    %v2059 = vld [vmem:[#allocation8 + $0x28] sm:$0xff]
    %v2060 = vld [vmem:[#allocation8 + $0x30] sm:$0xff]
    %v2061 = vld [vmem:[#allocation8 + $0x38] sm:$0xff]
    %v2063 = vsel %vm1309, %v2046, 0
    %v2066 = vsel %vm1309, %v2054, 0
    %2068 = vmatprep.subr.mxu0 0.0
    %2069 = vmatpush1.xpose.msra.mxu0 0.0
    %2070 = vmatprep.subr.mxu0 0.0
    %2071 = vmatpush1.xpose.msra.mxu0 0.0
    %2072 = vmatprep.subr.mxu0 0.0
    %2073 = vmatpush1.xpose.msra.mxu0 0.0
    %2074 = vmatprep.subr.mxu0 0.0
    %2075 = vmatpush1.xpose.msra.mxu0 0.0
    %2076 = vmatprep.subr.mxu0 0.0
    %2077 = vmatpush1.xpose.msra.mxu0 0.0
    %2078 = vmatprep.subr.mxu0 0.0
    %2079 = vmatpush1.xpose.msra.mxu0 0.0
    %2080 = vmatprep.subr.mxu0 0.0
    %2081 = vmatpush1.xpose.msra.mxu0 0.0
    %2082 = vmatprep.subr.mxu0 0.0
    %2083 = vmatpush1.xpose.msra.mxu0 0.0
    %2084 = vmatprep.subr.mxu0 0.0
    %2085 = vmatpush1.xpose.msra.mxu0 0.0
    %2086 = vmatprep.subr.mxu0 0.0
    %2087 = vmatpush1.xpose.msra.mxu0 0.0
    %2088 = vmatprep.subr.mxu0 0.0
    %2089 = vmatpush1.xpose.msra.mxu0 0.0
    %2090 = vmatprep.subr.mxu0 0.0
    %2091 = vmatpush1.xpose.msra.mxu0 0.0
    %2092 = vmatprep.subr.mxu0 0.0
    %2093 = vmatpush1.xpose.msra.mxu0 0.0
    %2094 = vmatprep.subr.mxu0 0.0
    %2095 = vmatpush1.xpose.msra.mxu0 0.0
    %2096 = vmatprep.subr.mxu0 0.0
    %2097 = vmatpush1.xpose.msra.mxu0 0.0
    %2098 = vmatprep.subr.mxu0 0.0
    %2099 = vmatpush1.xpose.msra.mxu0 %v2066
    %2100 = vmatprep.subr.mxu0 0.0
    %2101 = vmatpush2.xpose.msra.mxu0 0.0
    %2102 = vmatprep.subr.mxu0 0.0
    %2103 = vmatpush2.xpose.msra.mxu0 0.0
    %2104 = vmatprep.subr.mxu0 0.0
    %2105 = vmatpush2.xpose.msra.mxu0 0.0
    %2106 = vmatprep.subr.mxu0 0.0
    %2107 = vmatpush2.xpose.msra.mxu0 0.0
    %2108 = vmatprep.subr.mxu0 0.0
    %2109 = vmatpush2.xpose.msra.mxu0 0.0
    %2110 = vmatprep.subr.mxu0 0.0
    %2111 = vmatpush2.xpose.msra.mxu0 0.0
    %2112 = vmatprep.subr.mxu0 0.0
    %2113 = vmatpush2.xpose.msra.mxu0 0.0
    %2114 = vmatprep.subr.mxu0 0.0
    %2115 = vmatpush2.xpose.msra.mxu0 0.0
    %2116 = vmatprep.subr.mxu0 0.0
    %2117 = vmatpush2.xpose.msra.mxu0 0.0
    %2118 = vmatprep.subr.mxu0 0.0
    %2119 = vmatpush2.xpose.msra.mxu0 0.0
    %2120 = vmatprep.subr.mxu0 0.0
    %2121 = vmatpush2.xpose.msra.mxu0 0.0
    %2122 = vmatprep.subr.mxu0 0.0
    %2123 = vmatpush2.xpose.msra.mxu0 0.0
    %2124 = vmatprep.subr.mxu0 0.0
    %2125 = vmatpush2.xpose.msra.mxu0 0.0
    %2126 = vmatprep.subr.mxu0 0.0
    %2127 = vmatpush2.xpose.msra.mxu0 0.0
    %2128 = vmatprep.subr.mxu0 0.0
    %2129 = vmatpush2.xpose.msra.mxu0 0.0
    %2130 = vmatprep.subr.mxu0 0.0
    %2131 = vmatpush2.xpose.msra.mxu0 0.0
    %2132 = vmatprep.mubr.f32.mxu0 0.0
    %2133 = vmatmul.mubr.f32.gmra.mxu0 %v2063
    %v2134 = vpop.f32.mrf.mxu0
    %v2135 = vadd.f32 0.0, %v2134
    %v2136 = vpop.f32.mrf.mxu0
    %2137 = vdwg.mxu0
    %v2139 = vsel %vm1309, %v2047, 0
    %v2142 = vsel %vm1309, %v2055, 0
    %2144 = vmatprep.subr.mxu0 0.0
    %2145 = vmatpush1.xpose.msra.mxu0 0.0
    %2146 = vmatprep.subr.mxu0 0.0
    %2147 = vmatpush1.xpose.msra.mxu0 0.0
    %2148 = vmatprep.subr.mxu0 0.0
    %2149 = vmatpush1.xpose.msra.mxu0 0.0
    %2150 = vmatprep.subr.mxu0 0.0
    %2151 = vmatpush1.xpose.msra.mxu0 0.0
    %2152 = vmatprep.subr.mxu0 0.0
    %2153 = vmatpush1.xpose.msra.mxu0 0.0
    %2154 = vmatprep.subr.mxu0 0.0
    %2155 = vmatpush1.xpose.msra.mxu0 0.0
    %2156 = vmatprep.subr.mxu0 0.0
    %2157 = vmatpush1.xpose.msra.mxu0 0.0
    %2158 = vmatprep.subr.mxu0 0.0
    %2159 = vmatpush1.xpose.msra.mxu0 0.0
    %2160 = vmatprep.subr.mxu0 0.0
    %2161 = vmatpush1.xpose.msra.mxu0 0.0
    %2162 = vmatprep.subr.mxu0 0.0
    %2163 = vmatpush1.xpose.msra.mxu0 0.0
    %2164 = vmatprep.subr.mxu0 0.0
    %2165 = vmatpush1.xpose.msra.mxu0 0.0
    %2166 = vmatprep.subr.mxu0 0.0
    %2167 = vmatpush1.xpose.msra.mxu0 0.0
    %2168 = vmatprep.subr.mxu0 0.0
    %2169 = vmatpush1.xpose.msra.mxu0 0.0
    %2170 = vmatprep.subr.mxu0 0.0
    %2171 = vmatpush1.xpose.msra.mxu0 0.0
    %2172 = vmatprep.subr.mxu0 0.0
    %2173 = vmatpush1.xpose.msra.mxu0 0.0
    %2174 = vmatprep.subr.mxu0 0.0
    %2175 = vmatpush1.xpose.msra.mxu0 %v2142
    %2176 = vmatprep.subr.mxu0 0.0
    %2177 = vmatpush2.xpose.msra.mxu0 0.0
    %2178 = vmatprep.subr.mxu0 0.0
    %2179 = vmatpush2.xpose.msra.mxu0 0.0
    %2180 = vmatprep.subr.mxu0 0.0
    %2181 = vmatpush2.xpose.msra.mxu0 0.0
    %2182 = vmatprep.subr.mxu0 0.0
    %2183 = vmatpush2.xpose.msra.mxu0 0.0
    %2184 = vmatprep.subr.mxu0 0.0
    %2185 = vmatpush2.xpose.msra.mxu0 0.0
    %2186 = vmatprep.subr.mxu0 0.0
    %2187 = vmatpush2.xpose.msra.mxu0 0.0
    %2188 = vmatprep.subr.mxu0 0.0
    %2189 = vmatpush2.xpose.msra.mxu0 0.0
    %2190 = vmatprep.subr.mxu0 0.0
    %2191 = vmatpush2.xpose.msra.mxu0 0.0
    %2192 = vmatprep.subr.mxu0 0.0
    %2193 = vmatpush2.xpose.msra.mxu0 0.0
    %2194 = vmatprep.subr.mxu0 0.0
    %2195 = vmatpush2.xpose.msra.mxu0 0.0
    %2196 = vmatprep.subr.mxu0 0.0
    %2197 = vmatpush2.xpose.msra.mxu0 0.0
    %2198 = vmatprep.subr.mxu0 0.0
    %2199 = vmatpush2.xpose.msra.mxu0 0.0
    %2200 = vmatprep.subr.mxu0 0.0
    %2201 = vmatpush2.xpose.msra.mxu0 0.0
    %2202 = vmatprep.subr.mxu0 0.0
    %2203 = vmatpush2.xpose.msra.mxu0 0.0
    %2204 = vmatprep.subr.mxu0 0.0
    %2205 = vmatpush2.xpose.msra.mxu0 0.0
    %2206 = vmatprep.subr.mxu0 0.0
    %2207 = vmatpush2.xpose.msra.mxu0 0.0
    %2208 = vmatprep.mubr.f32.mxu0 0.0
    %2209 = vmatmul.mubr.f32.gmra.mxu0 %v2139
    %v2210 = vpop.f32.mrf.mxu0
    %v2211 = vadd.f32 0.0, %v2210
    %v2212 = vpop.f32.mrf.mxu0
    %2213 = vdwg.mxu0
    %v2215 = vsel %vm1309, %v2048, 0
    %v2218 = vsel %vm1309, %v2056, 0
    %2220 = vmatprep.subr.mxu0 0.0
    %2221 = vmatpush1.xpose.msra.mxu0 0.0
    %2222 = vmatprep.subr.mxu0 0.0
    %2223 = vmatpush1.xpose.msra.mxu0 0.0
    %2224 = vmatprep.subr.mxu0 0.0
    %2225 = vmatpush1.xpose.msra.mxu0 0.0
    %2226 = vmatprep.subr.mxu0 0.0
    %2227 = vmatpush1.xpose.msra.mxu0 0.0
    %2228 = vmatprep.subr.mxu0 0.0
    %2229 = vmatpush1.xpose.msra.mxu0 0.0
    %2230 = vmatprep.subr.mxu0 0.0
    %2231 = vmatpush1.xpose.msra.mxu0 0.0
    %2232 = vmatprep.subr.mxu0 0.0
    %2233 = vmatpush1.xpose.msra.mxu0 0.0
    %2234 = vmatprep.subr.mxu0 0.0
    %2235 = vmatpush1.xpose.msra.mxu0 0.0
    %2236 = vmatprep.subr.mxu0 0.0
    %2237 = vmatpush1.xpose.msra.mxu0 0.0
    %2238 = vmatprep.subr.mxu0 0.0
    %2239 = vmatpush1.xpose.msra.mxu0 0.0
    %2240 = vmatprep.subr.mxu0 0.0
    %2241 = vmatpush1.xpose.msra.mxu0 0.0
    %2242 = vmatprep.subr.mxu0 0.0
    %2243 = vmatpush1.xpose.msra.mxu0 0.0
    %2244 = vmatprep.subr.mxu0 0.0
    %2245 = vmatpush1.xpose.msra.mxu0 0.0
    %2246 = vmatprep.subr.mxu0 0.0
    %2247 = vmatpush1.xpose.msra.mxu0 0.0
    %2248 = vmatprep.subr.mxu0 0.0
    %2249 = vmatpush1.xpose.msra.mxu0 0.0
    %2250 = vmatprep.subr.mxu0 0.0
    %2251 = vmatpush1.xpose.msra.mxu0 %v2218
    %2252 = vmatprep.subr.mxu0 0.0
    %2253 = vmatpush2.xpose.msra.mxu0 0.0
    %2254 = vmatprep.subr.mxu0 0.0
    %2255 = vmatpush2.xpose.msra.mxu0 0.0
    %2256 = vmatprep.subr.mxu0 0.0
    %2257 = vmatpush2.xpose.msra.mxu0 0.0
    %2258 = vmatprep.subr.mxu0 0.0
    %2259 = vmatpush2.xpose.msra.mxu0 0.0
    %2260 = vmatprep.subr.mxu0 0.0
    %2261 = vmatpush2.xpose.msra.mxu0 0.0
    %2262 = vmatprep.subr.mxu0 0.0
    %2263 = vmatpush2.xpose.msra.mxu0 0.0
    %2264 = vmatprep.subr.mxu0 0.0
    %2265 = vmatpush2.xpose.msra.mxu0 0.0
    %2266 = vmatprep.subr.mxu0 0.0
    %2267 = vmatpush2.xpose.msra.mxu0 0.0
    %2268 = vmatprep.subr.mxu0 0.0
    %2269 = vmatpush2.xpose.msra.mxu0 0.0
    %2270 = vmatprep.subr.mxu0 0.0
    %2271 = vmatpush2.xpose.msra.mxu0 0.0
    %2272 = vmatprep.subr.mxu0 0.0
    %2273 = vmatpush2.xpose.msra.mxu0 0.0
    %2274 = vmatprep.subr.mxu0 0.0
    %2275 = vmatpush2.xpose.msra.mxu0 0.0
    %2276 = vmatprep.subr.mxu0 0.0
    %2277 = vmatpush2.xpose.msra.mxu0 0.0
    %2278 = vmatprep.subr.mxu0 0.0
    %2279 = vmatpush2.xpose.msra.mxu0 0.0
    %2280 = vmatprep.subr.mxu0 0.0
    %2281 = vmatpush2.xpose.msra.mxu0 0.0
    %2282 = vmatprep.subr.mxu0 0.0
    %2283 = vmatpush2.xpose.msra.mxu0 0.0
    %2284 = vmatprep.mubr.f32.mxu0 0.0
    %2285 = vmatmul.mubr.f32.gmra.mxu0 %v2215
    %v2286 = vpop.f32.mrf.mxu0
    %v2287 = vadd.f32 0.0, %v2286
    %v2288 = vpop.f32.mrf.mxu0
    %2289 = vdwg.mxu0
    %v2291 = vsel %vm1309, %v2049, 0
    %v2294 = vsel %vm1309, %v2057, 0
    %2296 = vmatprep.subr.mxu0 0.0
    %2297 = vmatpush1.xpose.msra.mxu0 0.0
    %2298 = vmatprep.subr.mxu0 0.0
    %2299 = vmatpush1.xpose.msra.mxu0 0.0
    %2300 = vmatprep.subr.mxu0 0.0
    %2301 = vmatpush1.xpose.msra.mxu0 0.0
    %2302 = vmatprep.subr.mxu0 0.0
    %2303 = vmatpush1.xpose.msra.mxu0 0.0
    %2304 = vmatprep.subr.mxu0 0.0
    %2305 = vmatpush1.xpose.msra.mxu0 0.0
    %2306 = vmatprep.subr.mxu0 0.0
    %2307 = vmatpush1.xpose.msra.mxu0 0.0
    %2308 = vmatprep.subr.mxu0 0.0
    %2309 = vmatpush1.xpose.msra.mxu0 0.0
    %2310 = vmatprep.subr.mxu0 0.0
    %2311 = vmatpush1.xpose.msra.mxu0 0.0
    %2312 = vmatprep.subr.mxu0 0.0
    %2313 = vmatpush1.xpose.msra.mxu0 0.0
    %2314 = vmatprep.subr.mxu0 0.0
    %2315 = vmatpush1.xpose.msra.mxu0 0.0
    %2316 = vmatprep.subr.mxu0 0.0
    %2317 = vmatpush1.xpose.msra.mxu0 0.0
    %2318 = vmatprep.subr.mxu0 0.0
    %2319 = vmatpush1.xpose.msra.mxu0 0.0
    %2320 = vmatprep.subr.mxu0 0.0
    %2321 = vmatpush1.xpose.msra.mxu0 0.0
    %2322 = vmatprep.subr.mxu0 0.0
    %2323 = vmatpush1.xpose.msra.mxu0 0.0
    %2324 = vmatprep.subr.mxu0 0.0
    %2325 = vmatpush1.xpose.msra.mxu0 0.0
    %2326 = vmatprep.subr.mxu0 0.0
    %2327 = vmatpush1.xpose.msra.mxu0 %v2294
    %2328 = vmatprep.subr.mxu0 0.0
    %2329 = vmatpush2.xpose.msra.mxu0 0.0
    %2330 = vmatprep.subr.mxu0 0.0
    %2331 = vmatpush2.xpose.msra.mxu0 0.0
    %2332 = vmatprep.subr.mxu0 0.0
    %2333 = vmatpush2.xpose.msra.mxu0 0.0
    %2334 = vmatprep.subr.mxu0 0.0
    %2335 = vmatpush2.xpose.msra.mxu0 0.0
    %2336 = vmatprep.subr.mxu0 0.0
    %2337 = vmatpush2.xpose.msra.mxu0 0.0
    %2338 = vmatprep.subr.mxu0 0.0
    %2339 = vmatpush2.xpose.msra.mxu0 0.0
    %2340 = vmatprep.subr.mxu0 0.0
    %2341 = vmatpush2.xpose.msra.mxu0 0.0
    %2342 = vmatprep.subr.mxu0 0.0
    %2343 = vmatpush2.xpose.msra.mxu0 0.0
    %2344 = vmatprep.subr.mxu0 0.0
    %2345 = vmatpush2.xpose.msra.mxu0 0.0
    %2346 = vmatprep.subr.mxu0 0.0
    %2347 = vmatpush2.xpose.msra.mxu0 0.0
    %2348 = vmatprep.subr.mxu0 0.0
    %2349 = vmatpush2.xpose.msra.mxu0 0.0
    %2350 = vmatprep.subr.mxu0 0.0
    %2351 = vmatpush2.xpose.msra.mxu0 0.0
    %2352 = vmatprep.subr.mxu0 0.0
    %2353 = vmatpush2.xpose.msra.mxu0 0.0
    %2354 = vmatprep.subr.mxu0 0.0
    %2355 = vmatpush2.xpose.msra.mxu0 0.0
    %2356 = vmatprep.subr.mxu0 0.0
    %2357 = vmatpush2.xpose.msra.mxu0 0.0
    %2358 = vmatprep.subr.mxu0 0.0
    %2359 = vmatpush2.xpose.msra.mxu0 0.0
    %2360 = vmatprep.mubr.f32.mxu0 0.0
    %2361 = vmatmul.mubr.f32.gmra.mxu0 %v2291
    %v2362 = vpop.f32.mrf.mxu0
    %v2363 = vadd.f32 0.0, %v2362
    %v2364 = vpop.f32.mrf.mxu0
    %2365 = vdwg.mxu0
    %v2367 = vsel %vm1309, %v2050, 0
    %v2370 = vsel %vm1309, %v2058, 0
    %2372 = vmatprep.subr.mxu0 0.0
    %2373 = vmatpush1.xpose.msra.mxu0 0.0
    %2374 = vmatprep.subr.mxu0 0.0
    %2375 = vmatpush1.xpose.msra.mxu0 0.0
    %2376 = vmatprep.subr.mxu0 0.0
    %2377 = vmatpush1.xpose.msra.mxu0 0.0
    %2378 = vmatprep.subr.mxu0 0.0
    %2379 = vmatpush1.xpose.msra.mxu0 0.0
    %2380 = vmatprep.subr.mxu0 0.0
    %2381 = vmatpush1.xpose.msra.mxu0 0.0
    %2382 = vmatprep.subr.mxu0 0.0
    %2383 = vmatpush1.xpose.msra.mxu0 0.0
    %2384 = vmatprep.subr.mxu0 0.0
    %2385 = vmatpush1.xpose.msra.mxu0 0.0
    %2386 = vmatprep.subr.mxu0 0.0
    %2387 = vmatpush1.xpose.msra.mxu0 0.0
    %2388 = vmatprep.subr.mxu0 0.0
    %2389 = vmatpush1.xpose.msra.mxu0 0.0
    %2390 = vmatprep.subr.mxu0 0.0
    %2391 = vmatpush1.xpose.msra.mxu0 0.0
    %2392 = vmatprep.subr.mxu0 0.0
    %2393 = vmatpush1.xpose.msra.mxu0 0.0
    %2394 = vmatprep.subr.mxu0 0.0
    %2395 = vmatpush1.xpose.msra.mxu0 0.0
    %2396 = vmatprep.subr.mxu0 0.0
    %2397 = vmatpush1.xpose.msra.mxu0 0.0
    %2398 = vmatprep.subr.mxu0 0.0
    %2399 = vmatpush1.xpose.msra.mxu0 0.0
    %2400 = vmatprep.subr.mxu0 0.0
    %2401 = vmatpush1.xpose.msra.mxu0 0.0
    %2402 = vmatprep.subr.mxu0 0.0
    %2403 = vmatpush1.xpose.msra.mxu0 %v2370
    %2404 = vmatprep.subr.mxu0 0.0
    %2405 = vmatpush2.xpose.msra.mxu0 0.0
    %2406 = vmatprep.subr.mxu0 0.0
    %2407 = vmatpush2.xpose.msra.mxu0 0.0
    %2408 = vmatprep.subr.mxu0 0.0
    %2409 = vmatpush2.xpose.msra.mxu0 0.0
    %2410 = vmatprep.subr.mxu0 0.0
    %2411 = vmatpush2.xpose.msra.mxu0 0.0
    %2412 = vmatprep.subr.mxu0 0.0
    %2413 = vmatpush2.xpose.msra.mxu0 0.0
    %2414 = vmatprep.subr.mxu0 0.0
    %2415 = vmatpush2.xpose.msra.mxu0 0.0
    %2416 = vmatprep.subr.mxu0 0.0
    %2417 = vmatpush2.xpose.msra.mxu0 0.0
    %2418 = vmatprep.subr.mxu0 0.0
    %2419 = vmatpush2.xpose.msra.mxu0 0.0
    %2420 = vmatprep.subr.mxu0 0.0
    %2421 = vmatpush2.xpose.msra.mxu0 0.0
    %2422 = vmatprep.subr.mxu0 0.0
    %2423 = vmatpush2.xpose.msra.mxu0 0.0
    %2424 = vmatprep.subr.mxu0 0.0
    %2425 = vmatpush2.xpose.msra.mxu0 0.0
    %2426 = vmatprep.subr.mxu0 0.0
    %2427 = vmatpush2.xpose.msra.mxu0 0.0
    %2428 = vmatprep.subr.mxu0 0.0
    %2429 = vmatpush2.xpose.msra.mxu0 0.0
    %2430 = vmatprep.subr.mxu0 0.0
    %2431 = vmatpush2.xpose.msra.mxu0 0.0
    %2432 = vmatprep.subr.mxu0 0.0
    %2433 = vmatpush2.xpose.msra.mxu0 0.0
    %2434 = vmatprep.subr.mxu0 0.0
    %2435 = vmatpush2.xpose.msra.mxu0 0.0
    %2436 = vmatprep.mubr.f32.mxu0 0.0
    %2437 = vmatmul.mubr.f32.gmra.mxu0 %v2367
    %v2438 = vpop.f32.mrf.mxu0
    %v2439 = vadd.f32 0.0, %v2438
    %v2440 = vpop.f32.mrf.mxu0
    %2441 = vdwg.mxu0
    %v2443 = vsel %vm1309, %v2051, 0
    %v2446 = vsel %vm1309, %v2059, 0
    %2448 = vmatprep.subr.mxu0 0.0
    %2449 = vmatpush1.xpose.msra.mxu0 0.0
    %2450 = vmatprep.subr.mxu0 0.0
    %2451 = vmatpush1.xpose.msra.mxu0 0.0
    %2452 = vmatprep.subr.mxu0 0.0
    %2453 = vmatpush1.xpose.msra.mxu0 0.0
    %2454 = vmatprep.subr.mxu0 0.0
    %2455 = vmatpush1.xpose.msra.mxu0 0.0
    %2456 = vmatprep.subr.mxu0 0.0
    %2457 = vmatpush1.xpose.msra.mxu0 0.0
    %2458 = vmatprep.subr.mxu0 0.0
    %2459 = vmatpush1.xpose.msra.mxu0 0.0
    %2460 = vmatprep.subr.mxu0 0.0
    %2461 = vmatpush1.xpose.msra.mxu0 0.0
    %2462 = vmatprep.subr.mxu0 0.0
    %2463 = vmatpush1.xpose.msra.mxu0 0.0
    %2464 = vmatprep.subr.mxu0 0.0
    %2465 = vmatpush1.xpose.msra.mxu0 0.0
    %2466 = vmatprep.subr.mxu0 0.0
    %2467 = vmatpush1.xpose.msra.mxu0 0.0
    %2468 = vmatprep.subr.mxu0 0.0
    %2469 = vmatpush1.xpose.msra.mxu0 0.0
    %2470 = vmatprep.subr.mxu0 0.0
    %2471 = vmatpush1.xpose.msra.mxu0 0.0
    %2472 = vmatprep.subr.mxu0 0.0
    %2473 = vmatpush1.xpose.msra.mxu0 0.0
    %2474 = vmatprep.subr.mxu0 0.0
    %2475 = vmatpush1.xpose.msra.mxu0 0.0
    %2476 = vmatprep.subr.mxu0 0.0
    %2477 = vmatpush1.xpose.msra.mxu0 0.0
    %2478 = vmatprep.subr.mxu0 0.0
    %2479 = vmatpush1.xpose.msra.mxu0 %v2446
    %2480 = vmatprep.subr.mxu0 0.0
    %2481 = vmatpush2.xpose.msra.mxu0 0.0
    %2482 = vmatprep.subr.mxu0 0.0
    %2483 = vmatpush2.xpose.msra.mxu0 0.0
    %2484 = vmatprep.subr.mxu0 0.0
    %2485 = vmatpush2.xpose.msra.mxu0 0.0
    %2486 = vmatprep.subr.mxu0 0.0
    %2487 = vmatpush2.xpose.msra.mxu0 0.0
    %2488 = vmatprep.subr.mxu0 0.0
    %2489 = vmatpush2.xpose.msra.mxu0 0.0
    %2490 = vmatprep.subr.mxu0 0.0
    %2491 = vmatpush2.xpose.msra.mxu0 0.0
    %2492 = vmatprep.subr.mxu0 0.0
    %2493 = vmatpush2.xpose.msra.mxu0 0.0
    %2494 = vmatprep.subr.mxu0 0.0
    %2495 = vmatpush2.xpose.msra.mxu0 0.0
    %2496 = vmatprep.subr.mxu0 0.0
    %2497 = vmatpush2.xpose.msra.mxu0 0.0
    %2498 = vmatprep.subr.mxu0 0.0
    %2499 = vmatpush2.xpose.msra.mxu0 0.0
    %2500 = vmatprep.subr.mxu0 0.0
    %2501 = vmatpush2.xpose.msra.mxu0 0.0
    %2502 = vmatprep.subr.mxu0 0.0
    %2503 = vmatpush2.xpose.msra.mxu0 0.0
    %2504 = vmatprep.subr.mxu0 0.0
    %2505 = vmatpush2.xpose.msra.mxu0 0.0
    %2506 = vmatprep.subr.mxu0 0.0
    %2507 = vmatpush2.xpose.msra.mxu0 0.0
    %2508 = vmatprep.subr.mxu0 0.0
    %2509 = vmatpush2.xpose.msra.mxu0 0.0
    %2510 = vmatprep.subr.mxu0 0.0
    %2511 = vmatpush2.xpose.msra.mxu0 0.0
    %2512 = vmatprep.mubr.f32.mxu0 0.0
    %2513 = vmatmul.mubr.f32.gmra.mxu0 %v2443
    %v2514 = vpop.f32.mrf.mxu0
    %v2515 = vadd.f32 0.0, %v2514
    %v2516 = vpop.f32.mrf.mxu0
    %2517 = vdwg.mxu0
    %v2519 = vsel %vm1309, %v2052, 0
    %v2522 = vsel %vm1309, %v2060, 0
    %2524 = vmatprep.subr.mxu0 0.0
    %2525 = vmatpush1.xpose.msra.mxu0 0.0
    %2526 = vmatprep.subr.mxu0 0.0
    %2527 = vmatpush1.xpose.msra.mxu0 0.0
    %2528 = vmatprep.subr.mxu0 0.0
    %2529 = vmatpush1.xpose.msra.mxu0 0.0
    %2530 = vmatprep.subr.mxu0 0.0
    %2531 = vmatpush1.xpose.msra.mxu0 0.0
    %2532 = vmatprep.subr.mxu0 0.0
    %2533 = vmatpush1.xpose.msra.mxu0 0.0
    %2534 = vmatprep.subr.mxu0 0.0
    %2535 = vmatpush1.xpose.msra.mxu0 0.0
    %2536 = vmatprep.subr.mxu0 0.0
    %2537 = vmatpush1.xpose.msra.mxu0 0.0
    %2538 = vmatprep.subr.mxu0 0.0
    %2539 = vmatpush1.xpose.msra.mxu0 0.0
    %2540 = vmatprep.subr.mxu0 0.0
    %2541 = vmatpush1.xpose.msra.mxu0 0.0
    %2542 = vmatprep.subr.mxu0 0.0
    %2543 = vmatpush1.xpose.msra.mxu0 0.0
    %2544 = vmatprep.subr.mxu0 0.0
    %2545 = vmatpush1.xpose.msra.mxu0 0.0
    %2546 = vmatprep.subr.mxu0 0.0
    %2547 = vmatpush1.xpose.msra.mxu0 0.0
    %2548 = vmatprep.subr.mxu0 0.0
    %2549 = vmatpush1.xpose.msra.mxu0 0.0
    %2550 = vmatprep.subr.mxu0 0.0
    %2551 = vmatpush1.xpose.msra.mxu0 0.0
    %2552 = vmatprep.subr.mxu0 0.0
    %2553 = vmatpush1.xpose.msra.mxu0 0.0
    %2554 = vmatprep.subr.mxu0 0.0
    %2555 = vmatpush1.xpose.msra.mxu0 %v2522
    %2556 = vmatprep.subr.mxu0 0.0
    %2557 = vmatpush2.xpose.msra.mxu0 0.0
    %2558 = vmatprep.subr.mxu0 0.0
    %2559 = vmatpush2.xpose.msra.mxu0 0.0
    %2560 = vmatprep.subr.mxu0 0.0
    %2561 = vmatpush2.xpose.msra.mxu0 0.0
    %2562 = vmatprep.subr.mxu0 0.0
    %2563 = vmatpush2.xpose.msra.mxu0 0.0
    %2564 = vmatprep.subr.mxu0 0.0
    %2565 = vmatpush2.xpose.msra.mxu0 0.0
    %2566 = vmatprep.subr.mxu0 0.0
    %2567 = vmatpush2.xpose.msra.mxu0 0.0
    %2568 = vmatprep.subr.mxu0 0.0
    %2569 = vmatpush2.xpose.msra.mxu0 0.0
    %2570 = vmatprep.subr.mxu0 0.0
    %2571 = vmatpush2.xpose.msra.mxu0 0.0
    %2572 = vmatprep.subr.mxu0 0.0
    %2573 = vmatpush2.xpose.msra.mxu0 0.0
    %2574 = vmatprep.subr.mxu0 0.0
    %2575 = vmatpush2.xpose.msra.mxu0 0.0
    %2576 = vmatprep.subr.mxu0 0.0
    %2577 = vmatpush2.xpose.msra.mxu0 0.0
    %2578 = vmatprep.subr.mxu0 0.0
    %2579 = vmatpush2.xpose.msra.mxu0 0.0
    %2580 = vmatprep.subr.mxu0 0.0
    %2581 = vmatpush2.xpose.msra.mxu0 0.0
    %2582 = vmatprep.subr.mxu0 0.0
    %2583 = vmatpush2.xpose.msra.mxu0 0.0
    %2584 = vmatprep.subr.mxu0 0.0
    %2585 = vmatpush2.xpose.msra.mxu0 0.0
    %2586 = vmatprep.subr.mxu0 0.0
    %2587 = vmatpush2.xpose.msra.mxu0 0.0
    %2588 = vmatprep.mubr.f32.mxu0 0.0
    %2589 = vmatmul.mubr.f32.gmra.mxu0 %v2519
    %v2590 = vpop.f32.mrf.mxu0
    %v2591 = vadd.f32 0.0, %v2590
    %v2592 = vpop.f32.mrf.mxu0
    %2593 = vdwg.mxu0
    %v2595 = vsel %vm1309, %v2053, 0
    %v2598 = vsel %vm1309, %v2061, 0
    %2600 = vmatprep.subr.mxu0 0.0
    %2601 = vmatpush1.xpose.msra.mxu0 0.0
    %2602 = vmatprep.subr.mxu0 0.0
    %2603 = vmatpush1.xpose.msra.mxu0 0.0
    %2604 = vmatprep.subr.mxu0 0.0
    %2605 = vmatpush1.xpose.msra.mxu0 0.0
    %2606 = vmatprep.subr.mxu0 0.0
    %2607 = vmatpush1.xpose.msra.mxu0 0.0
    %2608 = vmatprep.subr.mxu0 0.0
    %2609 = vmatpush1.xpose.msra.mxu0 0.0
    %2610 = vmatprep.subr.mxu0 0.0
    %2611 = vmatpush1.xpose.msra.mxu0 0.0
    %2612 = vmatprep.subr.mxu0 0.0
    %2613 = vmatpush1.xpose.msra.mxu0 0.0
    %2614 = vmatprep.subr.mxu0 0.0
    %2615 = vmatpush1.xpose.msra.mxu0 0.0
    %2616 = vmatprep.subr.mxu0 0.0
    %2617 = vmatpush1.xpose.msra.mxu0 0.0
    %2618 = vmatprep.subr.mxu0 0.0
    %2619 = vmatpush1.xpose.msra.mxu0 0.0
    %2620 = vmatprep.subr.mxu0 0.0
    %2621 = vmatpush1.xpose.msra.mxu0 0.0
    %2622 = vmatprep.subr.mxu0 0.0
    %2623 = vmatpush1.xpose.msra.mxu0 0.0
    %2624 = vmatprep.subr.mxu0 0.0
    %2625 = vmatpush1.xpose.msra.mxu0 0.0
    %2626 = vmatprep.subr.mxu0 0.0
    %2627 = vmatpush1.xpose.msra.mxu0 0.0
    %2628 = vmatprep.subr.mxu0 0.0
    %2629 = vmatpush1.xpose.msra.mxu0 0.0
    %2630 = vmatprep.subr.mxu0 0.0
    %2631 = vmatpush1.xpose.msra.mxu0 %v2598
    %2632 = vmatprep.subr.mxu0 0.0
    %2633 = vmatpush2.xpose.msra.mxu0 0.0
    %2634 = vmatprep.subr.mxu0 0.0
    %2635 = vmatpush2.xpose.msra.mxu0 0.0
    %2636 = vmatprep.subr.mxu0 0.0
    %2637 = vmatpush2.xpose.msra.mxu0 0.0
    %2638 = vmatprep.subr.mxu0 0.0
    %2639 = vmatpush2.xpose.msra.mxu0 0.0
    %2640 = vmatprep.subr.mxu0 0.0
    %2641 = vmatpush2.xpose.msra.mxu0 0.0
    %2642 = vmatprep.subr.mxu0 0.0
    %2643 = vmatpush2.xpose.msra.mxu0 0.0
    %2644 = vmatprep.subr.mxu0 0.0
    %2645 = vmatpush2.xpose.msra.mxu0 0.0
    %2646 = vmatprep.subr.mxu0 0.0
    %2647 = vmatpush2.xpose.msra.mxu0 0.0
    %2648 = vmatprep.subr.mxu0 0.0
    %2649 = vmatpush2.xpose.msra.mxu0 0.0
    %2650 = vmatprep.subr.mxu0 0.0
    %2651 = vmatpush2.xpose.msra.mxu0 0.0
    %2652 = vmatprep.subr.mxu0 0.0
    %2653 = vmatpush2.xpose.msra.mxu0 0.0
    %2654 = vmatprep.subr.mxu0 0.0
    %2655 = vmatpush2.xpose.msra.mxu0 0.0
    %2656 = vmatprep.subr.mxu0 0.0
    %2657 = vmatpush2.xpose.msra.mxu0 0.0
    %2658 = vmatprep.subr.mxu0 0.0
    %2659 = vmatpush2.xpose.msra.mxu0 0.0
    %2660 = vmatprep.subr.mxu0 0.0
    %2661 = vmatpush2.xpose.msra.mxu0 0.0
    %2662 = vmatprep.subr.mxu0 0.0
    %2663 = vmatpush2.xpose.msra.mxu0 0.0
    %2664 = vmatprep.mubr.f32.mxu0 0.0
    %2665 = vmatmul.mubr.f32.gmra.mxu0 %v2595
    %v2666 = vpop.f32.mrf.mxu0
    %v2667 = vadd.f32 0.0, %v2666
    %v2668 = vpop.f32.mrf.mxu0
    %2669 = vdwg.mxu0
    %v2678 = vrot.slane %v2211, 7
    %v2679 = vsel %vm173, %v2678, %v2135
    %v2680 = vrot.slane %v2287, 6
    %v2681 = vsel %vm176, %v2680, %v2679
    %v2682 = vrot.slane %v2363, 5
    %v2683 = vsel %vm179, %v2682, %v2681
    %v2684 = vrot.slane %v2439, 4
    %v2685 = vsel %vm182, %v2684, %v2683
    %v2686 = vrot.slane %v2515, 3
    %v2687 = vsel %vm185, %v2686, %v2685
    %v2688 = vrot.slane %v2591, 2
    %v2689 = vsel %vm188, %v2688, %v2687
    %v2690 = vrot.slane %v2667, 1
    %v2691 = vsel %vm191, %v2690, %v2689
    %v2693 = vrot.slane %v2135, 1
    %v2694 = vsel %vm173, %v2211, %v2693
    %v2695 = vrot.slane %v2287, 7
    %v2696 = vsel %vm176, %v2695, %v2694
    %v2697 = vrot.slane %v2363, 6
    %v2698 = vsel %vm179, %v2697, %v2696
    %v2699 = vrot.slane %v2439, 5
    %v2700 = vsel %vm182, %v2699, %v2698
    %v2701 = vrot.slane %v2515, 4
    %v2702 = vsel %vm185, %v2701, %v2700
    %v2703 = vrot.slane %v2591, 3
    %v2704 = vsel %vm188, %v2703, %v2702
    %v2705 = vrot.slane %v2667, 2
    %v2706 = vsel %vm191, %v2705, %v2704
    %2707 = vrot.lane.b32.xlu0 %v2706, 8
    %v2708 = vpop.permute.xlu0 %2707
    %v2710 = vrot.slane %v2135, 2
    %v2711 = vrot.slane %v2211, 1
    %v2712 = vsel %vm173, %v2711, %v2710
    %v2713 = vsel %vm176, %v2287, %v2712
    %v2714 = vrot.slane %v2363, 7
    %v2715 = vsel %vm179, %v2714, %v2713
    %v2716 = vrot.slane %v2439, 6
    %v2717 = vsel %vm182, %v2716, %v2715
    %v2718 = vrot.slane %v2515, 5
    %v2719 = vsel %vm185, %v2718, %v2717
    %v2720 = vrot.slane %v2591, 4
    %v2721 = vsel %vm188, %v2720, %v2719
    %v2722 = vrot.slane %v2667, 3
    %v2723 = vsel %vm191, %v2722, %v2721
    %2724 = vrot.lane.b32.xlu0 %v2723, 16
    %v2725 = vpop.permute.xlu0 %2724
    %v2727 = vrot.slane %v2135, 3
    %v2728 = vrot.slane %v2211, 2
    %v2729 = vsel %vm173, %v2728, %v2727
    %v2730 = vrot.slane %v2287, 1
    %v2731 = vsel %vm176, %v2730, %v2729
    %v2732 = vsel %vm179, %v2363, %v2731
    %v2733 = vrot.slane %v2439, 7
    %v2734 = vsel %vm182, %v2733, %v2732
    %v2735 = vrot.slane %v2515, 6
    %v2736 = vsel %vm185, %v2735, %v2734
    %v2737 = vrot.slane %v2591, 5
    %v2738 = vsel %vm188, %v2737, %v2736
    %v2739 = vrot.slane %v2667, 4
    %v2740 = vsel %vm191, %v2739, %v2738
    %2741 = vrot.lane.b32.xlu0 %v2740, 24
    %v2742 = vpop.permute.xlu0 %2741
    %v2744 = vsel %vm1309, %v2691, %v2708
    %vm2745 = vcmask 130048
    %v2746 = vsel %vm2745, %v2744, %v2725
    %vm2747 = vcmask 195584
    %v2748 = vsel %vm2747, %v2746, %v2742
    %v2749 = vld [vmem:[%s5] sm:$0xff]
    %v2750 = vld [vmem:[%s5 + $0x8] sm:$0xff]
    %v2751 = vld [vmem:[%s5 + $0x10] sm:$0xff]
    %v2752 = vld [vmem:[%s5 + $0x18] sm:$0xff]
    %v2753 = vsel %vm1309, %v105, 0.0
    %2754 = vadd.xlane.f32.xlu0 %v2753
    %v2755 = vpop.xlane.xlu0 %2754
    %vm2756 = vcmp.gt.f32.partialorder %v2755, 0.0
    %v2757 = vsel %vm2756, 1, 0
    %v2758 = vcvt.s32.f32 %v2757
    %v2759 = vld [vmem:[#allocation11] sm:$0x1]
    %v2761 = vlaneseq
    %v2762 = vshrl.u32 %v2761, 7
    %v2763 = vsub.s32 0, %v2762
    %v2764 = vrot.slane %v2759, %v2763
    %v2766 = vmul.f32 %v2758, %v2764
    %v2768 = vsel %vm1697, %v2748, 0
    %2770 = vmatprep.subr.mxu0 0.0
    %2771 = vmatpush1.msra.mxu0 0.0
    %2772 = vmatprep.subr.mxu0 0.0
    %2773 = vmatpush1.msra.mxu0 0.0
    %2774 = vmatprep.subr.mxu0 0.0
    %2775 = vmatpush1.msra.mxu0 0.0
    %2776 = vmatprep.subr.mxu0 0.0
    %2777 = vmatpush1.msra.mxu0 0.0
    %2778 = vmatprep.subr.mxu0 0.0
    %2779 = vmatpush1.msra.mxu0 0.0
    %2780 = vmatprep.subr.mxu0 0.0
    %2781 = vmatpush1.msra.mxu0 0.0
    %2782 = vmatprep.subr.mxu0 0.0
    %2783 = vmatpush1.msra.mxu0 0.0
    %2784 = vmatprep.subr.mxu0 0.0
    %2785 = vmatpush1.msra.mxu0 0.0
    %2786 = vmatprep.subr.mxu0 0.0
    %2787 = vmatpush1.msra.mxu0 0.0
    %2788 = vmatprep.subr.mxu0 0.0
    %2789 = vmatpush1.msra.mxu0 0.0
    %2790 = vmatprep.subr.mxu0 0.0
    %2791 = vmatpush1.msra.mxu0 0.0
    %2792 = vmatprep.subr.mxu0 0.0
    %2793 = vmatpush1.msra.mxu0 0.0
    %2794 = vmatprep.subr.mxu0 0.0
    %2795 = vmatpush1.msra.mxu0 %v2752
    %2796 = vmatprep.subr.mxu0 0.0
    %2797 = vmatpush1.msra.mxu0 %v2751
    %2798 = vmatprep.subr.mxu0 0.0
    %2799 = vmatpush1.msra.mxu0 %v2750
    %2800 = vmatprep.subr.mxu0 0.0
    %2801 = vmatpush1.msra.mxu0 %v2749
    %2802 = vmatprep.subr.mxu0 0.0
    %2803 = vmatpush2.msra.mxu0 0.0
    %2804 = vmatprep.subr.mxu0 0.0
    %2805 = vmatpush2.msra.mxu0 0.0
    %2806 = vmatprep.subr.mxu0 0.0
    %2807 = vmatpush2.msra.mxu0 0.0
    %2808 = vmatprep.subr.mxu0 0.0
    %2809 = vmatpush2.msra.mxu0 0.0
    %2810 = vmatprep.subr.mxu0 0.0
    %2811 = vmatpush2.msra.mxu0 0.0
    %2812 = vmatprep.subr.mxu0 0.0
    %2813 = vmatpush2.msra.mxu0 0.0
    %2814 = vmatprep.subr.mxu0 0.0
    %2815 = vmatpush2.msra.mxu0 0.0
    %2816 = vmatprep.subr.mxu0 0.0
    %2817 = vmatpush2.msra.mxu0 0.0
    %2818 = vmatprep.subr.mxu0 0.0
    %2819 = vmatpush2.msra.mxu0 0.0
    %2820 = vmatprep.subr.mxu0 0.0
    %2821 = vmatpush2.msra.mxu0 0.0
    %2822 = vmatprep.subr.mxu0 0.0
    %2823 = vmatpush2.msra.mxu0 0.0
    %2824 = vmatprep.subr.mxu0 0.0
    %2825 = vmatpush2.msra.mxu0 0.0
    %2826 = vmatprep.subr.mxu0 0.0
    %2827 = vmatpush2.msra.mxu0 0.0
    %2828 = vmatprep.subr.mxu0 0.0
    %2829 = vmatpush2.msra.mxu0 0.0
    %2830 = vmatprep.subr.mxu0 0.0
    %2831 = vmatpush2.msra.mxu0 0.0
    %2832 = vmatprep.subr.mxu0 0.0
    %2833 = vmatpush2.msra.mxu0 0.0
    %2834 = vmatprep.mubr.f32.mxu0 0.0
    %2835 = vmatmul.mubr.f32.gmra.mxu0 %v2768
    %v2836 = vpop.f32.mrf.mxu0
    %v2837 = vadd.f32 %v2766, %v2836
    %v2838 = vpop.f32.mrf.mxu0
    %2839 = vdwg.mxu0
    %v2840 = vadd.f32 %v1702, %v2837
    %2841 = vst [vmem:[#allocation13] sm:$0xff] %v2840
    // Predicated region
    $region58: #{tpu_custom_call.1} parent=1 // pred_check
      _
    $region59: #{tpu_custom_call.1} parent=1 // pred_check_branch
      %2843 = sbr.rel (0) target = $region61
    $region60: #{tpu_custom_call.1} parent=1 // pred_region
      %s2845 = ssub.s32 128, 128
      %2846 = vsyncadd [#allocation4], %s2845
      %s2848 = sshll.u32 [#allocation13], 4
      %s2849 = int_to_ptr.vmem [resolvable:$true] %s2848
      %2851 = dma.vmem_to_hbm [thread:$0]  %s2849, 128, %s8, [#allocation4]
    $region61: #{tpu_custom_call.1} parent=1 // pred_fallthru
      _
    // Predicated region
    $region62: #{tpu_custom_call.1} parent=1 // pred_check
      _
    $region63: #{tpu_custom_call.1} parent=1 // pred_check_branch
      %2853 = sbr.rel (0) target = $region65
    $region64: #{tpu_custom_call.1} parent=1 // pred_region
      %2854 = dma.done [#allocation4], 128
    $region65: #{tpu_custom_call.1} parent=1 // pred_fallthru
      _
    %2855 = vsyncpa [#allocation3], 1
    %2856 = vsyncpa [#allocation7], 1
    %2857 = vsyncpa [#allocation10], 1
    %2858 = vsyncpa [#allocation4], 1
    %2859 = vsyncpa [#allocation5], 1

</llo_original>
